<compile_context>
chip_gen: v7x
topology: tpu7x:2x2x1
jax: 0.10.0
libtpu: 0.0.40
codegen_flags: <defaults>
</compile_context>

<pallas_src>
import math

import jax
import jax.numpy as jnp
from jax.experimental import pallas as pl
from jax.experimental.pallas import tpu as pltpu

EMB_SIZE = 40
NUM_HEADS = 5
HEAD_DIM = EMB_SIZE // NUM_HEADS
SEQ_LEN = 8
BATCH = 2
DROPOUT = 0.0  # TODO(synk): att_drop with p>0 in train mode not implemented (identity here)


def mha_kernel(x_ref, wqkv_ref, bqkv_ref, wp_ref, bp_ref, o_ref):
    B, N, E = BATCH, SEQ_LEN, EMB_SIZE
    H, D = NUM_HEADS, HEAD_DIM

    x = x_ref[...]          # (B*N, E) f32
    bp = bp_ref[...]        # (1, E)

    # Per-head Q/K/V projections.  The head split lives in the host-side
    # weight layout (3H, E, D): each head is its own (BN,E)@(E,D) MXU matmul,
    # so no in-kernel lane slicing / relayout is needed.  Scale 1/sqrt(E) is
    # already folded into the Q weights & bias.
    q_h, k_h, v_h = [], [], []
    for h in range(H):
        q_h.append(jnp.dot(x, wqkv_ref[h],
                           preferred_element_type=jnp.float32) + bqkv_ref[h])
        k_h.append(jnp.dot(x, wqkv_ref[H + h],
                           preferred_element_type=jnp.float32) + bqkv_ref[H + h])
        v_h.append(jnp.dot(x, wqkv_ref[2 * H + h],
                           preferred_element_type=jnp.float32) + bqkv_ref[2 * H + h])

    # Per-(batch, head) attention, fully unrolled (B*H = 10 tiny 8x8 tiles).
    # Row slices are sublane-aligned (N == 8 == one sublane tile).  The head
    # merge and output projection are fused: out_b = sum_h ctx_h @ Wp_h, which
    # replaces lane-direction concatenates with MXU matmuls (MXU is idle).
    for b in range(B):
        lo, hi = b * N, (b + 1) * N
        out_b = None
        for h in range(H):
            q = q_h[h][lo:hi, :]                         # (N, D)
            k = k_h[h][lo:hi, :]
            v = v_h[h][lo:hi, :]

            # energy: qd,kd->qk  (scale already folded into Q)
            s = jnp.einsum('qd,kd->qk', q, k,
                           preferred_element_type=jnp.float32)        # (N, N)

            # numerically-stable softmax; denominator via reciprocal multiply
            m = jnp.max(s, axis=-1, keepdims=True)
            e = jnp.exp(s - m)
            p = e * pl.reciprocal(jnp.sum(e, axis=-1, keepdims=True),
                                  approx=False)

            ctx = jnp.dot(p, v, preferred_element_type=jnp.float32)    # (N, D)
            contrib = jnp.dot(ctx, wp_ref[h],
                              preferred_element_type=jnp.float32)      # (N, E)
            out_b = contrib if out_b is None else out_b + contrib

        o_ref[b * N:(b + 1) * N, :] = (out_b + bp).astype(o_ref.dtype)


def multi_head_attention(x, wq, bq, wk, bk, wv, bv, wp, bp):
    B, N, E = x.shape
    assert E == EMB_SIZE and N == SEQ_LEN
    H, D = NUM_HEADS, HEAD_DIM

    # --- host-side prep (free, one-time) ---
    scale = E ** 0.5  # module scales by sqrt(emb_size), not sqrt(head_dim)

    def per_head(w):  # nn.Linear weight (out, in) -> (H, in, D), head-major
        return jnp.transpose(w.reshape(H, D, E), (0, 2, 1))

    w_qkv = jnp.concatenate(
        [per_head(wq) / scale, per_head(wk), per_head(wv)], axis=0)    # (3H, E, D)
    b_qkv = jnp.concatenate([bq / scale, bk, bv]).reshape(3 * H, 1, D)  # (3H, 1, D)
    w_p = wp.T.reshape(H, D, E)                                         # (H, D, E)
    b_p = bp.reshape(1, E)                                              # (1, E)
    x_flat = x.reshape(B * N, E)

    # Single kernel invocation (grid of 1): everything fits in VMEM, a batch
    # grid would only add per-step pipeline overhead.  (On v7x one could keep
    # grid=(B,) marked "parallel" to use both TensorCores instead.)
    out = pl.pallas_call(
        mha_kernel,
        out_shape=jax.ShapeDtypeStruct((B * N, E), x.dtype),
        grid_spec=pltpu.PrefetchScalarGridSpec(
            num_scalar_prefetch=0,
            grid=(1,),
            in_specs=[
                pl.BlockSpec((B * N, E), lambda i: (0, 0)),          # x (flattened)
                pl.BlockSpec((3 * H, E, D), lambda i: (0, 0, 0)),    # per-head QKV weights
                pl.BlockSpec((3 * H, 1, D), lambda i: (0, 0, 0)),    # per-head QKV biases
                pl.BlockSpec((H, D, E), lambda i: (0, 0, 0)),        # per-head proj weights
                pl.BlockSpec((1, E), lambda i: (0, 0)),              # proj bias
            ],
            out_specs=pl.BlockSpec((B * N, E), lambda i: (0, 0)),
        ),
        compiler_params=pltpu.CompilerParams(
            dimension_semantics=("arbitrary",)),
    )(x_flat, w_qkv, b_qkv, w_p, b_p)

    return out.reshape(B, N, E)


def _init_linear(key, in_f, out_f):
    # Deterministic init mimicking nn.Linear's uniform(-1/sqrt(in), 1/sqrt(in))
    kw, kb = jax.random.split(key)
    bound = 1.0 / math.sqrt(in_f)
    w = jax.random.uniform(kw, (out_f, in_f), jnp.float32, -bound, bound)
    b = jax.random.uniform(kb, (out_f,), jnp.float32, -bound, bound)
    return w, b


if __name__ == "__main__":
    key = jax.random.PRNGKey(0)
    kx, kq, kk, kv, kp = jax.random.split(key, 5)

    x = jax.random.normal(kx, (BATCH, SEQ_LEN, EMB_SIZE), jnp.float32)

    wq, bq = _init_linear(kq, EMB_SIZE, EMB_SIZE)
    wk, bk = _init_linear(kk, EMB_SIZE, EMB_SIZE)
    wv, bv = _init_linear(kv, EMB_SIZE, EMB_SIZE)
    wp, bp = _init_linear(kp, EMB_SIZE, EMB_SIZE)

    out = multi_head_attention(x, wq, bq, wk, bk, wv, bv, wp, bp)
    jax.block_until_ready(out)

    # Pure-JAX reference check (same math as the PyTorch module, no Pallas)
    def ref(x):
        q = x @ wq.T + bq
        k = x @ wk.T + bk
        v = x @ wv.T + bv

        def split(t):
            return t.reshape(BATCH, SEQ_LEN, NUM_HEADS, HEAD_DIM).transpose(0, 2, 1, 3)

        qh, kh, vh = split(q), split(k), split(v)
        energy = jnp.einsum('bhqd,bhkd->bhqk', qh, kh) / (EMB_SIZE ** 0.5)
        att = jax.nn.softmax(energy, axis=-1)
        o = jnp.einsum('bhal,bhlv->bhav', att, vh)
        o = o.transpose(0, 2, 1, 3).reshape(BATCH, SEQ_LEN, EMB_SIZE)
        return o @ wp.T + bp

    ref_out = ref(x)
    assert jnp.allclose(out, ref_out, atol=1e-4, rtol=1e-4), \
        f"mismatch: max abs err {jnp.max(jnp.abs(out - ref_out))}"

    print("KERNEL_OK")
</pallas_src>

<mosaic_0001>
module attributes {stable_mosaic.version = 11 : i64} {
  func.func @mha_kernel(%arg0: i32, %arg1: memref<16x40xf32, #tpu.memory_space<vmem>>, %arg2: memref<15x40x8xf32, #tpu.memory_space<vmem>>, %arg3: memref<15x1x8xf32, #tpu.memory_space<vmem>>, %arg4: memref<5x8x40xf32, #tpu.memory_space<vmem>>, %arg5: memref<1x40xf32, #tpu.memory_space<vmem>>, %arg6: memref<16x40xf32, #tpu.memory_space<vmem>>) attributes {dimension_semantics = [#tpu.dimension_semantics<arbitrary>], iteration_bounds = array<i64: 1>, scalar_prefetch = 0 : i64, scratch_operands = 0 : i64, tpu.core_type = #tpu.core_type<tc>, window_params = [{pipeline_mode = #tpu.pipeline_mode<synchronous>, transform_indices = @transform_0, window_bounds = array<i64: 16, 40>}, {pipeline_mode = #tpu.pipeline_mode<synchronous>, transform_indices = @transform_1, window_bounds = array<i64: 15, 40, 8>}, {pipeline_mode = #tpu.pipeline_mode<synchronous>, transform_indices = @transform_2, window_bounds = array<i64: 15, 1, 8>}, {pipeline_mode = #tpu.pipeline_mode<synchronous>, transform_indices = @transform_3, window_bounds = array<i64: 5, 8, 40>}, {pipeline_mode = #tpu.pipeline_mode<synchronous>, transform_indices = @transform_4, window_bounds = array<i64: 1, 40>}, {pipeline_mode = #tpu.pipeline_mode<synchronous>, transform_indices = @transform_5, window_bounds = array<i64: 16, 40>}]} {
    %c0 = arith.constant 0 : index
    %c0_0 = arith.constant 0 : index
    %0 = vector.load %arg1[%c0, %c0_0] : memref<16x40xf32, #tpu.memory_space<vmem>>, vector<16x40xf32>
    %c0_1 = arith.constant 0 : index
    %c0_2 = arith.constant 0 : index
    %1 = vector.load %arg5[%c0_1, %c0_2] : memref<1x40xf32, #tpu.memory_space<vmem>>, vector<1x40xf32>
    %c0_3 = arith.constant 0 : index
    %c0_4 = arith.constant 0 : index
    %c0_5 = arith.constant 0 : index
    %2 = vector.load %arg2[%c0_3, %c0_4, %c0_5] : memref<15x40x8xf32, #tpu.memory_space<vmem>>, vector<1x40x8xf32>
    %3 = vector.shape_cast %2 : vector<1x40x8xf32> to vector<40x8xf32>
    %cst = arith.constant dense<0.000000e+00> : vector<16x8xf32>
    %4 = tpu.matmul %0, %3, %cst {dimension_numbers = #tpu.dot_dimension_numbers<[1], [0], [0], [1], [0, 0, 1, 1], [], []>} : vector<16x40xf32>, vector<40x8xf32>, vector<16x8xf32> -> vector<16x8xf32>
    %c0_6 = arith.constant 0 : index
    %c0_7 = arith.constant 0 : index
    %c0_8 = arith.constant 0 : index
    %5 = vector.load %arg3[%c0_6, %c0_7, %c0_8] : memref<15x1x8xf32, #tpu.memory_space<vmem>>, vector<1x1x8xf32>
    %6 = vector.shape_cast %5 : vector<1x1x8xf32> to vector<1x8xf32>
    %7 = vector.broadcast %6 : vector<1x8xf32> to vector<16x8xf32>
    %8 = arith.addf %4, %7 : vector<16x8xf32>
    %c5 = arith.constant 5 : index
    %c0_9 = arith.constant 0 : index
    %c0_10 = arith.constant 0 : index
    %9 = vector.load %arg2[%c5, %c0_9, %c0_10] : memref<15x40x8xf32, #tpu.memory_space<vmem>>, vector<1x40x8xf32>
    %10 = vector.shape_cast %9 : vector<1x40x8xf32> to vector<40x8xf32>
    %cst_11 = arith.constant dense<0.000000e+00> : vector<16x8xf32>
    %11 = tpu.matmul %0, %10, %cst_11 {dimension_numbers = #tpu.dot_dimension_numbers<[1], [0], [0], [1], [0, 0, 1, 1], [], []>} : vector<16x40xf32>, vector<40x8xf32>, vector<16x8xf32> -> vector<16x8xf32>
    %c5_12 = arith.constant 5 : index
    %c0_13 = arith.constant 0 : index
    %c0_14 = arith.constant 0 : index
    %12 = vector.load %arg3[%c5_12, %c0_13, %c0_14] : memref<15x1x8xf32, #tpu.memory_space<vmem>>, vector<1x1x8xf32>
    %13 = vector.shape_cast %12 : vector<1x1x8xf32> to vector<1x8xf32>
    %14 = vector.broadcast %13 : vector<1x8xf32> to vector<16x8xf32>
    %15 = arith.addf %11, %14 : vector<16x8xf32>
    %c10 = arith.constant 10 : index
    %c0_15 = arith.constant 0 : index
    %c0_16 = arith.constant 0 : index
    %16 = vector.load %arg2[%c10, %c0_15, %c0_16] : memref<15x40x8xf32, #tpu.memory_space<vmem>>, vector<1x40x8xf32>
    %17 = vector.shape_cast %16 : vector<1x40x8xf32> to vector<40x8xf32>
    %cst_17 = arith.constant dense<0.000000e+00> : vector<16x8xf32>
    %18 = tpu.matmul %0, %17, %cst_17 {dimension_numbers = #tpu.dot_dimension_numbers<[1], [0], [0], [1], [0, 0, 1, 1], [], []>} : vector<16x40xf32>, vector<40x8xf32>, vector<16x8xf32> -> vector<16x8xf32>
    %c10_18 = arith.constant 10 : index
    %c0_19 = arith.constant 0 : index
    %c0_20 = arith.constant 0 : index
    %19 = vector.load %arg3[%c10_18, %c0_19, %c0_20] : memref<15x1x8xf32, #tpu.memory_space<vmem>>, vector<1x1x8xf32>
    %20 = vector.shape_cast %19 : vector<1x1x8xf32> to vector<1x8xf32>
    %21 = vector.broadcast %20 : vector<1x8xf32> to vector<16x8xf32>
    %22 = arith.addf %18, %21 : vector<16x8xf32>
    %c1 = arith.constant 1 : index
    %c0_21 = arith.constant 0 : index
    %c0_22 = arith.constant 0 : index
    %23 = vector.load %arg2[%c1, %c0_21, %c0_22] : memref<15x40x8xf32, #tpu.memory_space<vmem>>, vector<1x40x8xf32>
    %24 = vector.shape_cast %23 : vector<1x40x8xf32> to vector<40x8xf32>
    %cst_23 = arith.constant dense<0.000000e+00> : vector<16x8xf32>
    %25 = tpu.matmul %0, %24, %cst_23 {dimension_numbers = #tpu.dot_dimension_numbers<[1], [0], [0], [1], [0, 0, 1, 1], [], []>} : vector<16x40xf32>, vector<40x8xf32>, vector<16x8xf32> -> vector<16x8xf32>
    %c1_24 = arith.constant 1 : index
    %c0_25 = arith.constant 0 : index
    %c0_26 = arith.constant 0 : index
    %26 = vector.load %arg3[%c1_24, %c0_25, %c0_26] : memref<15x1x8xf32, #tpu.memory_space<vmem>>, vector<1x1x8xf32>
    %27 = vector.shape_cast %26 : vector<1x1x8xf32> to vector<1x8xf32>
    %28 = vector.broadcast %27 : vector<1x8xf32> to vector<16x8xf32>
    %29 = arith.addf %25, %28 : vector<16x8xf32>
    %c6 = arith.constant 6 : index
    %c0_27 = arith.constant 0 : index
    %c0_28 = arith.constant 0 : index
    %30 = vector.load %arg2[%c6, %c0_27, %c0_28] : memref<15x40x8xf32, #tpu.memory_space<vmem>>, vector<1x40x8xf32>
    %31 = vector.shape_cast %30 : vector<1x40x8xf32> to vector<40x8xf32>
    %cst_29 = arith.constant dense<0.000000e+00> : vector<16x8xf32>
    %32 = tpu.matmul %0, %31, %cst_29 {dimension_numbers = #tpu.dot_dimension_numbers<[1], [0], [0], [1], [0, 0, 1, 1], [], []>} : vector<16x40xf32>, vector<40x8xf32>, vector<16x8xf32> -> vector<16x8xf32>
    %c6_30 = arith.constant 6 : index
    %c0_31 = arith.constant 0 : index
    %c0_32 = arith.constant 0 : index
    %33 = vector.load %arg3[%c6_30, %c0_31, %c0_32] : memref<15x1x8xf32, #tpu.memory_space<vmem>>, vector<1x1x8xf32>
    %34 = vector.shape_cast %33 : vector<1x1x8xf32> to vector<1x8xf32>
    %35 = vector.broadcast %34 : vector<1x8xf32> to vector<16x8xf32>
    %36 = arith.addf %32, %35 : vector<16x8xf32>
    %c11 = arith.constant 11 : index
    %c0_33 = arith.constant 0 : index
    %c0_34 = arith.constant 0 : index
    %37 = vector.load %arg2[%c11, %c0_33, %c0_34] : memref<15x40x8xf32, #tpu.memory_space<vmem>>, vector<1x40x8xf32>
    %38 = vector.shape_cast %37 : vector<1x40x8xf32> to vector<40x8xf32>
    %cst_35 = arith.constant dense<0.000000e+00> : vector<16x8xf32>
    %39 = tpu.matmul %0, %38, %cst_35 {dimension_numbers = #tpu.dot_dimension_numbers<[1], [0], [0], [1], [0, 0, 1, 1], [], []>} : vector<16x40xf32>, vector<40x8xf32>, vector<16x8xf32> -> vector<16x8xf32>
    %c11_36 = arith.constant 11 : index
    %c0_37 = arith.constant 0 : index
    %c0_38 = arith.constant 0 : index
    %40 = vector.load %arg3[%c11_36, %c0_37, %c0_38] : memref<15x1x8xf32, #tpu.memory_space<vmem>>, vector<1x1x8xf32>
    %41 = vector.shape_cast %40 : vector<1x1x8xf32> to vector<1x8xf32>
    %42 = vector.broadcast %41 : vector<1x8xf32> to vector<16x8xf32>
    %43 = arith.addf %39, %42 : vector<16x8xf32>
    %c2 = arith.constant 2 : index
    %c0_39 = arith.constant 0 : index
    %c0_40 = arith.constant 0 : index
    %44 = vector.load %arg2[%c2, %c0_39, %c0_40] : memref<15x40x8xf32, #tpu.memory_space<vmem>>, vector<1x40x8xf32>
    %45 = vector.shape_cast %44 : vector<1x40x8xf32> to vector<40x8xf32>
    %cst_41 = arith.constant dense<0.000000e+00> : vector<16x8xf32>
    %46 = tpu.matmul %0, %45, %cst_41 {dimension_numbers = #tpu.dot_dimension_numbers<[1], [0], [0], [1], [0, 0, 1, 1], [], []>} : vector<16x40xf32>, vector<40x8xf32>, vector<16x8xf32> -> vector<16x8xf32>
    %c2_42 = arith.constant 2 : index
    %c0_43 = arith.constant 0 : index
    %c0_44 = arith.constant 0 : index
    %47 = vector.load %arg3[%c2_42, %c0_43, %c0_44] : memref<15x1x8xf32, #tpu.memory_space<vmem>>, vector<1x1x8xf32>
    %48 = vector.shape_cast %47 : vector<1x1x8xf32> to vector<1x8xf32>
    %49 = vector.broadcast %48 : vector<1x8xf32> to vector<16x8xf32>
    %50 = arith.addf %46, %49 : vector<16x8xf32>
    %c7 = arith.constant 7 : index
    %c0_45 = arith.constant 0 : index
    %c0_46 = arith.constant 0 : index
    %51 = vector.load %arg2[%c7, %c0_45, %c0_46] : memref<15x40x8xf32, #tpu.memory_space<vmem>>, vector<1x40x8xf32>
    %52 = vector.shape_cast %51 : vector<1x40x8xf32> to vector<40x8xf32>
    %cst_47 = arith.constant dense<0.000000e+00> : vector<16x8xf32>
    %53 = tpu.matmul %0, %52, %cst_47 {dimension_numbers = #tpu.dot_dimension_numbers<[1], [0], [0], [1], [0, 0, 1, 1], [], []>} : vector<16x40xf32>, vector<40x8xf32>, vector<16x8xf32> -> vector<16x8xf32>
    %c7_48 = arith.constant 7 : index
    %c0_49 = arith.constant 0 : index
    %c0_50 = arith.constant 0 : index
    %54 = vector.load %arg3[%c7_48, %c0_49, %c0_50] : memref<15x1x8xf32, #tpu.memory_space<vmem>>, vector<1x1x8xf32>
    %55 = vector.shape_cast %54 : vector<1x1x8xf32> to vector<1x8xf32>
    %56 = vector.broadcast %55 : vector<1x8xf32> to vector<16x8xf32>
    %57 = arith.addf %53, %56 : vector<16x8xf32>
    %c12 = arith.constant 12 : index
    %c0_51 = arith.constant 0 : index
    %c0_52 = arith.constant 0 : index
    %58 = vector.load %arg2[%c12, %c0_51, %c0_52] : memref<15x40x8xf32, #tpu.memory_space<vmem>>, vector<1x40x8xf32>
    %59 = vector.shape_cast %58 : vector<1x40x8xf32> to vector<40x8xf32>
    %cst_53 = arith.constant dense<0.000000e+00> : vector<16x8xf32>
    %60 = tpu.matmul %0, %59, %cst_53 {dimension_numbers = #tpu.dot_dimension_numbers<[1], [0], [0], [1], [0, 0, 1, 1], [], []>} : vector<16x40xf32>, vector<40x8xf32>, vector<16x8xf32> -> vector<16x8xf32>
    %c12_54 = arith.constant 12 : index
    %c0_55 = arith.constant 0 : index
    %c0_56 = arith.constant 0 : index
    %61 = vector.load %arg3[%c12_54, %c0_55, %c0_56] : memref<15x1x8xf32, #tpu.memory_space<vmem>>, vector<1x1x8xf32>
    %62 = vector.shape_cast %61 : vector<1x1x8xf32> to vector<1x8xf32>
    %63 = vector.broadcast %62 : vector<1x8xf32> to vector<16x8xf32>
    %64 = arith.addf %60, %63 : vector<16x8xf32>
    %c3 = arith.constant 3 : index
    %c0_57 = arith.constant 0 : index
    %c0_58 = arith.constant 0 : index
    %65 = vector.load %arg2[%c3, %c0_57, %c0_58] : memref<15x40x8xf32, #tpu.memory_space<vmem>>, vector<1x40x8xf32>
    %66 = vector.shape_cast %65 : vector<1x40x8xf32> to vector<40x8xf32>
    %cst_59 = arith.constant dense<0.000000e+00> : vector<16x8xf32>
    %67 = tpu.matmul %0, %66, %cst_59 {dimension_numbers = #tpu.dot_dimension_numbers<[1], [0], [0], [1], [0, 0, 1, 1], [], []>} : vector<16x40xf32>, vector<40x8xf32>, vector<16x8xf32> -> vector<16x8xf32>
    %c3_60 = arith.constant 3 : index
    %c0_61 = arith.constant 0 : index
    %c0_62 = arith.constant 0 : index
    %68 = vector.load %arg3[%c3_60, %c0_61, %c0_62] : memref<15x1x8xf32, #tpu.memory_space<vmem>>, vector<1x1x8xf32>
    %69 = vector.shape_cast %68 : vector<1x1x8xf32> to vector<1x8xf32>
    %70 = vector.broadcast %69 : vector<1x8xf32> to vector<16x8xf32>
    %71 = arith.addf %67, %70 : vector<16x8xf32>
    %c8 = arith.constant 8 : index
    %c0_63 = arith.constant 0 : index
    %c0_64 = arith.constant 0 : index
    %72 = vector.load %arg2[%c8, %c0_63, %c0_64] : memref<15x40x8xf32, #tpu.memory_space<vmem>>, vector<1x40x8xf32>
    %73 = vector.shape_cast %72 : vector<1x40x8xf32> to vector<40x8xf32>
    %cst_65 = arith.constant dense<0.000000e+00> : vector<16x8xf32>
    %74 = tpu.matmul %0, %73, %cst_65 {dimension_numbers = #tpu.dot_dimension_numbers<[1], [0], [0], [1], [0, 0, 1, 1], [], []>} : vector<16x40xf32>, vector<40x8xf32>, vector<16x8xf32> -> vector<16x8xf32>
    %c8_66 = arith.constant 8 : index
    %c0_67 = arith.constant 0 : index
    %c0_68 = arith.constant 0 : index
    %75 = vector.load %arg3[%c8_66, %c0_67, %c0_68] : memref<15x1x8xf32, #tpu.memory_space<vmem>>, vector<1x1x8xf32>
    %76 = vector.shape_cast %75 : vector<1x1x8xf32> to vector<1x8xf32>
    %77 = vector.broadcast %76 : vector<1x8xf32> to vector<16x8xf32>
    %78 = arith.addf %74, %77 : vector<16x8xf32>
    %c13 = arith.constant 13 : index
    %c0_69 = arith.constant 0 : index
    %c0_70 = arith.constant 0 : index
    %79 = vector.load %arg2[%c13, %c0_69, %c0_70] : memref<15x40x8xf32, #tpu.memory_space<vmem>>, vector<1x40x8xf32>
    %80 = vector.shape_cast %79 : vector<1x40x8xf32> to vector<40x8xf32>
    %cst_71 = arith.constant dense<0.000000e+00> : vector<16x8xf32>
    %81 = tpu.matmul %0, %80, %cst_71 {dimension_numbers = #tpu.dot_dimension_numbers<[1], [0], [0], [1], [0, 0, 1, 1], [], []>} : vector<16x40xf32>, vector<40x8xf32>, vector<16x8xf32> -> vector<16x8xf32>
    %c13_72 = arith.constant 13 : index
    %c0_73 = arith.constant 0 : index
    %c0_74 = arith.constant 0 : index
    %82 = vector.load %arg3[%c13_72, %c0_73, %c0_74] : memref<15x1x8xf32, #tpu.memory_space<vmem>>, vector<1x1x8xf32>
    %83 = vector.shape_cast %82 : vector<1x1x8xf32> to vector<1x8xf32>
    %84 = vector.broadcast %83 : vector<1x8xf32> to vector<16x8xf32>
    %85 = arith.addf %81, %84 : vector<16x8xf32>
    %c4 = arith.constant 4 : index
    %c0_75 = arith.constant 0 : index
    %c0_76 = arith.constant 0 : index
    %86 = vector.load %arg2[%c4, %c0_75, %c0_76] : memref<15x40x8xf32, #tpu.memory_space<vmem>>, vector<1x40x8xf32>
    %87 = vector.shape_cast %86 : vector<1x40x8xf32> to vector<40x8xf32>
    %cst_77 = arith.constant dense<0.000000e+00> : vector<16x8xf32>
    %88 = tpu.matmul %0, %87, %cst_77 {dimension_numbers = #tpu.dot_dimension_numbers<[1], [0], [0], [1], [0, 0, 1, 1], [], []>} : vector<16x40xf32>, vector<40x8xf32>, vector<16x8xf32> -> vector<16x8xf32>
    %c4_78 = arith.constant 4 : index
    %c0_79 = arith.constant 0 : index
    %c0_80 = arith.constant 0 : index
    %89 = vector.load %arg3[%c4_78, %c0_79, %c0_80] : memref<15x1x8xf32, #tpu.memory_space<vmem>>, vector<1x1x8xf32>
    %90 = vector.shape_cast %89 : vector<1x1x8xf32> to vector<1x8xf32>
    %91 = vector.broadcast %90 : vector<1x8xf32> to vector<16x8xf32>
    %92 = arith.addf %88, %91 : vector<16x8xf32>
    %c9 = arith.constant 9 : index
    %c0_81 = arith.constant 0 : index
    %c0_82 = arith.constant 0 : index
    %93 = vector.load %arg2[%c9, %c0_81, %c0_82] : memref<15x40x8xf32, #tpu.memory_space<vmem>>, vector<1x40x8xf32>
    %94 = vector.shape_cast %93 : vector<1x40x8xf32> to vector<40x8xf32>
    %cst_83 = arith.constant dense<0.000000e+00> : vector<16x8xf32>
    %95 = tpu.matmul %0, %94, %cst_83 {dimension_numbers = #tpu.dot_dimension_numbers<[1], [0], [0], [1], [0, 0, 1, 1], [], []>} : vector<16x40xf32>, vector<40x8xf32>, vector<16x8xf32> -> vector<16x8xf32>
    %c9_84 = arith.constant 9 : index
    %c0_85 = arith.constant 0 : index
    %c0_86 = arith.constant 0 : index
    %96 = vector.load %arg3[%c9_84, %c0_85, %c0_86] : memref<15x1x8xf32, #tpu.memory_space<vmem>>, vector<1x1x8xf32>
    %97 = vector.shape_cast %96 : vector<1x1x8xf32> to vector<1x8xf32>
    %98 = vector.broadcast %97 : vector<1x8xf32> to vector<16x8xf32>
    %99 = arith.addf %95, %98 : vector<16x8xf32>
    %c14 = arith.constant 14 : index
    %c0_87 = arith.constant 0 : index
    %c0_88 = arith.constant 0 : index
    %100 = vector.load %arg2[%c14, %c0_87, %c0_88] : memref<15x40x8xf32, #tpu.memory_space<vmem>>, vector<1x40x8xf32>
    %101 = vector.shape_cast %100 : vector<1x40x8xf32> to vector<40x8xf32>
    %cst_89 = arith.constant dense<0.000000e+00> : vector<16x8xf32>
    %102 = tpu.matmul %0, %101, %cst_89 {dimension_numbers = #tpu.dot_dimension_numbers<[1], [0], [0], [1], [0, 0, 1, 1], [], []>} : vector<16x40xf32>, vector<40x8xf32>, vector<16x8xf32> -> vector<16x8xf32>
    %c14_90 = arith.constant 14 : index
    %c0_91 = arith.constant 0 : index
    %c0_92 = arith.constant 0 : index
    %103 = vector.load %arg3[%c14_90, %c0_91, %c0_92] : memref<15x1x8xf32, #tpu.memory_space<vmem>>, vector<1x1x8xf32>
    %104 = vector.shape_cast %103 : vector<1x1x8xf32> to vector<1x8xf32>
    %105 = vector.broadcast %104 : vector<1x8xf32> to vector<16x8xf32>
    %106 = arith.addf %102, %105 : vector<16x8xf32>
    %107 = vector.extract_strided_slice %8 {offsets = [0, 0], sizes = [8, 8], strides = [1, 1]} : vector<16x8xf32> to vector<8x8xf32>
    %108 = vector.extract_strided_slice %15 {offsets = [0, 0], sizes = [8, 8], strides = [1, 1]} : vector<16x8xf32> to vector<8x8xf32>
    %109 = vector.extract_strided_slice %22 {offsets = [0, 0], sizes = [8, 8], strides = [1, 1]} : vector<16x8xf32> to vector<8x8xf32>
    "tpu.trace_start"() <{level = 10 : i32, message = "qd,kd->qk"}> : () -> ()
    %cst_93 = arith.constant dense<0.000000e+00> : vector<8x8xf32>
    %110 = tpu.matmul %107, %108, %cst_93 {dimension_numbers = #tpu.dot_dimension_numbers<[1], [1], [0], [0], [0, 0, 1, 0], [], []>} : vector<8x8xf32>, vector<8x8xf32>, vector<8x8xf32> -> vector<8x8xf32>
    "tpu.trace_stop"() : () -> ()
    %cst_94 = arith.constant dense<0xFF800000> : vector<8xf32>
    %111 = vector.multi_reduction <maximumf>, %110, %cst_94 [1] : vector<8x8xf32> to vector<8xf32>
    %112 = vector.shape_cast %111 : vector<8xf32> to vector<8x1xf32>
    %113 = vector.broadcast %112 : vector<8x1xf32> to vector<8x8xf32>
    %114 = arith.subf %110, %113 : vector<8x8xf32>
    %115 = math.exp %114 : vector<8x8xf32>
    %cst_95 = arith.constant dense<0.000000e+00> : vector<8xf32>
    %116 = vector.multi_reduction <add>, %115, %cst_95 [1] : vector<8x8xf32> to vector<8xf32>
    %117 = vector.shape_cast %116 : vector<8xf32> to vector<8x1xf32>
    %118 = tpu.reciprocal %117 : vector<8x1xf32> -> vector<8x1xf32>
    %119 = vector.broadcast %118 : vector<8x1xf32> to vector<8x8xf32>
    %120 = arith.mulf %115, %119 : vector<8x8xf32>
    %cst_96 = arith.constant dense<0.000000e+00> : vector<8x8xf32>
    %121 = tpu.matmul %120, %109, %cst_96 {dimension_numbers = #tpu.dot_dimension_numbers<[1], [0], [0], [1], [0, 0, 1, 1], [], []>} : vector<8x8xf32>, vector<8x8xf32>, vector<8x8xf32> -> vector<8x8xf32>
    %c0_97 = arith.constant 0 : index
    %c0_98 = arith.constant 0 : index
    %c0_99 = arith.constant 0 : index
    %122 = vector.load %arg4[%c0_97, %c0_98, %c0_99] : memref<5x8x40xf32, #tpu.memory_space<vmem>>, vector<1x8x40xf32>
    %123 = vector.shape_cast %122 : vector<1x8x40xf32> to vector<8x40xf32>
    %cst_100 = arith.constant dense<0.000000e+00> : vector<8x40xf32>
    %124 = tpu.matmul %121, %123, %cst_100 {dimension_numbers = #tpu.dot_dimension_numbers<[1], [0], [0], [1], [0, 0, 1, 1], [], []>} : vector<8x8xf32>, vector<8x40xf32>, vector<8x40xf32> -> vector<8x40xf32>
    %125 = vector.extract_strided_slice %29 {offsets = [0, 0], sizes = [8, 8], strides = [1, 1]} : vector<16x8xf32> to vector<8x8xf32>
    %126 = vector.extract_strided_slice %36 {offsets = [0, 0], sizes = [8, 8], strides = [1, 1]} : vector<16x8xf32> to vector<8x8xf32>
    %127 = vector.extract_strided_slice %43 {offsets = [0, 0], sizes = [8, 8], strides = [1, 1]} : vector<16x8xf32> to vector<8x8xf32>
    "tpu.trace_start"() <{level = 10 : i32, message = "qd,kd->qk"}> : () -> ()
    %cst_101 = arith.constant dense<0.000000e+00> : vector<8x8xf32>
    %128 = tpu.matmul %125, %126, %cst_101 {dimension_numbers = #tpu.dot_dimension_numbers<[1], [1], [0], [0], [0, 0, 1, 0], [], []>} : vector<8x8xf32>, vector<8x8xf32>, vector<8x8xf32> -> vector<8x8xf32>
    "tpu.trace_stop"() : () -> ()
    %cst_102 = arith.constant dense<0xFF800000> : vector<8xf32>
    %129 = vector.multi_reduction <maximumf>, %128, %cst_102 [1] : vector<8x8xf32> to vector<8xf32>
    %130 = vector.shape_cast %129 : vector<8xf32> to vector<8x1xf32>
    %131 = vector.broadcast %130 : vector<8x1xf32> to vector<8x8xf32>
    %132 = arith.subf %128, %131 : vector<8x8xf32>
    %133 = math.exp %132 : vector<8x8xf32>
    %cst_103 = arith.constant dense<0.000000e+00> : vector<8xf32>
    %134 = vector.multi_reduction <add>, %133, %cst_103 [1] : vector<8x8xf32> to vector<8xf32>
    %135 = vector.shape_cast %134 : vector<8xf32> to vector<8x1xf32>
    %136 = tpu.reciprocal %135 : vector<8x1xf32> -> vector<8x1xf32>
    %137 = vector.broadcast %136 : vector<8x1xf32> to vector<8x8xf32>
    %138 = arith.mulf %133, %137 : vector<8x8xf32>
    %cst_104 = arith.constant dense<0.000000e+00> : vector<8x8xf32>
    %139 = tpu.matmul %138, %127, %cst_104 {dimension_numbers = #tpu.dot_dimension_numbers<[1], [0], [0], [1], [0, 0, 1, 1], [], []>} : vector<8x8xf32>, vector<8x8xf32>, vector<8x8xf32> -> vector<8x8xf32>
    %c1_105 = arith.constant 1 : index
    %c0_106 = arith.constant 0 : index
    %c0_107 = arith.constant 0 : index
    %140 = vector.load %arg4[%c1_105, %c0_106, %c0_107] : memref<5x8x40xf32, #tpu.memory_space<vmem>>, vector<1x8x40xf32>
    %141 = vector.shape_cast %140 : vector<1x8x40xf32> to vector<8x40xf32>
    %cst_108 = arith.constant dense<0.000000e+00> : vector<8x40xf32>
    %142 = tpu.matmul %139, %141, %cst_108 {dimension_numbers = #tpu.dot_dimension_numbers<[1], [0], [0], [1], [0, 0, 1, 1], [], []>} : vector<8x8xf32>, vector<8x40xf32>, vector<8x40xf32> -> vector<8x40xf32>
    %143 = arith.addf %124, %142 : vector<8x40xf32>
    %144 = vector.extract_strided_slice %50 {offsets = [0, 0], sizes = [8, 8], strides = [1, 1]} : vector<16x8xf32> to vector<8x8xf32>
    %145 = vector.extract_strided_slice %57 {offsets = [0, 0], sizes = [8, 8], strides = [1, 1]} : vector<16x8xf32> to vector<8x8xf32>
    %146 = vector.extract_strided_slice %64 {offsets = [0, 0], sizes = [8, 8], strides = [1, 1]} : vector<16x8xf32> to vector<8x8xf32>
    "tpu.trace_start"() <{level = 10 : i32, message = "qd,kd->qk"}> : () -> ()
    %cst_109 = arith.constant dense<0.000000e+00> : vector<8x8xf32>
    %147 = tpu.matmul %144, %145, %cst_109 {dimension_numbers = #tpu.dot_dimension_numbers<[1], [1], [0], [0], [0, 0, 1, 0], [], []>} : vector<8x8xf32>, vector<8x8xf32>, vector<8x8xf32> -> vector<8x8xf32>
    "tpu.trace_stop"() : () -> ()
    %cst_110 = arith.constant dense<0xFF800000> : vector<8xf32>
    %148 = vector.multi_reduction <maximumf>, %147, %cst_110 [1] : vector<8x8xf32> to vector<8xf32>
    %149 = vector.shape_cast %148 : vector<8xf32> to vector<8x1xf32>
    %150 = vector.broadcast %149 : vector<8x1xf32> to vector<8x8xf32>
    %151 = arith.subf %147, %150 : vector<8x8xf32>
    %152 = math.exp %151 : vector<8x8xf32>
    %cst_111 = arith.constant dense<0.000000e+00> : vector<8xf32>
    %153 = vector.multi_reduction <add>, %152, %cst_111 [1] : vector<8x8xf32> to vector<8xf32>
    %154 = vector.shape_cast %153 : vector<8xf32> to vector<8x1xf32>
    %155 = tpu.reciprocal %154 : vector<8x1xf32> -> vector<8x1xf32>
    %156 = vector.broadcast %155 : vector<8x1xf32> to vector<8x8xf32>
    %157 = arith.mulf %152, %156 : vector<8x8xf32>
    %cst_112 = arith.constant dense<0.000000e+00> : vector<8x8xf32>
    %158 = tpu.matmul %157, %146, %cst_112 {dimension_numbers = #tpu.dot_dimension_numbers<[1], [0], [0], [1], [0, 0, 1, 1], [], []>} : vector<8x8xf32>, vector<8x8xf32>, vector<8x8xf32> -> vector<8x8xf32>
    %c2_113 = arith.constant 2 : index
    %c0_114 = arith.constant 0 : index
    %c0_115 = arith.constant 0 : index
    %159 = vector.load %arg4[%c2_113, %c0_114, %c0_115] : memref<5x8x40xf32, #tpu.memory_space<vmem>>, vector<1x8x40xf32>
    %160 = vector.shape_cast %159 : vector<1x8x40xf32> to vector<8x40xf32>
    %cst_116 = arith.constant dense<0.000000e+00> : vector<8x40xf32>
    %161 = tpu.matmul %158, %160, %cst_116 {dimension_numbers = #tpu.dot_dimension_numbers<[1], [0], [0], [1], [0, 0, 1, 1], [], []>} : vector<8x8xf32>, vector<8x40xf32>, vector<8x40xf32> -> vector<8x40xf32>
    %162 = arith.addf %143, %161 : vector<8x40xf32>
    %163 = vector.extract_strided_slice %71 {offsets = [0, 0], sizes = [8, 8], strides = [1, 1]} : vector<16x8xf32> to vector<8x8xf32>
    %164 = vector.extract_strided_slice %78 {offsets = [0, 0], sizes = [8, 8], strides = [1, 1]} : vector<16x8xf32> to vector<8x8xf32>
    %165 = vector.extract_strided_slice %85 {offsets = [0, 0], sizes = [8, 8], strides = [1, 1]} : vector<16x8xf32> to vector<8x8xf32>
    "tpu.trace_start"() <{level = 10 : i32, message = "qd,kd->qk"}> : () -> ()
    %cst_117 = arith.constant dense<0.000000e+00> : vector<8x8xf32>
    %166 = tpu.matmul %163, %164, %cst_117 {dimension_numbers = #tpu.dot_dimension_numbers<[1], [1], [0], [0], [0, 0, 1, 0], [], []>} : vector<8x8xf32>, vector<8x8xf32>, vector<8x8xf32> -> vector<8x8xf32>
    "tpu.trace_stop"() : () -> ()
    %cst_118 = arith.constant dense<0xFF800000> : vector<8xf32>
    %167 = vector.multi_reduction <maximumf>, %166, %cst_118 [1] : vector<8x8xf32> to vector<8xf32>
    %168 = vector.shape_cast %167 : vector<8xf32> to vector<8x1xf32>
    %169 = vector.broadcast %168 : vector<8x1xf32> to vector<8x8xf32>
    %170 = arith.subf %166, %169 : vector<8x8xf32>
    %171 = math.exp %170 : vector<8x8xf32>
    %cst_119 = arith.constant dense<0.000000e+00> : vector<8xf32>
    %172 = vector.multi_reduction <add>, %171, %cst_119 [1] : vector<8x8xf32> to vector<8xf32>
    %173 = vector.shape_cast %172 : vector<8xf32> to vector<8x1xf32>
    %174 = tpu.reciprocal %173 : vector<8x1xf32> -> vector<8x1xf32>
    %175 = vector.broadcast %174 : vector<8x1xf32> to vector<8x8xf32>
    %176 = arith.mulf %171, %175 : vector<8x8xf32>
    %cst_120 = arith.constant dense<0.000000e+00> : vector<8x8xf32>
    %177 = tpu.matmul %176, %165, %cst_120 {dimension_numbers = #tpu.dot_dimension_numbers<[1], [0], [0], [1], [0, 0, 1, 1], [], []>} : vector<8x8xf32>, vector<8x8xf32>, vector<8x8xf32> -> vector<8x8xf32>
    %c3_121 = arith.constant 3 : index
    %c0_122 = arith.constant 0 : index
    %c0_123 = arith.constant 0 : index
    %178 = vector.load %arg4[%c3_121, %c0_122, %c0_123] : memref<5x8x40xf32, #tpu.memory_space<vmem>>, vector<1x8x40xf32>
    %179 = vector.shape_cast %178 : vector<1x8x40xf32> to vector<8x40xf32>
    %cst_124 = arith.constant dense<0.000000e+00> : vector<8x40xf32>
    %180 = tpu.matmul %177, %179, %cst_124 {dimension_numbers = #tpu.dot_dimension_numbers<[1], [0], [0], [1], [0, 0, 1, 1], [], []>} : vector<8x8xf32>, vector<8x40xf32>, vector<8x40xf32> -> vector<8x40xf32>
    %181 = arith.addf %162, %180 : vector<8x40xf32>
    %182 = vector.extract_strided_slice %92 {offsets = [0, 0], sizes = [8, 8], strides = [1, 1]} : vector<16x8xf32> to vector<8x8xf32>
    %183 = vector.extract_strided_slice %99 {offsets = [0, 0], sizes = [8, 8], strides = [1, 1]} : vector<16x8xf32> to vector<8x8xf32>
    %184 = vector.extract_strided_slice %106 {offsets = [0, 0], sizes = [8, 8], strides = [1, 1]} : vector<16x8xf32> to vector<8x8xf32>
    "tpu.trace_start"() <{level = 10 : i32, message = "qd,kd->qk"}> : () -> ()
    %cst_125 = arith.constant dense<0.000000e+00> : vector<8x8xf32>
    %185 = tpu.matmul %182, %183, %cst_125 {dimension_numbers = #tpu.dot_dimension_numbers<[1], [1], [0], [0], [0, 0, 1, 0], [], []>} : vector<8x8xf32>, vector<8x8xf32>, vector<8x8xf32> -> vector<8x8xf32>
    "tpu.trace_stop"() : () -> ()
    %cst_126 = arith.constant dense<0xFF800000> : vector<8xf32>
    %186 = vector.multi_reduction <maximumf>, %185, %cst_126 [1] : vector<8x8xf32> to vector<8xf32>
    %187 = vector.shape_cast %186 : vector<8xf32> to vector<8x1xf32>
    %188 = vector.broadcast %187 : vector<8x1xf32> to vector<8x8xf32>
    %189 = arith.subf %185, %188 : vector<8x8xf32>
    %190 = math.exp %189 : vector<8x8xf32>
    %cst_127 = arith.constant dense<0.000000e+00> : vector<8xf32>
    %191 = vector.multi_reduction <add>, %190, %cst_127 [1] : vector<8x8xf32> to vector<8xf32>
    %192 = vector.shape_cast %191 : vector<8xf32> to vector<8x1xf32>
    %193 = tpu.reciprocal %192 : vector<8x1xf32> -> vector<8x1xf32>
    %194 = vector.broadcast %193 : vector<8x1xf32> to vector<8x8xf32>
    %195 = arith.mulf %190, %194 : vector<8x8xf32>
    %cst_128 = arith.constant dense<0.000000e+00> : vector<8x8xf32>
    %196 = tpu.matmul %195, %184, %cst_128 {dimension_numbers = #tpu.dot_dimension_numbers<[1], [0], [0], [1], [0, 0, 1, 1], [], []>} : vector<8x8xf32>, vector<8x8xf32>, vector<8x8xf32> -> vector<8x8xf32>
    %c4_129 = arith.constant 4 : index
    %c0_130 = arith.constant 0 : index
    %c0_131 = arith.constant 0 : index
    %197 = vector.load %arg4[%c4_129, %c0_130, %c0_131] : memref<5x8x40xf32, #tpu.memory_space<vmem>>, vector<1x8x40xf32>
    %198 = vector.shape_cast %197 : vector<1x8x40xf32> to vector<8x40xf32>
    %cst_132 = arith.constant dense<0.000000e+00> : vector<8x40xf32>
    %199 = tpu.matmul %196, %198, %cst_132 {dimension_numbers = #tpu.dot_dimension_numbers<[1], [0], [0], [1], [0, 0, 1, 1], [], []>} : vector<8x8xf32>, vector<8x40xf32>, vector<8x40xf32> -> vector<8x40xf32>
    %200 = arith.addf %181, %199 : vector<8x40xf32>
    %201 = vector.broadcast %1 : vector<1x40xf32> to vector<8x40xf32>
    %202 = arith.addf %200, %201 : vector<8x40xf32>
    %c0_133 = arith.constant 0 : index
    %c0_134 = arith.constant 0 : index
    %203 = vector.load %arg6[%c0_133, %c0_134] : memref<16x40xf32, #tpu.memory_space<vmem>>, vector<8x40xf32>
    tpu.vector_store %arg6[%c0_133, %c0_134], %202 {strides = array<i32>} : memref<16x40xf32, #tpu.memory_space<vmem>>, vector<8x40xf32>,
    %204 = vector.extract_strided_slice %8 {offsets = [8, 0], sizes = [8, 8], strides = [1, 1]} : vector<16x8xf32> to vector<8x8xf32>
    %205 = vector.extract_strided_slice %15 {offsets = [8, 0], sizes = [8, 8], strides = [1, 1]} : vector<16x8xf32> to vector<8x8xf32>
    %206 = vector.extract_strided_slice %22 {offsets = [8, 0], sizes = [8, 8], strides = [1, 1]} : vector<16x8xf32> to vector<8x8xf32>
    "tpu.trace_start"() <{level = 10 : i32, message = "qd,kd->qk"}> : () -> ()
    %cst_135 = arith.constant dense<0.000000e+00> : vector<8x8xf32>
    %207 = tpu.matmul %204, %205, %cst_135 {dimension_numbers = #tpu.dot_dimension_numbers<[1], [1], [0], [0], [0, 0, 1, 0], [], []>} : vector<8x8xf32>, vector<8x8xf32>, vector<8x8xf32> -> vector<8x8xf32>
    "tpu.trace_stop"() : () -> ()
    %cst_136 = arith.constant dense<0xFF800000> : vector<8xf32>
    %208 = vector.multi_reduction <maximumf>, %207, %cst_136 [1] : vector<8x8xf32> to vector<8xf32>
    %209 = vector.shape_cast %208 : vector<8xf32> to vector<8x1xf32>
    %210 = vector.broadcast %209 : vector<8x1xf32> to vector<8x8xf32>
    %211 = arith.subf %207, %210 : vector<8x8xf32>
    %212 = math.exp %211 : vector<8x8xf32>
    %cst_137 = arith.constant dense<0.000000e+00> : vector<8xf32>
    %213 = vector.multi_reduction <add>, %212, %cst_137 [1] : vector<8x8xf32> to vector<8xf32>
    %214 = vector.shape_cast %213 : vector<8xf32> to vector<8x1xf32>
    %215 = tpu.reciprocal %214 : vector<8x1xf32> -> vector<8x1xf32>
    %216 = vector.broadcast %215 : vector<8x1xf32> to vector<8x8xf32>
    %217 = arith.mulf %212, %216 : vector<8x8xf32>
    %cst_138 = arith.constant dense<0.000000e+00> : vector<8x8xf32>
    %218 = tpu.matmul %217, %206, %cst_138 {dimension_numbers = #tpu.dot_dimension_numbers<[1], [0], [0], [1], [0, 0, 1, 1], [], []>} : vector<8x8xf32>, vector<8x8xf32>, vector<8x8xf32> -> vector<8x8xf32>
    %c0_139 = arith.constant 0 : index
    %c0_140 = arith.constant 0 : index
    %c0_141 = arith.constant 0 : index
    %219 = vector.load %arg4[%c0_139, %c0_140, %c0_141] : memref<5x8x40xf32, #tpu.memory_space<vmem>>, vector<1x8x40xf32>
    %220 = vector.shape_cast %219 : vector<1x8x40xf32> to vector<8x40xf32>
    %cst_142 = arith.constant dense<0.000000e+00> : vector<8x40xf32>
    %221 = tpu.matmul %218, %220, %cst_142 {dimension_numbers = #tpu.dot_dimension_numbers<[1], [0], [0], [1], [0, 0, 1, 1], [], []>} : vector<8x8xf32>, vector<8x40xf32>, vector<8x40xf32> -> vector<8x40xf32>
    %222 = vector.extract_strided_slice %29 {offsets = [8, 0], sizes = [8, 8], strides = [1, 1]} : vector<16x8xf32> to vector<8x8xf32>
    %223 = vector.extract_strided_slice %36 {offsets = [8, 0], sizes = [8, 8], strides = [1, 1]} : vector<16x8xf32> to vector<8x8xf32>
    %224 = vector.extract_strided_slice %43 {offsets = [8, 0], sizes = [8, 8], strides = [1, 1]} : vector<16x8xf32> to vector<8x8xf32>
    "tpu.trace_start"() <{level = 10 : i32, message = "qd,kd->qk"}> : () -> ()
    %cst_143 = arith.constant dense<0.000000e+00> : vector<8x8xf32>
    %225 = tpu.matmul %222, %223, %cst_143 {dimension_numbers = #tpu.dot_dimension_numbers<[1], [1], [0], [0], [0, 0, 1, 0], [], []>} : vector<8x8xf32>, vector<8x8xf32>, vector<8x8xf32> -> vector<8x8xf32>
    "tpu.trace_stop"() : () -> ()
    %cst_144 = arith.constant dense<0xFF800000> : vector<8xf32>
    %226 = vector.multi_reduction <maximumf>, %225, %cst_144 [1] : vector<8x8xf32> to vector<8xf32>
    %227 = vector.shape_cast %226 : vector<8xf32> to vector<8x1xf32>
    %228 = vector.broadcast %227 : vector<8x1xf32> to vector<8x8xf32>
    %229 = arith.subf %225, %228 : vector<8x8xf32>
    %230 = math.exp %229 : vector<8x8xf32>
    %cst_145 = arith.constant dense<0.000000e+00> : vector<8xf32>
    %231 = vector.multi_reduction <add>, %230, %cst_145 [1] : vector<8x8xf32> to vector<8xf32>
    %232 = vector.shape_cast %231 : vector<8xf32> to vector<8x1xf32>
    %233 = tpu.reciprocal %232 : vector<8x1xf32> -> vector<8x1xf32>
    %234 = vector.broadcast %233 : vector<8x1xf32> to vector<8x8xf32>
    %235 = arith.mulf %230, %234 : vector<8x8xf32>
    %cst_146 = arith.constant dense<0.000000e+00> : vector<8x8xf32>
    %236 = tpu.matmul %235, %224, %cst_146 {dimension_numbers = #tpu.dot_dimension_numbers<[1], [0], [0], [1], [0, 0, 1, 1], [], []>} : vector<8x8xf32>, vector<8x8xf32>, vector<8x8xf32> -> vector<8x8xf32>
    %c1_147 = arith.constant 1 : index
    %c0_148 = arith.constant 0 : index
    %c0_149 = arith.constant 0 : index
    %237 = vector.load %arg4[%c1_147, %c0_148, %c0_149] : memref<5x8x40xf32, #tpu.memory_space<vmem>>, vector<1x8x40xf32>
    %238 = vector.shape_cast %237 : vector<1x8x40xf32> to vector<8x40xf32>
    %cst_150 = arith.constant dense<0.000000e+00> : vector<8x40xf32>
    %239 = tpu.matmul %236, %238, %cst_150 {dimension_numbers = #tpu.dot_dimension_numbers<[1], [0], [0], [1], [0, 0, 1, 1], [], []>} : vector<8x8xf32>, vector<8x40xf32>, vector<8x40xf32> -> vector<8x40xf32>
    %240 = arith.addf %221, %239 : vector<8x40xf32>
    %241 = vector.extract_strided_slice %50 {offsets = [8, 0], sizes = [8, 8], strides = [1, 1]} : vector<16x8xf32> to vector<8x8xf32>
    %242 = vector.extract_strided_slice %57 {offsets = [8, 0], sizes = [8, 8], strides = [1, 1]} : vector<16x8xf32> to vector<8x8xf32>
    %243 = vector.extract_strided_slice %64 {offsets = [8, 0], sizes = [8, 8], strides = [1, 1]} : vector<16x8xf32> to vector<8x8xf32>
    "tpu.trace_start"() <{level = 10 : i32, message = "qd,kd->qk"}> : () -> ()
    %cst_151 = arith.constant dense<0.000000e+00> : vector<8x8xf32>
    %244 = tpu.matmul %241, %242, %cst_151 {dimension_numbers = #tpu.dot_dimension_numbers<[1], [1], [0], [0], [0, 0, 1, 0], [], []>} : vector<8x8xf32>, vector<8x8xf32>, vector<8x8xf32> -> vector<8x8xf32>
    "tpu.trace_stop"() : () -> ()
    %cst_152 = arith.constant dense<0xFF800000> : vector<8xf32>
    %245 = vector.multi_reduction <maximumf>, %244, %cst_152 [1] : vector<8x8xf32> to vector<8xf32>
    %246 = vector.shape_cast %245 : vector<8xf32> to vector<8x1xf32>
    %247 = vector.broadcast %246 : vector<8x1xf32> to vector<8x8xf32>
    %248 = arith.subf %244, %247 : vector<8x8xf32>
    %249 = math.exp %248 : vector<8x8xf32>
    %cst_153 = arith.constant dense<0.000000e+00> : vector<8xf32>
    %250 = vector.multi_reduction <add>, %249, %cst_153 [1] : vector<8x8xf32> to vector<8xf32>
    %251 = vector.shape_cast %250 : vector<8xf32> to vector<8x1xf32>
    %252 = tpu.reciprocal %251 : vector<8x1xf32> -> vector<8x1xf32>
    %253 = vector.broadcast %252 : vector<8x1xf32> to vector<8x8xf32>
    %254 = arith.mulf %249, %253 : vector<8x8xf32>
    %cst_154 = arith.constant dense<0.000000e+00> : vector<8x8xf32>
    %255 = tpu.matmul %254, %243, %cst_154 {dimension_numbers = #tpu.dot_dimension_numbers<[1], [0], [0], [1], [0, 0, 1, 1], [], []>} : vector<8x8xf32>, vector<8x8xf32>, vector<8x8xf32> -> vector<8x8xf32>
    %c2_155 = arith.constant 2 : index
    %c0_156 = arith.constant 0 : index
    %c0_157 = arith.constant 0 : index
    %256 = vector.load %arg4[%c2_155, %c0_156, %c0_157] : memref<5x8x40xf32, #tpu.memory_space<vmem>>, vector<1x8x40xf32>
    %257 = vector.shape_cast %256 : vector<1x8x40xf32> to vector<8x40xf32>
    %cst_158 = arith.constant dense<0.000000e+00> : vector<8x40xf32>
    %258 = tpu.matmul %255, %257, %cst_158 {dimension_numbers = #tpu.dot_dimension_numbers<[1], [0], [0], [1], [0, 0, 1, 1], [], []>} : vector<8x8xf32>, vector<8x40xf32>, vector<8x40xf32> -> vector<8x40xf32>
    %259 = arith.addf %240, %258 : vector<8x40xf32>
    %260 = vector.extract_strided_slice %71 {offsets = [8, 0], sizes = [8, 8], strides = [1, 1]} : vector<16x8xf32> to vector<8x8xf32>
    %261 = vector.extract_strided_slice %78 {offsets = [8, 0], sizes = [8, 8], strides = [1, 1]} : vector<16x8xf32> to vector<8x8xf32>
    %262 = vector.extract_strided_slice %85 {offsets = [8, 0], sizes = [8, 8], strides = [1, 1]} : vector<16x8xf32> to vector<8x8xf32>
    "tpu.trace_start"() <{level = 10 : i32, message = "qd,kd->qk"}> : () -> ()
    %cst_159 = arith.constant dense<0.000000e+00> : vector<8x8xf32>
    %263 = tpu.matmul %260, %261, %cst_159 {dimension_numbers = #tpu.dot_dimension_numbers<[1], [1], [0], [0], [0, 0, 1, 0], [], []>} : vector<8x8xf32>, vector<8x8xf32>, vector<8x8xf32> -> vector<8x8xf32>
    "tpu.trace_stop"() : () -> ()
    %cst_160 = arith.constant dense<0xFF800000> : vector<8xf32>
    %264 = vector.multi_reduction <maximumf>, %263, %cst_160 [1] : vector<8x8xf32> to vector<8xf32>
    %265 = vector.shape_cast %264 : vector<8xf32> to vector<8x1xf32>
    %266 = vector.broadcast %265 : vector<8x1xf32> to vector<8x8xf32>
    %267 = arith.subf %263, %266 : vector<8x8xf32>
    %268 = math.exp %267 : vector<8x8xf32>
    %cst_161 = arith.constant dense<0.000000e+00> : vector<8xf32>
    %269 = vector.multi_reduction <add>, %268, %cst_161 [1] : vector<8x8xf32> to vector<8xf32>
    %270 = vector.shape_cast %269 : vector<8xf32> to vector<8x1xf32>
    %271 = tpu.reciprocal %270 : vector<8x1xf32> -> vector<8x1xf32>
    %272 = vector.broadcast %271 : vector<8x1xf32> to vector<8x8xf32>
    %273 = arith.mulf %268, %272 : vector<8x8xf32>
    %cst_162 = arith.constant dense<0.000000e+00> : vector<8x8xf32>
    %274 = tpu.matmul %273, %262, %cst_162 {dimension_numbers = #tpu.dot_dimension_numbers<[1], [0], [0], [1], [0, 0, 1, 1], [], []>} : vector<8x8xf32>, vector<8x8xf32>, vector<8x8xf32> -> vector<8x8xf32>
    %c3_163 = arith.constant 3 : index
    %c0_164 = arith.constant 0 : index
    %c0_165 = arith.constant 0 : index
    %275 = vector.load %arg4[%c3_163, %c0_164, %c0_165] : memref<5x8x40xf32, #tpu.memory_space<vmem>>, vector<1x8x40xf32>
    %276 = vector.shape_cast %275 : vector<1x8x40xf32> to vector<8x40xf32>
    %cst_166 = arith.constant dense<0.000000e+00> : vector<8x40xf32>
    %277 = tpu.matmul %274, %276, %cst_166 {dimension_numbers = #tpu.dot_dimension_numbers<[1], [0], [0], [1], [0, 0, 1, 1], [], []>} : vector<8x8xf32>, vector<8x40xf32>, vector<8x40xf32> -> vector<8x40xf32>
    %278 = arith.addf %259, %277 : vector<8x40xf32>
    %279 = vector.extract_strided_slice %92 {offsets = [8, 0], sizes = [8, 8], strides = [1, 1]} : vector<16x8xf32> to vector<8x8xf32>
    %280 = vector.extract_strided_slice %99 {offsets = [8, 0], sizes = [8, 8], strides = [1, 1]} : vector<16x8xf32> to vector<8x8xf32>
    %281 = vector.extract_strided_slice %106 {offsets = [8, 0], sizes = [8, 8], strides = [1, 1]} : vector<16x8xf32> to vector<8x8xf32>
    "tpu.trace_start"() <{level = 10 : i32, message = "qd,kd->qk"}> : () -> ()
    %cst_167 = arith.constant dense<0.000000e+00> : vector<8x8xf32>
    %282 = tpu.matmul %279, %280, %cst_167 {dimension_numbers = #tpu.dot_dimension_numbers<[1], [1], [0], [0], [0, 0, 1, 0], [], []>} : vector<8x8xf32>, vector<8x8xf32>, vector<8x8xf32> -> vector<8x8xf32>
    "tpu.trace_stop"() : () -> ()
    %cst_168 = arith.constant dense<0xFF800000> : vector<8xf32>
    %283 = vector.multi_reduction <maximumf>, %282, %cst_168 [1] : vector<8x8xf32> to vector<8xf32>
    %284 = vector.shape_cast %283 : vector<8xf32> to vector<8x1xf32>
    %285 = vector.broadcast %284 : vector<8x1xf32> to vector<8x8xf32>
    %286 = arith.subf %282, %285 : vector<8x8xf32>
    %287 = math.exp %286 : vector<8x8xf32>
    %cst_169 = arith.constant dense<0.000000e+00> : vector<8xf32>
    %288 = vector.multi_reduction <add>, %287, %cst_169 [1] : vector<8x8xf32> to vector<8xf32>
    %289 = vector.shape_cast %288 : vector<8xf32> to vector<8x1xf32>
    %290 = tpu.reciprocal %289 : vector<8x1xf32> -> vector<8x1xf32>
    %291 = vector.broadcast %290 : vector<8x1xf32> to vector<8x8xf32>
    %292 = arith.mulf %287, %291 : vector<8x8xf32>
    %cst_170 = arith.constant dense<0.000000e+00> : vector<8x8xf32>
    %293 = tpu.matmul %292, %281, %cst_170 {dimension_numbers = #tpu.dot_dimension_numbers<[1], [0], [0], [1], [0, 0, 1, 1], [], []>} : vector<8x8xf32>, vector<8x8xf32>, vector<8x8xf32> -> vector<8x8xf32>
    %c4_171 = arith.constant 4 : index
    %c0_172 = arith.constant 0 : index
    %c0_173 = arith.constant 0 : index
    %294 = vector.load %arg4[%c4_171, %c0_172, %c0_173] : memref<5x8x40xf32, #tpu.memory_space<vmem>>, vector<1x8x40xf32>
    %295 = vector.shape_cast %294 : vector<1x8x40xf32> to vector<8x40xf32>
    %cst_174 = arith.constant dense<0.000000e+00> : vector<8x40xf32>
    %296 = tpu.matmul %293, %295, %cst_174 {dimension_numbers = #tpu.dot_dimension_numbers<[1], [0], [0], [1], [0, 0, 1, 1], [], []>} : vector<8x8xf32>, vector<8x40xf32>, vector<8x40xf32> -> vector<8x40xf32>
    %297 = arith.addf %278, %296 : vector<8x40xf32>
    %298 = vector.broadcast %1 : vector<1x40xf32> to vector<8x40xf32>
    %299 = arith.addf %297, %298 : vector<8x40xf32>
    %c8_175 = arith.constant 8 : index
    %c0_176 = arith.constant 0 : index
    %300 = vector.load %arg6[%c8_175, %c0_176] : memref<16x40xf32, #tpu.memory_space<vmem>>, vector<8x40xf32>
    tpu.vector_store %arg6[%c8_175, %c0_176], %299 {strides = array<i32>} : memref<16x40xf32, #tpu.memory_space<vmem>>, vector<8x40xf32>,
    return
  }
  func.func @transform_0(%arg0: i32) -> (i32, i32) {
    %c0_i32 = arith.constant 0 : i32
    %c0_i32_0 = arith.constant 0 : i32
    %c0_i32_1 = arith.constant 0 : i32
    return %c0_i32, %c0_i32_0 : i32, i32
  }
  func.func @transform_1(%arg0: i32) -> (i32, i32, i32) {
    %c0_i32 = arith.constant 0 : i32
    %c0_i32_0 = arith.constant 0 : i32
    %c0_i32_1 = arith.constant 0 : i32
    %c0_i32_2 = arith.constant 0 : i32
    return %c0_i32, %c0_i32_0, %c0_i32_1 : i32, i32, i32
  }
  func.func @transform_2(%arg0: i32) -> (i32, i32, i32) {
    %c0_i32 = arith.constant 0 : i32
    %c0_i32_0 = arith.constant 0 : i32
    %c0_i32_1 = arith.constant 0 : i32
    %c0_i32_2 = arith.constant 0 : i32
    return %c0_i32, %c0_i32_0, %c0_i32_1 : i32, i32, i32
  }
  func.func @transform_3(%arg0: i32) -> (i32, i32, i32) {
    %c0_i32 = arith.constant 0 : i32
    %c0_i32_0 = arith.constant 0 : i32
    %c0_i32_1 = arith.constant 0 : i32
    %c0_i32_2 = arith.constant 0 : i32
    return %c0_i32, %c0_i32_0, %c0_i32_1 : i32, i32, i32
  }
  func.func @transform_4(%arg0: i32) -> (i32, i32) {
    %c0_i32 = arith.constant 0 : i32
    %c0_i32_0 = arith.constant 0 : i32
    %c0_i32_1 = arith.constant 0 : i32
    return %c0_i32, %c0_i32_0 : i32, i32
  }
  func.func @transform_5(%arg0: i32) -> (i32, i32) {
    %c0_i32 = arith.constant 0 : i32
    %c0_i32_0 = arith.constant 0 : i32
    %c0_i32_1 = arith.constant 0 : i32
    return %c0_i32, %c0_i32_0 : i32, i32
  }
}

</mosaic_0001>

<llo_original>
// kernel: tpu_custom_call.1
$region0: #{tpu_custom_call.1}
  #allocation0 [shape = 'u32[]', space=smem, size = 0x4, offset = 0x4, fixed_abs, tag = 'smem constant byte address 0x4 - core index']
  #allocation1 [shape = 'u32[144,128]{1,0:T(1,128)}', space=vmem, size = 0x12000, scoped, tag = 'internal scratch']
  %s0 = inlined_call_operand.vmem [shape: f32[16,40], index: 0, kind: input, shape index: {}]
  %s1 = inlined_call_operand.vmem [shape: f32[15,40,8], index: 1, kind: input, shape index: {}]
  %s2 = inlined_call_operand.vmem [shape: f32[15,1,8], index: 2, kind: input, shape index: {}]
  %s3 = inlined_call_operand.vmem [shape: f32[5,8,40], index: 3, kind: input, shape index: {}]
  %s4 = inlined_call_operand.vmem [shape: f32[1,40], index: 4, kind: input, shape index: {}]
  %s5 = inlined_call_operand.hbm [shape: f32[16,40], index: 5, kind: output, shape index: {}]
  %s6 = sld [smem:[#allocation0]]
  $region30: #{tpu_custom_call.1} parent=0
    _
  %s8 = ssub.s32 1, %s6
  %s9 = scalar_select 0, %s8, %s6
  $region1: #{tpu_custom_call.1} parent=0
    #allocation2 [shape = 'u8[8192]{0}', space=vmem, size = 0x2000, scoped, tag = 'output window, operand 0, single buffered']
    #allocation3 [shape = 's32[1]{0}', space=sflag, size = 0x4, scoped, tag = 'scoped memory for tpu_custom_call.1']
    %10 = vsyncpa [#allocation3], 0
    // Predicated region
    $region2: #{tpu_custom_call.1} parent=1 // pred_check
      _
    $region3: #{tpu_custom_call.1} parent=1 // pred_check_branch
      %12 = sbr.rel (0) target = $region5
    $region4: #{tpu_custom_call.1} parent=1 // pred_region
      _
    $region5: #{tpu_custom_call.1} parent=1 // pred_fallthru
      _
    // Predicated region
    $region6: #{tpu_custom_call.1} parent=1 // pred_check
      _
    $region7: #{tpu_custom_call.1} parent=1 // pred_check_branch
      %14 = sbr.rel (0) target = $region9
    $region8: #{tpu_custom_call.1} parent=1 // pred_region
      _
    $region9: #{tpu_custom_call.1} parent=1 // pred_fallthru
      _
    // Predicated region
    $region10: #{tpu_custom_call.1} parent=1 // pred_check
      _
    $region11: #{tpu_custom_call.1} parent=1 // pred_check_branch
      %16 = sbr.rel (0) target = $region13
    $region12: #{tpu_custom_call.1} parent=1 // pred_region
      _
    $region13: #{tpu_custom_call.1} parent=1 // pred_fallthru
      _
    // Predicated region
    $region14: #{tpu_custom_call.1} parent=1 // pred_check
      _
    $region15: #{tpu_custom_call.1} parent=1 // pred_check_branch
      %18 = sbr.rel (0) target = $region17
    $region16: #{tpu_custom_call.1} parent=1 // pred_region
      _
    $region17: #{tpu_custom_call.1} parent=1 // pred_fallthru
      _
    // Predicated region
    $region18: #{tpu_custom_call.1} parent=1 // pred_check
      _
    $region19: #{tpu_custom_call.1} parent=1 // pred_check_branch
      %20 = sbr.rel (0) target = $region21
    $region20: #{tpu_custom_call.1} parent=1 // pred_region
      _
    $region21: #{tpu_custom_call.1} parent=1 // pred_fallthru
      _
    %v21 = vld [vmem:[%s0] sm:$0xff]
    %v22 = vld [vmem:[%s0 + $0x8] sm:$0xff]
    %v23 = vld [vmem:[%s4] sm:$0x1]
    %v24 = vld [vmem:[%s1] sm:$0xff]
    %v25 = vld [vmem:[%s1 + $0x8] sm:$0xff]
    %v26 = vld [vmem:[%s1 + $0x10] sm:$0xff]
    %v27 = vld [vmem:[%s1 + $0x18] sm:$0xff]
    %v28 = vld [vmem:[%s1 + $0x20] sm:$0xff]
    %v29 = vld [vmem:[%s2] sm:$0x1]
    %v31 = vlaneseq
    %v32 = vshrl.u32 %v31, 7
    %v33 = vsub.s32 0, %v32
    %v34 = vrot.slane %v29, %v33
    %vm36 = vcmask 326656
    %v38 = vsel %vm36, %v21, 0
    %v41 = vsel %vm36, %v22, 0
    %43 = vmatprep.subr.mxu0 0.0
    %44 = vmatpush1.msra.mxu0 %v24
    %45 = vmatprep.subr.mxu0 0.0
    %46 = vmatpush1.msra.mxu0 %v25
    %47 = vmatprep.subr.mxu0 0.0
    %48 = vmatpush1.msra.mxu0 %v26
    %49 = vmatprep.subr.mxu0 0.0
    %50 = vmatpush1.msra.mxu0 %v27
    %51 = vmatprep.subr.mxu0 0.0
    %52 = vmatpush1.msra.mxu0 %v28
    %53 = vmatprep.subr.mxu0 0.0
    %54 = vmatpush1.msra.mxu0 0.0
    %55 = vmatprep.subr.mxu0 0.0
    %56 = vmatpush1.msra.mxu0 0.0
    %57 = vmatprep.subr.mxu0 0.0
    %58 = vmatpush1.msra.mxu0 0.0
    %59 = vmatprep.subr.mxu0 0.0
    %60 = vmatpush1.msra.mxu0 0.0
    %61 = vmatprep.subr.mxu0 0.0
    %62 = vmatpush1.msra.mxu0 0.0
    %63 = vmatprep.subr.mxu0 0.0
    %64 = vmatpush1.msra.mxu0 0.0
    %65 = vmatprep.subr.mxu0 0.0
    %66 = vmatpush1.msra.mxu0 0.0
    %67 = vmatprep.subr.mxu0 0.0
    %68 = vmatpush1.msra.mxu0 0.0
    %69 = vmatprep.subr.mxu0 0.0
    %70 = vmatpush1.msra.mxu0 0.0
    %71 = vmatprep.subr.mxu0 0.0
    %72 = vmatpush1.msra.mxu0 0.0
    %73 = vmatprep.subr.mxu0 0.0
    %74 = vmatpush1.msra.mxu0 0.0
    %75 = vmatprep.subr.mxu0 0.0
    %76 = vmatpush1.msra.mxu0 0.0
    %77 = vmatprep.subr.mxu0 0.0
    %78 = vmatpush1.msra.mxu0 0.0
    %79 = vmatprep.subr.mxu0 0.0
    %80 = vmatpush1.msra.mxu0 0.0
    %81 = vmatprep.subr.mxu0 0.0
    %82 = vmatpush1.msra.mxu0 0.0
    %83 = vmatprep.subr.mxu0 0.0
    %84 = vmatpush1.msra.mxu0 0.0
    %85 = vmatprep.subr.mxu0 0.0
    %86 = vmatpush1.msra.mxu0 0.0
    %87 = vmatprep.subr.mxu0 0.0
    %88 = vmatpush1.msra.mxu0 0.0
    %89 = vmatprep.subr.mxu0 0.0
    %90 = vmatpush1.msra.mxu0 0.0
    %91 = vmatprep.subr.mxu0 0.0
    %92 = vmatpush1.msra.mxu0 0.0
    %93 = vmatprep.subr.mxu0 0.0
    %94 = vmatpush1.msra.mxu0 0.0
    %95 = vmatprep.subr.mxu0 0.0
    %96 = vmatpush1.msra.mxu0 0.0
    %97 = vmatprep.subr.mxu0 0.0
    %98 = vmatpush1.msra.mxu0 0.0
    %99 = vmatprep.subr.mxu0 0.0
    %100 = vmatpush1.msra.mxu0 0.0
    %101 = vmatprep.subr.mxu0 0.0
    %102 = vmatpush1.msra.mxu0 0.0
    %103 = vmatprep.subr.mxu0 0.0
    %104 = vmatpush1.msra.mxu0 0.0
    %105 = vmatprep.subr.mxu0 0.0
    %106 = vmatpush1.msra.mxu0 0.0
    %107 = vmatprep.mubr.f32.mxu0 0.0
    %108 = vmatmul.mubr.f32.gmra.mrb[0].mxu0 %v38
    %v109 = vpop.f32.mrb[0].mxu0
    %v110 = vadd.f32 %v34, %v109
    %v111 = vpop.f32.mrb[0].mxu0
    %112 = vmatprep.mubr.f32.mxu0 0.0
    %113 = vmatmul.mubr.f32.gmra.mrb[0].mxu0 %v41
    %v114 = vpop.f32.mrb[0].mxu0
    %v115 = vadd.f32 %v34, %v114
    %v116 = vpop.f32.mrb[0].mxu0
    %117 = vdwg.mxu0
    %s118 = scalar_lea.vmem %s1, 200
    %v119 = vld [vmem:[%s118] sm:$0xff]
    %v120 = vld [vmem:[%s118 + $0x8] sm:$0xff]
    %v121 = vld [vmem:[%s118 + $0x10] sm:$0xff]
    %v122 = vld [vmem:[%s118 + $0x18] sm:$0xff]
    %v123 = vld [vmem:[%s118 + $0x20] sm:$0xff]
    %s124 = scalar_lea.vmem %s2, 5
    %v125 = vld [vmem:[%s124] sm:$0x1]
    %v127 = vlaneseq
    %v128 = vshrl.u32 %v127, 7
    %v129 = vsub.s32 0, %v128
    %v130 = vrot.slane %v125, %v129
    %132 = vmatprep.subr.mxu0 0.0
    %133 = vmatpush1.msra.mxu0 %v119
    %134 = vmatprep.subr.mxu0 0.0
    %135 = vmatpush1.msra.mxu0 %v120
    %136 = vmatprep.subr.mxu0 0.0
    %137 = vmatpush1.msra.mxu0 %v121
    %138 = vmatprep.subr.mxu0 0.0
    %139 = vmatpush1.msra.mxu0 %v122
    %140 = vmatprep.subr.mxu0 0.0
    %141 = vmatpush1.msra.mxu0 %v123
    %142 = vmatprep.subr.mxu0 0.0
    %143 = vmatpush1.msra.mxu0 0.0
    %144 = vmatprep.subr.mxu0 0.0
    %145 = vmatpush1.msra.mxu0 0.0
    %146 = vmatprep.subr.mxu0 0.0
    %147 = vmatpush1.msra.mxu0 0.0
    %148 = vmatprep.subr.mxu0 0.0
    %149 = vmatpush1.msra.mxu0 0.0
    %150 = vmatprep.subr.mxu0 0.0
    %151 = vmatpush1.msra.mxu0 0.0
    %152 = vmatprep.subr.mxu0 0.0
    %153 = vmatpush1.msra.mxu0 0.0
    %154 = vmatprep.subr.mxu0 0.0
    %155 = vmatpush1.msra.mxu0 0.0
    %156 = vmatprep.subr.mxu0 0.0
    %157 = vmatpush1.msra.mxu0 0.0
    %158 = vmatprep.subr.mxu0 0.0
    %159 = vmatpush1.msra.mxu0 0.0
    %160 = vmatprep.subr.mxu0 0.0
    %161 = vmatpush1.msra.mxu0 0.0
    %162 = vmatprep.subr.mxu0 0.0
    %163 = vmatpush1.msra.mxu0 0.0
    %164 = vmatprep.subr.mxu0 0.0
    %165 = vmatpush1.msra.mxu0 0.0
    %166 = vmatprep.subr.mxu0 0.0
    %167 = vmatpush1.msra.mxu0 0.0
    %168 = vmatprep.subr.mxu0 0.0
    %169 = vmatpush1.msra.mxu0 0.0
    %170 = vmatprep.subr.mxu0 0.0
    %171 = vmatpush1.msra.mxu0 0.0
    %172 = vmatprep.subr.mxu0 0.0
    %173 = vmatpush1.msra.mxu0 0.0
    %174 = vmatprep.subr.mxu0 0.0
    %175 = vmatpush1.msra.mxu0 0.0
    %176 = vmatprep.subr.mxu0 0.0
    %177 = vmatpush1.msra.mxu0 0.0
    %178 = vmatprep.subr.mxu0 0.0
    %179 = vmatpush1.msra.mxu0 0.0
    %180 = vmatprep.subr.mxu0 0.0
    %181 = vmatpush1.msra.mxu0 0.0
    %182 = vmatprep.subr.mxu0 0.0
    %183 = vmatpush1.msra.mxu0 0.0
    %184 = vmatprep.subr.mxu0 0.0
    %185 = vmatpush1.msra.mxu0 0.0
    %186 = vmatprep.subr.mxu0 0.0
    %187 = vmatpush1.msra.mxu0 0.0
    %188 = vmatprep.subr.mxu0 0.0
    %189 = vmatpush1.msra.mxu0 0.0
    %190 = vmatprep.subr.mxu0 0.0
    %191 = vmatpush1.msra.mxu0 0.0
    %192 = vmatprep.subr.mxu0 0.0
    %193 = vmatpush1.msra.mxu0 0.0
    %194 = vmatprep.subr.mxu0 0.0
    %195 = vmatpush1.msra.mxu0 0.0
    %196 = vmatprep.mubr.f32.mxu0 0.0
    %197 = vmatmul.mubr.f32.gmra.mrb[0].mxu0 %v38
    %v198 = vpop.f32.mrb[0].mxu0
    %v199 = vadd.f32 %v130, %v198
    %v200 = vpop.f32.mrb[0].mxu0
    %201 = vmatprep.mubr.f32.mxu0 0.0
    %202 = vmatmul.mubr.f32.gmra.mrb[0].mxu0 %v41
    %v203 = vpop.f32.mrb[0].mxu0
    %v204 = vadd.f32 %v130, %v203
    %v205 = vpop.f32.mrb[0].mxu0
    %206 = vdwg.mxu0
    %s207 = scalar_lea.vmem %s1, 400
    %v208 = vld [vmem:[%s207] sm:$0xff]
    %v209 = vld [vmem:[%s207 + $0x8] sm:$0xff]
    %v210 = vld [vmem:[%s207 + $0x10] sm:$0xff]
    %v211 = vld [vmem:[%s207 + $0x18] sm:$0xff]
    %v212 = vld [vmem:[%s207 + $0x20] sm:$0xff]
    %s213 = scalar_lea.vmem %s2, 10
    %v214 = vld [vmem:[%s213] sm:$0x1]
    %v216 = vlaneseq
    %v217 = vshrl.u32 %v216, 7
    %v218 = vsub.s32 0, %v217
    %v219 = vrot.slane %v214, %v218
    %221 = vmatprep.subr.mxu0 0.0
    %222 = vmatpush1.msra.mxu0 %v208
    %223 = vmatprep.subr.mxu0 0.0
    %224 = vmatpush1.msra.mxu0 %v209
    %225 = vmatprep.subr.mxu0 0.0
    %226 = vmatpush1.msra.mxu0 %v210
    %227 = vmatprep.subr.mxu0 0.0
    %228 = vmatpush1.msra.mxu0 %v211
    %229 = vmatprep.subr.mxu0 0.0
    %230 = vmatpush1.msra.mxu0 %v212
    %231 = vmatprep.subr.mxu0 0.0
    %232 = vmatpush1.msra.mxu0 0.0
    %233 = vmatprep.subr.mxu0 0.0
    %234 = vmatpush1.msra.mxu0 0.0
    %235 = vmatprep.subr.mxu0 0.0
    %236 = vmatpush1.msra.mxu0 0.0
    %237 = vmatprep.subr.mxu0 0.0
    %238 = vmatpush1.msra.mxu0 0.0
    %239 = vmatprep.subr.mxu0 0.0
    %240 = vmatpush1.msra.mxu0 0.0
    %241 = vmatprep.subr.mxu0 0.0
    %242 = vmatpush1.msra.mxu0 0.0
    %243 = vmatprep.subr.mxu0 0.0
    %244 = vmatpush1.msra.mxu0 0.0
    %245 = vmatprep.subr.mxu0 0.0
    %246 = vmatpush1.msra.mxu0 0.0
    %247 = vmatprep.subr.mxu0 0.0
    %248 = vmatpush1.msra.mxu0 0.0
    %249 = vmatprep.subr.mxu0 0.0
    %250 = vmatpush1.msra.mxu0 0.0
    %251 = vmatprep.subr.mxu0 0.0
    %252 = vmatpush1.msra.mxu0 0.0
    %253 = vmatprep.subr.mxu0 0.0
    %254 = vmatpush1.msra.mxu0 0.0
    %255 = vmatprep.subr.mxu0 0.0
    %256 = vmatpush1.msra.mxu0 0.0
    %257 = vmatprep.subr.mxu0 0.0
    %258 = vmatpush1.msra.mxu0 0.0
    %259 = vmatprep.subr.mxu0 0.0
    %260 = vmatpush1.msra.mxu0 0.0
    %261 = vmatprep.subr.mxu0 0.0
    %262 = vmatpush1.msra.mxu0 0.0
    %263 = vmatprep.subr.mxu0 0.0
    %264 = vmatpush1.msra.mxu0 0.0
    %265 = vmatprep.subr.mxu0 0.0
    %266 = vmatpush1.msra.mxu0 0.0
    %267 = vmatprep.subr.mxu0 0.0
    %268 = vmatpush1.msra.mxu0 0.0
    %269 = vmatprep.subr.mxu0 0.0
    %270 = vmatpush1.msra.mxu0 0.0
    %271 = vmatprep.subr.mxu0 0.0
    %272 = vmatpush1.msra.mxu0 0.0
    %273 = vmatprep.subr.mxu0 0.0
    %274 = vmatpush1.msra.mxu0 0.0
    %275 = vmatprep.subr.mxu0 0.0
    %276 = vmatpush1.msra.mxu0 0.0
    %277 = vmatprep.subr.mxu0 0.0
    %278 = vmatpush1.msra.mxu0 0.0
    %279 = vmatprep.subr.mxu0 0.0
    %280 = vmatpush1.msra.mxu0 0.0
    %281 = vmatprep.subr.mxu0 0.0
    %282 = vmatpush1.msra.mxu0 0.0
    %283 = vmatprep.subr.mxu0 0.0
    %284 = vmatpush1.msra.mxu0 0.0
    %285 = vmatprep.mubr.f32.mxu0 0.0
    %286 = vmatmul.mubr.f32.gmra.mrb[0].mxu0 %v38
    %v287 = vpop.f32.mrb[0].mxu0
    %v288 = vadd.f32 %v219, %v287
    %v289 = vpop.f32.mrb[0].mxu0
    %290 = vmatprep.mubr.f32.mxu0 0.0
    %291 = vmatmul.mubr.f32.gmra.mrb[0].mxu0 %v41
    %v292 = vpop.f32.mrb[0].mxu0
    %v293 = vadd.f32 %v219, %v292
    %v294 = vpop.f32.mrb[0].mxu0
    %295 = vdwg.mxu0
    %s296 = scalar_lea.vmem %s1, 40
    %v297 = vld [vmem:[%s296] sm:$0xff]
    %v298 = vld [vmem:[%s296 + $0x8] sm:$0xff]
    %v299 = vld [vmem:[%s296 + $0x10] sm:$0xff]
    %v300 = vld [vmem:[%s296 + $0x18] sm:$0xff]
    %v301 = vld [vmem:[%s296 + $0x20] sm:$0xff]
    %s302 = scalar_lea.vmem %s2, 1
    %v303 = vld [vmem:[%s302] sm:$0x1]
    %v305 = vlaneseq
    %v306 = vshrl.u32 %v305, 7
    %v307 = vsub.s32 0, %v306
    %v308 = vrot.slane %v303, %v307
    %310 = vmatprep.subr.mxu0 0.0
    %311 = vmatpush1.msra.mxu0 %v297
    %312 = vmatprep.subr.mxu0 0.0
    %313 = vmatpush1.msra.mxu0 %v298
    %314 = vmatprep.subr.mxu0 0.0
    %315 = vmatpush1.msra.mxu0 %v299
    %316 = vmatprep.subr.mxu0 0.0
    %317 = vmatpush1.msra.mxu0 %v300
    %318 = vmatprep.subr.mxu0 0.0
    %319 = vmatpush1.msra.mxu0 %v301
    %320 = vmatprep.subr.mxu0 0.0
    %321 = vmatpush1.msra.mxu0 0.0
    %322 = vmatprep.subr.mxu0 0.0
    %323 = vmatpush1.msra.mxu0 0.0
    %324 = vmatprep.subr.mxu0 0.0
    %325 = vmatpush1.msra.mxu0 0.0
    %326 = vmatprep.subr.mxu0 0.0
    %327 = vmatpush1.msra.mxu0 0.0
    %328 = vmatprep.subr.mxu0 0.0
    %329 = vmatpush1.msra.mxu0 0.0
    %330 = vmatprep.subr.mxu0 0.0
    %331 = vmatpush1.msra.mxu0 0.0
    %332 = vmatprep.subr.mxu0 0.0
    %333 = vmatpush1.msra.mxu0 0.0
    %334 = vmatprep.subr.mxu0 0.0
    %335 = vmatpush1.msra.mxu0 0.0
    %336 = vmatprep.subr.mxu0 0.0
    %337 = vmatpush1.msra.mxu0 0.0
    %338 = vmatprep.subr.mxu0 0.0
    %339 = vmatpush1.msra.mxu0 0.0
    %340 = vmatprep.subr.mxu0 0.0
    %341 = vmatpush1.msra.mxu0 0.0
    %342 = vmatprep.subr.mxu0 0.0
    %343 = vmatpush1.msra.mxu0 0.0
    %344 = vmatprep.subr.mxu0 0.0
    %345 = vmatpush1.msra.mxu0 0.0
    %346 = vmatprep.subr.mxu0 0.0
    %347 = vmatpush1.msra.mxu0 0.0
    %348 = vmatprep.subr.mxu0 0.0
    %349 = vmatpush1.msra.mxu0 0.0
    %350 = vmatprep.subr.mxu0 0.0
    %351 = vmatpush1.msra.mxu0 0.0
    %352 = vmatprep.subr.mxu0 0.0
    %353 = vmatpush1.msra.mxu0 0.0
    %354 = vmatprep.subr.mxu0 0.0
    %355 = vmatpush1.msra.mxu0 0.0
    %356 = vmatprep.subr.mxu0 0.0
    %357 = vmatpush1.msra.mxu0 0.0
    %358 = vmatprep.subr.mxu0 0.0
    %359 = vmatpush1.msra.mxu0 0.0
    %360 = vmatprep.subr.mxu0 0.0
    %361 = vmatpush1.msra.mxu0 0.0
    %362 = vmatprep.subr.mxu0 0.0
    %363 = vmatpush1.msra.mxu0 0.0
    %364 = vmatprep.subr.mxu0 0.0
    %365 = vmatpush1.msra.mxu0 0.0
    %366 = vmatprep.subr.mxu0 0.0
    %367 = vmatpush1.msra.mxu0 0.0
    %368 = vmatprep.subr.mxu0 0.0
    %369 = vmatpush1.msra.mxu0 0.0
    %370 = vmatprep.subr.mxu0 0.0
    %371 = vmatpush1.msra.mxu0 0.0
    %372 = vmatprep.subr.mxu0 0.0
    %373 = vmatpush1.msra.mxu0 0.0
    %374 = vmatprep.mubr.f32.mxu0 0.0
    %375 = vmatmul.mubr.f32.gmra.mrb[0].mxu0 %v38
    %v376 = vpop.f32.mrb[0].mxu0
    %v377 = vadd.f32 %v308, %v376
    %v378 = vpop.f32.mrb[0].mxu0
    %379 = vmatprep.mubr.f32.mxu0 0.0
    %380 = vmatmul.mubr.f32.gmra.mrb[0].mxu0 %v41
    %v381 = vpop.f32.mrb[0].mxu0
    %v382 = vadd.f32 %v308, %v381
    %v383 = vpop.f32.mrb[0].mxu0
    %384 = vdwg.mxu0
    %s385 = scalar_lea.vmem %s1, 240
    %v386 = vld [vmem:[%s385] sm:$0xff]
    %v387 = vld [vmem:[%s385 + $0x8] sm:$0xff]
    %v388 = vld [vmem:[%s385 + $0x10] sm:$0xff]
    %v389 = vld [vmem:[%s385 + $0x18] sm:$0xff]
    %v390 = vld [vmem:[%s385 + $0x20] sm:$0xff]
    %s391 = scalar_lea.vmem %s2, 6
    %v392 = vld [vmem:[%s391] sm:$0x1]
    %v394 = vlaneseq
    %v395 = vshrl.u32 %v394, 7
    %v396 = vsub.s32 0, %v395
    %v397 = vrot.slane %v392, %v396
    %399 = vmatprep.subr.mxu0 0.0
    %400 = vmatpush1.msra.mxu0 %v386
    %401 = vmatprep.subr.mxu0 0.0
    %402 = vmatpush1.msra.mxu0 %v387
    %403 = vmatprep.subr.mxu0 0.0
    %404 = vmatpush1.msra.mxu0 %v388
    %405 = vmatprep.subr.mxu0 0.0
    %406 = vmatpush1.msra.mxu0 %v389
    %407 = vmatprep.subr.mxu0 0.0
    %408 = vmatpush1.msra.mxu0 %v390
    %409 = vmatprep.subr.mxu0 0.0
    %410 = vmatpush1.msra.mxu0 0.0
    %411 = vmatprep.subr.mxu0 0.0
    %412 = vmatpush1.msra.mxu0 0.0
    %413 = vmatprep.subr.mxu0 0.0
    %414 = vmatpush1.msra.mxu0 0.0
    %415 = vmatprep.subr.mxu0 0.0
    %416 = vmatpush1.msra.mxu0 0.0
    %417 = vmatprep.subr.mxu0 0.0
    %418 = vmatpush1.msra.mxu0 0.0
    %419 = vmatprep.subr.mxu0 0.0
    %420 = vmatpush1.msra.mxu0 0.0
    %421 = vmatprep.subr.mxu0 0.0
    %422 = vmatpush1.msra.mxu0 0.0
    %423 = vmatprep.subr.mxu0 0.0
    %424 = vmatpush1.msra.mxu0 0.0
    %425 = vmatprep.subr.mxu0 0.0
    %426 = vmatpush1.msra.mxu0 0.0
    %427 = vmatprep.subr.mxu0 0.0
    %428 = vmatpush1.msra.mxu0 0.0
    %429 = vmatprep.subr.mxu0 0.0
    %430 = vmatpush1.msra.mxu0 0.0
    %431 = vmatprep.subr.mxu0 0.0
    %432 = vmatpush1.msra.mxu0 0.0
    %433 = vmatprep.subr.mxu0 0.0
    %434 = vmatpush1.msra.mxu0 0.0
    %435 = vmatprep.subr.mxu0 0.0
    %436 = vmatpush1.msra.mxu0 0.0
    %437 = vmatprep.subr.mxu0 0.0
    %438 = vmatpush1.msra.mxu0 0.0
    %439 = vmatprep.subr.mxu0 0.0
    %440 = vmatpush1.msra.mxu0 0.0
    %441 = vmatprep.subr.mxu0 0.0
    %442 = vmatpush1.msra.mxu0 0.0
    %443 = vmatprep.subr.mxu0 0.0
    %444 = vmatpush1.msra.mxu0 0.0
    %445 = vmatprep.subr.mxu0 0.0
    %446 = vmatpush1.msra.mxu0 0.0
    %447 = vmatprep.subr.mxu0 0.0
    %448 = vmatpush1.msra.mxu0 0.0
    %449 = vmatprep.subr.mxu0 0.0
    %450 = vmatpush1.msra.mxu0 0.0
    %451 = vmatprep.subr.mxu0 0.0
    %452 = vmatpush1.msra.mxu0 0.0
    %453 = vmatprep.subr.mxu0 0.0
    %454 = vmatpush1.msra.mxu0 0.0
    %455 = vmatprep.subr.mxu0 0.0
    %456 = vmatpush1.msra.mxu0 0.0
    %457 = vmatprep.subr.mxu0 0.0
    %458 = vmatpush1.msra.mxu0 0.0
    %459 = vmatprep.subr.mxu0 0.0
    %460 = vmatpush1.msra.mxu0 0.0
    %461 = vmatprep.subr.mxu0 0.0
    %462 = vmatpush1.msra.mxu0 0.0
    %463 = vmatprep.mubr.f32.mxu0 0.0
    %464 = vmatmul.mubr.f32.gmra.mrb[0].mxu0 %v38
    %v465 = vpop.f32.mrb[0].mxu0
    %v466 = vadd.f32 %v397, %v465
    %v467 = vpop.f32.mrb[0].mxu0
    %468 = vmatprep.mubr.f32.mxu0 0.0
    %469 = vmatmul.mubr.f32.gmra.mrb[0].mxu0 %v41
    %v470 = vpop.f32.mrb[0].mxu0
    %v471 = vadd.f32 %v397, %v470
    %v472 = vpop.f32.mrb[0].mxu0
    %473 = vdwg.mxu0
    %s474 = scalar_lea.vmem %s1, 440
    %v475 = vld [vmem:[%s474] sm:$0xff]
    %v476 = vld [vmem:[%s474 + $0x8] sm:$0xff]
    %v477 = vld [vmem:[%s474 + $0x10] sm:$0xff]
    %v478 = vld [vmem:[%s474 + $0x18] sm:$0xff]
    %v479 = vld [vmem:[%s474 + $0x20] sm:$0xff]
    %s480 = scalar_lea.vmem %s2, 11
    %v481 = vld [vmem:[%s480] sm:$0x1]
    %v483 = vlaneseq
    %v484 = vshrl.u32 %v483, 7
    %v485 = vsub.s32 0, %v484
    %v486 = vrot.slane %v481, %v485
    %488 = vmatprep.subr.mxu0 0.0
    %489 = vmatpush1.msra.mxu0 %v475
    %490 = vmatprep.subr.mxu0 0.0
    %491 = vmatpush1.msra.mxu0 %v476
    %492 = vmatprep.subr.mxu0 0.0
    %493 = vmatpush1.msra.mxu0 %v477
    %494 = vmatprep.subr.mxu0 0.0
    %495 = vmatpush1.msra.mxu0 %v478
    %496 = vmatprep.subr.mxu0 0.0
    %497 = vmatpush1.msra.mxu0 %v479
    %498 = vmatprep.subr.mxu0 0.0
    %499 = vmatpush1.msra.mxu0 0.0
    %500 = vmatprep.subr.mxu0 0.0
    %501 = vmatpush1.msra.mxu0 0.0
    %502 = vmatprep.subr.mxu0 0.0
    %503 = vmatpush1.msra.mxu0 0.0
    %504 = vmatprep.subr.mxu0 0.0
    %505 = vmatpush1.msra.mxu0 0.0
    %506 = vmatprep.subr.mxu0 0.0
    %507 = vmatpush1.msra.mxu0 0.0
    %508 = vmatprep.subr.mxu0 0.0
    %509 = vmatpush1.msra.mxu0 0.0
    %510 = vmatprep.subr.mxu0 0.0
    %511 = vmatpush1.msra.mxu0 0.0
    %512 = vmatprep.subr.mxu0 0.0
    %513 = vmatpush1.msra.mxu0 0.0
    %514 = vmatprep.subr.mxu0 0.0
    %515 = vmatpush1.msra.mxu0 0.0
    %516 = vmatprep.subr.mxu0 0.0
    %517 = vmatpush1.msra.mxu0 0.0
    %518 = vmatprep.subr.mxu0 0.0
    %519 = vmatpush1.msra.mxu0 0.0
    %520 = vmatprep.subr.mxu0 0.0
    %521 = vmatpush1.msra.mxu0 0.0
    %522 = vmatprep.subr.mxu0 0.0
    %523 = vmatpush1.msra.mxu0 0.0
    %524 = vmatprep.subr.mxu0 0.0
    %525 = vmatpush1.msra.mxu0 0.0
    %526 = vmatprep.subr.mxu0 0.0
    %527 = vmatpush1.msra.mxu0 0.0
    %528 = vmatprep.subr.mxu0 0.0
    %529 = vmatpush1.msra.mxu0 0.0
    %530 = vmatprep.subr.mxu0 0.0
    %531 = vmatpush1.msra.mxu0 0.0
    %532 = vmatprep.subr.mxu0 0.0
    %533 = vmatpush1.msra.mxu0 0.0
    %534 = vmatprep.subr.mxu0 0.0
    %535 = vmatpush1.msra.mxu0 0.0
    %536 = vmatprep.subr.mxu0 0.0
    %537 = vmatpush1.msra.mxu0 0.0
    %538 = vmatprep.subr.mxu0 0.0
    %539 = vmatpush1.msra.mxu0 0.0
    %540 = vmatprep.subr.mxu0 0.0
    %541 = vmatpush1.msra.mxu0 0.0
    %542 = vmatprep.subr.mxu0 0.0
    %543 = vmatpush1.msra.mxu0 0.0
    %544 = vmatprep.subr.mxu0 0.0
    %545 = vmatpush1.msra.mxu0 0.0
    %546 = vmatprep.subr.mxu0 0.0
    %547 = vmatpush1.msra.mxu0 0.0
    %548 = vmatprep.subr.mxu0 0.0
    %549 = vmatpush1.msra.mxu0 0.0
    %550 = vmatprep.subr.mxu0 0.0
    %551 = vmatpush1.msra.mxu0 0.0
    %552 = vmatprep.mubr.f32.mxu0 0.0
    %553 = vmatmul.mubr.f32.gmra.mrb[0].mxu0 %v38
    %v554 = vpop.f32.mrb[0].mxu0
    %v555 = vadd.f32 %v486, %v554
    %v556 = vpop.f32.mrb[0].mxu0
    %557 = vmatprep.mubr.f32.mxu0 0.0
    %558 = vmatmul.mubr.f32.gmra.mrb[0].mxu0 %v41
    %v559 = vpop.f32.mrb[0].mxu0
    %v560 = vadd.f32 %v486, %v559
    %v561 = vpop.f32.mrb[0].mxu0
    %562 = vdwg.mxu0
    %s563 = scalar_lea.vmem %s1, 80
    %v564 = vld [vmem:[%s563] sm:$0xff]
    %v565 = vld [vmem:[%s563 + $0x8] sm:$0xff]
    %v566 = vld [vmem:[%s563 + $0x10] sm:$0xff]
    %v567 = vld [vmem:[%s563 + $0x18] sm:$0xff]
    %v568 = vld [vmem:[%s563 + $0x20] sm:$0xff]
    %s569 = scalar_lea.vmem %s2, 2
    %v570 = vld [vmem:[%s569] sm:$0x1]
    %v572 = vlaneseq
    %v573 = vshrl.u32 %v572, 7
    %v574 = vsub.s32 0, %v573
    %v575 = vrot.slane %v570, %v574
    %577 = vmatprep.subr.mxu0 0.0
    %578 = vmatpush1.msra.mxu0 %v564
    %579 = vmatprep.subr.mxu0 0.0
    %580 = vmatpush1.msra.mxu0 %v565
    %581 = vmatprep.subr.mxu0 0.0
    %582 = vmatpush1.msra.mxu0 %v566
    %583 = vmatprep.subr.mxu0 0.0
    %584 = vmatpush1.msra.mxu0 %v567
    %585 = vmatprep.subr.mxu0 0.0
    %586 = vmatpush1.msra.mxu0 %v568
    %587 = vmatprep.subr.mxu0 0.0
    %588 = vmatpush1.msra.mxu0 0.0
    %589 = vmatprep.subr.mxu0 0.0
    %590 = vmatpush1.msra.mxu0 0.0
    %591 = vmatprep.subr.mxu0 0.0
    %592 = vmatpush1.msra.mxu0 0.0
    %593 = vmatprep.subr.mxu0 0.0
    %594 = vmatpush1.msra.mxu0 0.0
    %595 = vmatprep.subr.mxu0 0.0
    %596 = vmatpush1.msra.mxu0 0.0
    %597 = vmatprep.subr.mxu0 0.0
    %598 = vmatpush1.msra.mxu0 0.0
    %599 = vmatprep.subr.mxu0 0.0
    %600 = vmatpush1.msra.mxu0 0.0
    %601 = vmatprep.subr.mxu0 0.0
    %602 = vmatpush1.msra.mxu0 0.0
    %603 = vmatprep.subr.mxu0 0.0
    %604 = vmatpush1.msra.mxu0 0.0
    %605 = vmatprep.subr.mxu0 0.0
    %606 = vmatpush1.msra.mxu0 0.0
    %607 = vmatprep.subr.mxu0 0.0
    %608 = vmatpush1.msra.mxu0 0.0
    %609 = vmatprep.subr.mxu0 0.0
    %610 = vmatpush1.msra.mxu0 0.0
    %611 = vmatprep.subr.mxu0 0.0
    %612 = vmatpush1.msra.mxu0 0.0
    %613 = vmatprep.subr.mxu0 0.0
    %614 = vmatpush1.msra.mxu0 0.0
    %615 = vmatprep.subr.mxu0 0.0
    %616 = vmatpush1.msra.mxu0 0.0
    %617 = vmatprep.subr.mxu0 0.0
    %618 = vmatpush1.msra.mxu0 0.0
    %619 = vmatprep.subr.mxu0 0.0
    %620 = vmatpush1.msra.mxu0 0.0
    %621 = vmatprep.subr.mxu0 0.0
    %622 = vmatpush1.msra.mxu0 0.0
    %623 = vmatprep.subr.mxu0 0.0
    %624 = vmatpush1.msra.mxu0 0.0
    %625 = vmatprep.subr.mxu0 0.0
    %626 = vmatpush1.msra.mxu0 0.0
    %627 = vmatprep.subr.mxu0 0.0
    %628 = vmatpush1.msra.mxu0 0.0
    %629 = vmatprep.subr.mxu0 0.0
    %630 = vmatpush1.msra.mxu0 0.0
    %631 = vmatprep.subr.mxu0 0.0
    %632 = vmatpush1.msra.mxu0 0.0
    %633 = vmatprep.subr.mxu0 0.0
    %634 = vmatpush1.msra.mxu0 0.0
    %635 = vmatprep.subr.mxu0 0.0
    %636 = vmatpush1.msra.mxu0 0.0
    %637 = vmatprep.subr.mxu0 0.0
    %638 = vmatpush1.msra.mxu0 0.0
    %639 = vmatprep.subr.mxu0 0.0
    %640 = vmatpush1.msra.mxu0 0.0
    %641 = vmatprep.mubr.f32.mxu0 0.0
    %642 = vmatmul.mubr.f32.gmra.mrb[0].mxu0 %v38
    %v643 = vpop.f32.mrb[0].mxu0
    %v644 = vadd.f32 %v575, %v643
    %v645 = vpop.f32.mrb[0].mxu0
    %646 = vmatprep.mubr.f32.mxu0 0.0
    %647 = vmatmul.mubr.f32.gmra.mrb[0].mxu0 %v41
    %v648 = vpop.f32.mrb[0].mxu0
    %v649 = vadd.f32 %v575, %v648
    %v650 = vpop.f32.mrb[0].mxu0
    %651 = vdwg.mxu0
    %s652 = scalar_lea.vmem %s1, 280
    %v653 = vld [vmem:[%s652] sm:$0xff]
    %v654 = vld [vmem:[%s652 + $0x8] sm:$0xff]
    %v655 = vld [vmem:[%s652 + $0x10] sm:$0xff]
    %v656 = vld [vmem:[%s652 + $0x18] sm:$0xff]
    %v657 = vld [vmem:[%s652 + $0x20] sm:$0xff]
    %s658 = scalar_lea.vmem %s2, 7
    %v659 = vld [vmem:[%s658] sm:$0x1]
    %v661 = vlaneseq
    %v662 = vshrl.u32 %v661, 7
    %v663 = vsub.s32 0, %v662
    %v664 = vrot.slane %v659, %v663
    %666 = vmatprep.subr.mxu0 0.0
    %667 = vmatpush1.msra.mxu0 %v653
    %668 = vmatprep.subr.mxu0 0.0
    %669 = vmatpush1.msra.mxu0 %v654
    %670 = vmatprep.subr.mxu0 0.0
    %671 = vmatpush1.msra.mxu0 %v655
    %672 = vmatprep.subr.mxu0 0.0
    %673 = vmatpush1.msra.mxu0 %v656
    %674 = vmatprep.subr.mxu0 0.0
    %675 = vmatpush1.msra.mxu0 %v657
    %676 = vmatprep.subr.mxu0 0.0
    %677 = vmatpush1.msra.mxu0 0.0
    %678 = vmatprep.subr.mxu0 0.0
    %679 = vmatpush1.msra.mxu0 0.0
    %680 = vmatprep.subr.mxu0 0.0
    %681 = vmatpush1.msra.mxu0 0.0
    %682 = vmatprep.subr.mxu0 0.0
    %683 = vmatpush1.msra.mxu0 0.0
    %684 = vmatprep.subr.mxu0 0.0
    %685 = vmatpush1.msra.mxu0 0.0
    %686 = vmatprep.subr.mxu0 0.0
    %687 = vmatpush1.msra.mxu0 0.0
    %688 = vmatprep.subr.mxu0 0.0
    %689 = vmatpush1.msra.mxu0 0.0
    %690 = vmatprep.subr.mxu0 0.0
    %691 = vmatpush1.msra.mxu0 0.0
    %692 = vmatprep.subr.mxu0 0.0
    %693 = vmatpush1.msra.mxu0 0.0
    %694 = vmatprep.subr.mxu0 0.0
    %695 = vmatpush1.msra.mxu0 0.0
    %696 = vmatprep.subr.mxu0 0.0
    %697 = vmatpush1.msra.mxu0 0.0
    %698 = vmatprep.subr.mxu0 0.0
    %699 = vmatpush1.msra.mxu0 0.0
    %700 = vmatprep.subr.mxu0 0.0
    %701 = vmatpush1.msra.mxu0 0.0
    %702 = vmatprep.subr.mxu0 0.0
    %703 = vmatpush1.msra.mxu0 0.0
    %704 = vmatprep.subr.mxu0 0.0
    %705 = vmatpush1.msra.mxu0 0.0
    %706 = vmatprep.subr.mxu0 0.0
    %707 = vmatpush1.msra.mxu0 0.0
    %708 = vmatprep.subr.mxu0 0.0
    %709 = vmatpush1.msra.mxu0 0.0
    %710 = vmatprep.subr.mxu0 0.0
    %711 = vmatpush1.msra.mxu0 0.0
    %712 = vmatprep.subr.mxu0 0.0
    %713 = vmatpush1.msra.mxu0 0.0
    %714 = vmatprep.subr.mxu0 0.0
    %715 = vmatpush1.msra.mxu0 0.0
    %716 = vmatprep.subr.mxu0 0.0
    %717 = vmatpush1.msra.mxu0 0.0
    %718 = vmatprep.subr.mxu0 0.0
    %719 = vmatpush1.msra.mxu0 0.0
    %720 = vmatprep.subr.mxu0 0.0
    %721 = vmatpush1.msra.mxu0 0.0
    %722 = vmatprep.subr.mxu0 0.0
    %723 = vmatpush1.msra.mxu0 0.0
    %724 = vmatprep.subr.mxu0 0.0
    %725 = vmatpush1.msra.mxu0 0.0
    %726 = vmatprep.subr.mxu0 0.0
    %727 = vmatpush1.msra.mxu0 0.0
    %728 = vmatprep.subr.mxu0 0.0
    %729 = vmatpush1.msra.mxu0 0.0
    %730 = vmatprep.mubr.f32.mxu0 0.0
    %731 = vmatmul.mubr.f32.gmra.mrb[0].mxu0 %v38
    %v732 = vpop.f32.mrb[0].mxu0
    %v733 = vadd.f32 %v664, %v732
    %v734 = vpop.f32.mrb[0].mxu0
    %735 = vmatprep.mubr.f32.mxu0 0.0
    %736 = vmatmul.mubr.f32.gmra.mrb[0].mxu0 %v41
    %v737 = vpop.f32.mrb[0].mxu0
    %v738 = vadd.f32 %v664, %v737
    %v739 = vpop.f32.mrb[0].mxu0
    %740 = vdwg.mxu0
    %s741 = scalar_lea.vmem %s1, 480
    %v742 = vld [vmem:[%s741] sm:$0xff]
    %v743 = vld [vmem:[%s741 + $0x8] sm:$0xff]
    %v744 = vld [vmem:[%s741 + $0x10] sm:$0xff]
    %v745 = vld [vmem:[%s741 + $0x18] sm:$0xff]
    %v746 = vld [vmem:[%s741 + $0x20] sm:$0xff]
    %s747 = scalar_lea.vmem %s2, 12
    %v748 = vld [vmem:[%s747] sm:$0x1]
    %v750 = vlaneseq
    %v751 = vshrl.u32 %v750, 7
    %v752 = vsub.s32 0, %v751
    %v753 = vrot.slane %v748, %v752
    %755 = vmatprep.subr.mxu0 0.0
    %756 = vmatpush1.msra.mxu0 %v742
    %757 = vmatprep.subr.mxu0 0.0
    %758 = vmatpush1.msra.mxu0 %v743
    %759 = vmatprep.subr.mxu0 0.0
    %760 = vmatpush1.msra.mxu0 %v744
    %761 = vmatprep.subr.mxu0 0.0
    %762 = vmatpush1.msra.mxu0 %v745
    %763 = vmatprep.subr.mxu0 0.0
    %764 = vmatpush1.msra.mxu0 %v746
    %765 = vmatprep.subr.mxu0 0.0
    %766 = vmatpush1.msra.mxu0 0.0
    %767 = vmatprep.subr.mxu0 0.0
    %768 = vmatpush1.msra.mxu0 0.0
    %769 = vmatprep.subr.mxu0 0.0
    %770 = vmatpush1.msra.mxu0 0.0
    %771 = vmatprep.subr.mxu0 0.0
    %772 = vmatpush1.msra.mxu0 0.0
    %773 = vmatprep.subr.mxu0 0.0
    %774 = vmatpush1.msra.mxu0 0.0
    %775 = vmatprep.subr.mxu0 0.0
    %776 = vmatpush1.msra.mxu0 0.0
    %777 = vmatprep.subr.mxu0 0.0
    %778 = vmatpush1.msra.mxu0 0.0
    %779 = vmatprep.subr.mxu0 0.0
    %780 = vmatpush1.msra.mxu0 0.0
    %781 = vmatprep.subr.mxu0 0.0
    %782 = vmatpush1.msra.mxu0 0.0
    %783 = vmatprep.subr.mxu0 0.0
    %784 = vmatpush1.msra.mxu0 0.0
    %785 = vmatprep.subr.mxu0 0.0
    %786 = vmatpush1.msra.mxu0 0.0
    %787 = vmatprep.subr.mxu0 0.0
    %788 = vmatpush1.msra.mxu0 0.0
    %789 = vmatprep.subr.mxu0 0.0
    %790 = vmatpush1.msra.mxu0 0.0
    %791 = vmatprep.subr.mxu0 0.0
    %792 = vmatpush1.msra.mxu0 0.0
    %793 = vmatprep.subr.mxu0 0.0
    %794 = vmatpush1.msra.mxu0 0.0
    %795 = vmatprep.subr.mxu0 0.0
    %796 = vmatpush1.msra.mxu0 0.0
    %797 = vmatprep.subr.mxu0 0.0
    %798 = vmatpush1.msra.mxu0 0.0
    %799 = vmatprep.subr.mxu0 0.0
    %800 = vmatpush1.msra.mxu0 0.0
    %801 = vmatprep.subr.mxu0 0.0
    %802 = vmatpush1.msra.mxu0 0.0
    %803 = vmatprep.subr.mxu0 0.0
    %804 = vmatpush1.msra.mxu0 0.0
    %805 = vmatprep.subr.mxu0 0.0
    %806 = vmatpush1.msra.mxu0 0.0
    %807 = vmatprep.subr.mxu0 0.0
    %808 = vmatpush1.msra.mxu0 0.0
    %809 = vmatprep.subr.mxu0 0.0
    %810 = vmatpush1.msra.mxu0 0.0
    %811 = vmatprep.subr.mxu0 0.0
    %812 = vmatpush1.msra.mxu0 0.0
    %813 = vmatprep.subr.mxu0 0.0
    %814 = vmatpush1.msra.mxu0 0.0
    %815 = vmatprep.subr.mxu0 0.0
    %816 = vmatpush1.msra.mxu0 0.0
    %817 = vmatprep.subr.mxu0 0.0
    %818 = vmatpush1.msra.mxu0 0.0
    %819 = vmatprep.mubr.f32.mxu0 0.0
    %820 = vmatmul.mubr.f32.gmra.mrb[0].mxu0 %v38
    %v821 = vpop.f32.mrb[0].mxu0
    %v822 = vadd.f32 %v753, %v821
    %v823 = vpop.f32.mrb[0].mxu0
    %824 = vmatprep.mubr.f32.mxu0 0.0
    %825 = vmatmul.mubr.f32.gmra.mrb[0].mxu0 %v41
    %v826 = vpop.f32.mrb[0].mxu0
    %v827 = vadd.f32 %v753, %v826
    %v828 = vpop.f32.mrb[0].mxu0
    %829 = vdwg.mxu0
    %s830 = scalar_lea.vmem %s1, 120
    %v831 = vld [vmem:[%s830] sm:$0xff]
    %v832 = vld [vmem:[%s830 + $0x8] sm:$0xff]
    %v833 = vld [vmem:[%s830 + $0x10] sm:$0xff]
    %v834 = vld [vmem:[%s830 + $0x18] sm:$0xff]
    %v835 = vld [vmem:[%s830 + $0x20] sm:$0xff]
    %s836 = scalar_lea.vmem %s2, 3
    %v837 = vld [vmem:[%s836] sm:$0x1]
    %v839 = vlaneseq
    %v840 = vshrl.u32 %v839, 7
    %v841 = vsub.s32 0, %v840
    %v842 = vrot.slane %v837, %v841
    %844 = vmatprep.subr.mxu0 0.0
    %845 = vmatpush1.msra.mxu0 %v831
    %846 = vmatprep.subr.mxu0 0.0
    %847 = vmatpush1.msra.mxu0 %v832
    %848 = vmatprep.subr.mxu0 0.0
    %849 = vmatpush1.msra.mxu0 %v833
    %850 = vmatprep.subr.mxu0 0.0
    %851 = vmatpush1.msra.mxu0 %v834
    %852 = vmatprep.subr.mxu0 0.0
    %853 = vmatpush1.msra.mxu0 %v835
    %854 = vmatprep.subr.mxu0 0.0
    %855 = vmatpush1.msra.mxu0 0.0
    %856 = vmatprep.subr.mxu0 0.0
    %857 = vmatpush1.msra.mxu0 0.0
    %858 = vmatprep.subr.mxu0 0.0
    %859 = vmatpush1.msra.mxu0 0.0
    %860 = vmatprep.subr.mxu0 0.0
    %861 = vmatpush1.msra.mxu0 0.0
    %862 = vmatprep.subr.mxu0 0.0
    %863 = vmatpush1.msra.mxu0 0.0
    %864 = vmatprep.subr.mxu0 0.0
    %865 = vmatpush1.msra.mxu0 0.0
    %866 = vmatprep.subr.mxu0 0.0
    %867 = vmatpush1.msra.mxu0 0.0
    %868 = vmatprep.subr.mxu0 0.0
    %869 = vmatpush1.msra.mxu0 0.0
    %870 = vmatprep.subr.mxu0 0.0
    %871 = vmatpush1.msra.mxu0 0.0
    %872 = vmatprep.subr.mxu0 0.0
    %873 = vmatpush1.msra.mxu0 0.0
    %874 = vmatprep.subr.mxu0 0.0
    %875 = vmatpush1.msra.mxu0 0.0
    %876 = vmatprep.subr.mxu0 0.0
    %877 = vmatpush1.msra.mxu0 0.0
    %878 = vmatprep.subr.mxu0 0.0
    %879 = vmatpush1.msra.mxu0 0.0
    %880 = vmatprep.subr.mxu0 0.0
    %881 = vmatpush1.msra.mxu0 0.0
    %882 = vmatprep.subr.mxu0 0.0
    %883 = vmatpush1.msra.mxu0 0.0
    %884 = vmatprep.subr.mxu0 0.0
    %885 = vmatpush1.msra.mxu0 0.0
    %886 = vmatprep.subr.mxu0 0.0
    %887 = vmatpush1.msra.mxu0 0.0
    %888 = vmatprep.subr.mxu0 0.0
    %889 = vmatpush1.msra.mxu0 0.0
    %890 = vmatprep.subr.mxu0 0.0
    %891 = vmatpush1.msra.mxu0 0.0
    %892 = vmatprep.subr.mxu0 0.0
    %893 = vmatpush1.msra.mxu0 0.0
    %894 = vmatprep.subr.mxu0 0.0
    %895 = vmatpush1.msra.mxu0 0.0
    %896 = vmatprep.subr.mxu0 0.0
    %897 = vmatpush1.msra.mxu0 0.0
    %898 = vmatprep.subr.mxu0 0.0
    %899 = vmatpush1.msra.mxu0 0.0
    %900 = vmatprep.subr.mxu0 0.0
    %901 = vmatpush1.msra.mxu0 0.0
    %902 = vmatprep.subr.mxu0 0.0
    %903 = vmatpush1.msra.mxu0 0.0
    %904 = vmatprep.subr.mxu0 0.0
    %905 = vmatpush1.msra.mxu0 0.0
    %906 = vmatprep.subr.mxu0 0.0
    %907 = vmatpush1.msra.mxu0 0.0
    %908 = vmatprep.mubr.f32.mxu0 0.0
    %909 = vmatmul.mubr.f32.gmra.mrb[0].mxu0 %v38
    %v910 = vpop.f32.mrb[0].mxu0
    %v911 = vadd.f32 %v842, %v910
    %v912 = vpop.f32.mrb[0].mxu0
    %913 = vmatprep.mubr.f32.mxu0 0.0
    %914 = vmatmul.mubr.f32.gmra.mrb[0].mxu0 %v41
    %v915 = vpop.f32.mrb[0].mxu0
    %v916 = vadd.f32 %v842, %v915
    %v917 = vpop.f32.mrb[0].mxu0
    %918 = vdwg.mxu0
    %s919 = scalar_lea.vmem %s1, 320
    %v920 = vld [vmem:[%s919] sm:$0xff]
    %v921 = vld [vmem:[%s919 + $0x8] sm:$0xff]
    %v922 = vld [vmem:[%s919 + $0x10] sm:$0xff]
    %v923 = vld [vmem:[%s919 + $0x18] sm:$0xff]
    %v924 = vld [vmem:[%s919 + $0x20] sm:$0xff]
    %s925 = scalar_lea.vmem %s2, 8
    %v926 = vld [vmem:[%s925] sm:$0x1]
    %v928 = vlaneseq
    %v929 = vshrl.u32 %v928, 7
    %v930 = vsub.s32 0, %v929
    %v931 = vrot.slane %v926, %v930
    %933 = vmatprep.subr.mxu0 0.0
    %934 = vmatpush1.msra.mxu0 %v920
    %935 = vmatprep.subr.mxu0 0.0
    %936 = vmatpush1.msra.mxu0 %v921
    %937 = vmatprep.subr.mxu0 0.0
    %938 = vmatpush1.msra.mxu0 %v922
    %939 = vmatprep.subr.mxu0 0.0
    %940 = vmatpush1.msra.mxu0 %v923
    %941 = vmatprep.subr.mxu0 0.0
    %942 = vmatpush1.msra.mxu0 %v924
    %943 = vmatprep.subr.mxu0 0.0
    %944 = vmatpush1.msra.mxu0 0.0
    %945 = vmatprep.subr.mxu0 0.0
    %946 = vmatpush1.msra.mxu0 0.0
    %947 = vmatprep.subr.mxu0 0.0
    %948 = vmatpush1.msra.mxu0 0.0
    %949 = vmatprep.subr.mxu0 0.0
    %950 = vmatpush1.msra.mxu0 0.0
    %951 = vmatprep.subr.mxu0 0.0
    %952 = vmatpush1.msra.mxu0 0.0
    %953 = vmatprep.subr.mxu0 0.0
    %954 = vmatpush1.msra.mxu0 0.0
    %955 = vmatprep.subr.mxu0 0.0
    %956 = vmatpush1.msra.mxu0 0.0
    %957 = vmatprep.subr.mxu0 0.0
    %958 = vmatpush1.msra.mxu0 0.0
    %959 = vmatprep.subr.mxu0 0.0
    %960 = vmatpush1.msra.mxu0 0.0
    %961 = vmatprep.subr.mxu0 0.0
    %962 = vmatpush1.msra.mxu0 0.0
    %963 = vmatprep.subr.mxu0 0.0
    %964 = vmatpush1.msra.mxu0 0.0
    %965 = vmatprep.subr.mxu0 0.0
    %966 = vmatpush1.msra.mxu0 0.0
    %967 = vmatprep.subr.mxu0 0.0
    %968 = vmatpush1.msra.mxu0 0.0
    %969 = vmatprep.subr.mxu0 0.0
    %970 = vmatpush1.msra.mxu0 0.0
    %971 = vmatprep.subr.mxu0 0.0
    %972 = vmatpush1.msra.mxu0 0.0
    %973 = vmatprep.subr.mxu0 0.0
    %974 = vmatpush1.msra.mxu0 0.0
    %975 = vmatprep.subr.mxu0 0.0
    %976 = vmatpush1.msra.mxu0 0.0
    %977 = vmatprep.subr.mxu0 0.0
    %978 = vmatpush1.msra.mxu0 0.0
    %979 = vmatprep.subr.mxu0 0.0
    %980 = vmatpush1.msra.mxu0 0.0
    %981 = vmatprep.subr.mxu0 0.0
    %982 = vmatpush1.msra.mxu0 0.0
    %983 = vmatprep.subr.mxu0 0.0
    %984 = vmatpush1.msra.mxu0 0.0
    %985 = vmatprep.subr.mxu0 0.0
    %986 = vmatpush1.msra.mxu0 0.0
    %987 = vmatprep.subr.mxu0 0.0
    %988 = vmatpush1.msra.mxu0 0.0
    %989 = vmatprep.subr.mxu0 0.0
    %990 = vmatpush1.msra.mxu0 0.0
    %991 = vmatprep.subr.mxu0 0.0
    %992 = vmatpush1.msra.mxu0 0.0
    %993 = vmatprep.subr.mxu0 0.0
    %994 = vmatpush1.msra.mxu0 0.0
    %995 = vmatprep.subr.mxu0 0.0
    %996 = vmatpush1.msra.mxu0 0.0
    %997 = vmatprep.mubr.f32.mxu0 0.0
    %998 = vmatmul.mubr.f32.gmra.mrb[0].mxu0 %v38
    %v999 = vpop.f32.mrb[0].mxu0
    %v1000 = vadd.f32 %v931, %v999
    %v1001 = vpop.f32.mrb[0].mxu0
    %1002 = vmatprep.mubr.f32.mxu0 0.0
    %1003 = vmatmul.mubr.f32.gmra.mrb[0].mxu0 %v41
    %v1004 = vpop.f32.mrb[0].mxu0
    %v1005 = vadd.f32 %v931, %v1004
    %v1006 = vpop.f32.mrb[0].mxu0
    %1007 = vdwg.mxu0
    %s1008 = scalar_lea.vmem %s1, 520
    %v1009 = vld [vmem:[%s1008] sm:$0xff]
    %v1010 = vld [vmem:[%s1008 + $0x8] sm:$0xff]
    %v1011 = vld [vmem:[%s1008 + $0x10] sm:$0xff]
    %v1012 = vld [vmem:[%s1008 + $0x18] sm:$0xff]
    %v1013 = vld [vmem:[%s1008 + $0x20] sm:$0xff]
    %s1014 = scalar_lea.vmem %s2, 13
    %v1015 = vld [vmem:[%s1014] sm:$0x1]
    %v1017 = vlaneseq
    %v1018 = vshrl.u32 %v1017, 7
    %v1019 = vsub.s32 0, %v1018
    %v1020 = vrot.slane %v1015, %v1019
    %1022 = vmatprep.subr.mxu0 0.0
    %1023 = vmatpush1.msra.mxu0 %v1009
    %1024 = vmatprep.subr.mxu0 0.0
    %1025 = vmatpush1.msra.mxu0 %v1010
    %1026 = vmatprep.subr.mxu0 0.0
    %1027 = vmatpush1.msra.mxu0 %v1011
    %1028 = vmatprep.subr.mxu0 0.0
    %1029 = vmatpush1.msra.mxu0 %v1012
    %1030 = vmatprep.subr.mxu0 0.0
    %1031 = vmatpush1.msra.mxu0 %v1013
    %1032 = vmatprep.subr.mxu0 0.0
    %1033 = vmatpush1.msra.mxu0 0.0
    %1034 = vmatprep.subr.mxu0 0.0
    %1035 = vmatpush1.msra.mxu0 0.0
    %1036 = vmatprep.subr.mxu0 0.0
    %1037 = vmatpush1.msra.mxu0 0.0
    %1038 = vmatprep.subr.mxu0 0.0
    %1039 = vmatpush1.msra.mxu0 0.0
    %1040 = vmatprep.subr.mxu0 0.0
    %1041 = vmatpush1.msra.mxu0 0.0
    %1042 = vmatprep.subr.mxu0 0.0
    %1043 = vmatpush1.msra.mxu0 0.0
    %1044 = vmatprep.subr.mxu0 0.0
    %1045 = vmatpush1.msra.mxu0 0.0
    %1046 = vmatprep.subr.mxu0 0.0
    %1047 = vmatpush1.msra.mxu0 0.0
    %1048 = vmatprep.subr.mxu0 0.0
    %1049 = vmatpush1.msra.mxu0 0.0
    %1050 = vmatprep.subr.mxu0 0.0
    %1051 = vmatpush1.msra.mxu0 0.0
    %1052 = vmatprep.subr.mxu0 0.0
    %1053 = vmatpush1.msra.mxu0 0.0
    %1054 = vmatprep.subr.mxu0 0.0
    %1055 = vmatpush1.msra.mxu0 0.0
    %1056 = vmatprep.subr.mxu0 0.0
    %1057 = vmatpush1.msra.mxu0 0.0
    %1058 = vmatprep.subr.mxu0 0.0
    %1059 = vmatpush1.msra.mxu0 0.0
    %1060 = vmatprep.subr.mxu0 0.0
    %1061 = vmatpush1.msra.mxu0 0.0
    %1062 = vmatprep.subr.mxu0 0.0
    %1063 = vmatpush1.msra.mxu0 0.0
    %1064 = vmatprep.subr.mxu0 0.0
    %1065 = vmatpush1.msra.mxu0 0.0
    %1066 = vmatprep.subr.mxu0 0.0
    %1067 = vmatpush1.msra.mxu0 0.0
    %1068 = vmatprep.subr.mxu0 0.0
    %1069 = vmatpush1.msra.mxu0 0.0
    %1070 = vmatprep.subr.mxu0 0.0
    %1071 = vmatpush1.msra.mxu0 0.0
    %1072 = vmatprep.subr.mxu0 0.0
    %1073 = vmatpush1.msra.mxu0 0.0
    %1074 = vmatprep.subr.mxu0 0.0
    %1075 = vmatpush1.msra.mxu0 0.0
    %1076 = vmatprep.subr.mxu0 0.0
    %1077 = vmatpush1.msra.mxu0 0.0
    %1078 = vmatprep.subr.mxu0 0.0
    %1079 = vmatpush1.msra.mxu0 0.0
    %1080 = vmatprep.subr.mxu0 0.0
    %1081 = vmatpush1.msra.mxu0 0.0
    %1082 = vmatprep.subr.mxu0 0.0
    %1083 = vmatpush1.msra.mxu0 0.0
    %1084 = vmatprep.subr.mxu0 0.0
    %1085 = vmatpush1.msra.mxu0 0.0
    %1086 = vmatprep.mubr.f32.mxu0 0.0
    %1087 = vmatmul.mubr.f32.gmra.mrb[0].mxu0 %v38
    %v1088 = vpop.f32.mrb[0].mxu0
    %v1089 = vadd.f32 %v1020, %v1088
    %v1090 = vpop.f32.mrb[0].mxu0
    %1091 = vmatprep.mubr.f32.mxu0 0.0
    %1092 = vmatmul.mubr.f32.gmra.mrb[0].mxu0 %v41
    %v1093 = vpop.f32.mrb[0].mxu0
    %v1094 = vadd.f32 %v1020, %v1093
    %v1095 = vpop.f32.mrb[0].mxu0
    %1096 = vdwg.mxu0
    %s1097 = scalar_lea.vmem %s1, 160
    %v1098 = vld [vmem:[%s1097] sm:$0xff]
    %v1099 = vld [vmem:[%s1097 + $0x8] sm:$0xff]
    %v1100 = vld [vmem:[%s1097 + $0x10] sm:$0xff]
    %v1101 = vld [vmem:[%s1097 + $0x18] sm:$0xff]
    %v1102 = vld [vmem:[%s1097 + $0x20] sm:$0xff]
    %s1103 = scalar_lea.vmem %s2, 4
    %v1104 = vld [vmem:[%s1103] sm:$0x1]
    %v1106 = vlaneseq
    %v1107 = vshrl.u32 %v1106, 7
    %v1108 = vsub.s32 0, %v1107
    %v1109 = vrot.slane %v1104, %v1108
    %1111 = vmatprep.subr.mxu0 0.0
    %1112 = vmatpush1.msra.mxu0 %v1098
    %1113 = vmatprep.subr.mxu0 0.0
    %1114 = vmatpush1.msra.mxu0 %v1099
    %1115 = vmatprep.subr.mxu0 0.0
    %1116 = vmatpush1.msra.mxu0 %v1100
    %1117 = vmatprep.subr.mxu0 0.0
    %1118 = vmatpush1.msra.mxu0 %v1101
    %1119 = vmatprep.subr.mxu0 0.0
    %1120 = vmatpush1.msra.mxu0 %v1102
    %1121 = vmatprep.subr.mxu0 0.0
    %1122 = vmatpush1.msra.mxu0 0.0
    %1123 = vmatprep.subr.mxu0 0.0
    %1124 = vmatpush1.msra.mxu0 0.0
    %1125 = vmatprep.subr.mxu0 0.0
    %1126 = vmatpush1.msra.mxu0 0.0
    %1127 = vmatprep.subr.mxu0 0.0
    %1128 = vmatpush1.msra.mxu0 0.0
    %1129 = vmatprep.subr.mxu0 0.0
    %1130 = vmatpush1.msra.mxu0 0.0
    %1131 = vmatprep.subr.mxu0 0.0
    %1132 = vmatpush1.msra.mxu0 0.0
    %1133 = vmatprep.subr.mxu0 0.0
    %1134 = vmatpush1.msra.mxu0 0.0
    %1135 = vmatprep.subr.mxu0 0.0
    %1136 = vmatpush1.msra.mxu0 0.0
    %1137 = vmatprep.subr.mxu0 0.0
    %1138 = vmatpush1.msra.mxu0 0.0
    %1139 = vmatprep.subr.mxu0 0.0
    %1140 = vmatpush1.msra.mxu0 0.0
    %1141 = vmatprep.subr.mxu0 0.0
    %1142 = vmatpush1.msra.mxu0 0.0
    %1143 = vmatprep.subr.mxu0 0.0
    %1144 = vmatpush1.msra.mxu0 0.0
    %1145 = vmatprep.subr.mxu0 0.0
    %1146 = vmatpush1.msra.mxu0 0.0
    %1147 = vmatprep.subr.mxu0 0.0
    %1148 = vmatpush1.msra.mxu0 0.0
    %1149 = vmatprep.subr.mxu0 0.0
    %1150 = vmatpush1.msra.mxu0 0.0
    %1151 = vmatprep.subr.mxu0 0.0
    %1152 = vmatpush1.msra.mxu0 0.0
    %1153 = vmatprep.subr.mxu0 0.0
    %1154 = vmatpush1.msra.mxu0 0.0
    %1155 = vmatprep.subr.mxu0 0.0
    %1156 = vmatpush1.msra.mxu0 0.0
    %1157 = vmatprep.subr.mxu0 0.0
    %1158 = vmatpush1.msra.mxu0 0.0
    %1159 = vmatprep.subr.mxu0 0.0
    %1160 = vmatpush1.msra.mxu0 0.0
    %1161 = vmatprep.subr.mxu0 0.0
    %1162 = vmatpush1.msra.mxu0 0.0
    %1163 = vmatprep.subr.mxu0 0.0
    %1164 = vmatpush1.msra.mxu0 0.0
    %1165 = vmatprep.subr.mxu0 0.0
    %1166 = vmatpush1.msra.mxu0 0.0
    %1167 = vmatprep.subr.mxu0 0.0
    %1168 = vmatpush1.msra.mxu0 0.0
    %1169 = vmatprep.subr.mxu0 0.0
    %1170 = vmatpush1.msra.mxu0 0.0
    %1171 = vmatprep.subr.mxu0 0.0
    %1172 = vmatpush1.msra.mxu0 0.0
    %1173 = vmatprep.subr.mxu0 0.0
    %1174 = vmatpush1.msra.mxu0 0.0
    %1175 = vmatprep.mubr.f32.mxu0 0.0
    %1176 = vmatmul.mubr.f32.gmra.mrb[0].mxu0 %v38
    %v1177 = vpop.f32.mrb[0].mxu0
    %v1178 = vadd.f32 %v1109, %v1177
    %v1179 = vpop.f32.mrb[0].mxu0
    %1180 = vmatprep.mubr.f32.mxu0 0.0
    %1181 = vmatmul.mubr.f32.gmra.mrb[0].mxu0 %v41
    %v1182 = vpop.f32.mrb[0].mxu0
    %v1183 = vadd.f32 %v1109, %v1182
    %v1184 = vpop.f32.mrb[0].mxu0
    %1185 = vdwg.mxu0
    %s1186 = scalar_lea.vmem %s1, 360
    %v1187 = vld [vmem:[%s1186] sm:$0xff]
    %v1188 = vld [vmem:[%s1186 + $0x8] sm:$0xff]
    %v1189 = vld [vmem:[%s1186 + $0x10] sm:$0xff]
    %v1190 = vld [vmem:[%s1186 + $0x18] sm:$0xff]
    %v1191 = vld [vmem:[%s1186 + $0x20] sm:$0xff]
    %s1192 = scalar_lea.vmem %s2, 9
    %v1193 = vld [vmem:[%s1192] sm:$0x1]
    %v1195 = vlaneseq
    %v1196 = vshrl.u32 %v1195, 7
    %v1197 = vsub.s32 0, %v1196
    %v1198 = vrot.slane %v1193, %v1197
    %1200 = vmatprep.subr.mxu0 0.0
    %1201 = vmatpush1.msra.mxu0 %v1187
    %1202 = vmatprep.subr.mxu0 0.0
    %1203 = vmatpush1.msra.mxu0 %v1188
    %1204 = vmatprep.subr.mxu0 0.0
    %1205 = vmatpush1.msra.mxu0 %v1189
    %1206 = vmatprep.subr.mxu0 0.0
    %1207 = vmatpush1.msra.mxu0 %v1190
    %1208 = vmatprep.subr.mxu0 0.0
    %1209 = vmatpush1.msra.mxu0 %v1191
    %1210 = vmatprep.subr.mxu0 0.0
    %1211 = vmatpush1.msra.mxu0 0.0
    %1212 = vmatprep.subr.mxu0 0.0
    %1213 = vmatpush1.msra.mxu0 0.0
    %1214 = vmatprep.subr.mxu0 0.0
    %1215 = vmatpush1.msra.mxu0 0.0
    %1216 = vmatprep.subr.mxu0 0.0
    %1217 = vmatpush1.msra.mxu0 0.0
    %1218 = vmatprep.subr.mxu0 0.0
    %1219 = vmatpush1.msra.mxu0 0.0
    %1220 = vmatprep.subr.mxu0 0.0
    %1221 = vmatpush1.msra.mxu0 0.0
    %1222 = vmatprep.subr.mxu0 0.0
    %1223 = vmatpush1.msra.mxu0 0.0
    %1224 = vmatprep.subr.mxu0 0.0
    %1225 = vmatpush1.msra.mxu0 0.0
    %1226 = vmatprep.subr.mxu0 0.0
    %1227 = vmatpush1.msra.mxu0 0.0
    %1228 = vmatprep.subr.mxu0 0.0
    %1229 = vmatpush1.msra.mxu0 0.0
    %1230 = vmatprep.subr.mxu0 0.0
    %1231 = vmatpush1.msra.mxu0 0.0
    %1232 = vmatprep.subr.mxu0 0.0
    %1233 = vmatpush1.msra.mxu0 0.0
    %1234 = vmatprep.subr.mxu0 0.0
    %1235 = vmatpush1.msra.mxu0 0.0
    %1236 = vmatprep.subr.mxu0 0.0
    %1237 = vmatpush1.msra.mxu0 0.0
    %1238 = vmatprep.subr.mxu0 0.0
    %1239 = vmatpush1.msra.mxu0 0.0
    %1240 = vmatprep.subr.mxu0 0.0
    %1241 = vmatpush1.msra.mxu0 0.0
    %1242 = vmatprep.subr.mxu0 0.0
    %1243 = vmatpush1.msra.mxu0 0.0
    %1244 = vmatprep.subr.mxu0 0.0
    %1245 = vmatpush1.msra.mxu0 0.0
    %1246 = vmatprep.subr.mxu0 0.0
    %1247 = vmatpush1.msra.mxu0 0.0
    %1248 = vmatprep.subr.mxu0 0.0
    %1249 = vmatpush1.msra.mxu0 0.0
    %1250 = vmatprep.subr.mxu0 0.0
    %1251 = vmatpush1.msra.mxu0 0.0
    %1252 = vmatprep.subr.mxu0 0.0
    %1253 = vmatpush1.msra.mxu0 0.0
    %1254 = vmatprep.subr.mxu0 0.0
    %1255 = vmatpush1.msra.mxu0 0.0
    %1256 = vmatprep.subr.mxu0 0.0
    %1257 = vmatpush1.msra.mxu0 0.0
    %1258 = vmatprep.subr.mxu0 0.0
    %1259 = vmatpush1.msra.mxu0 0.0
    %1260 = vmatprep.subr.mxu0 0.0
    %1261 = vmatpush1.msra.mxu0 0.0
    %1262 = vmatprep.subr.mxu0 0.0
    %1263 = vmatpush1.msra.mxu0 0.0
    %1264 = vmatprep.mubr.f32.mxu0 0.0
    %1265 = vmatmul.mubr.f32.gmra.mrb[0].mxu0 %v38
    %v1266 = vpop.f32.mrb[0].mxu0
    %v1267 = vadd.f32 %v1198, %v1266
    %v1268 = vpop.f32.mrb[0].mxu0
    %1269 = vmatprep.mubr.f32.mxu0 0.0
    %1270 = vmatmul.mubr.f32.gmra.mrb[0].mxu0 %v41
    %v1271 = vpop.f32.mrb[0].mxu0
    %v1272 = vadd.f32 %v1198, %v1271
    %v1273 = vpop.f32.mrb[0].mxu0
    %1274 = vdwg.mxu0
    %s1275 = scalar_lea.vmem %s1, 560
    %v1276 = vld [vmem:[%s1275] sm:$0xff]
    %v1277 = vld [vmem:[%s1275 + $0x8] sm:$0xff]
    %v1278 = vld [vmem:[%s1275 + $0x10] sm:$0xff]
    %v1279 = vld [vmem:[%s1275 + $0x18] sm:$0xff]
    %v1280 = vld [vmem:[%s1275 + $0x20] sm:$0xff]
    %s1281 = scalar_lea.vmem %s2, 14
    %v1282 = vld [vmem:[%s1281] sm:$0x1]
    %v1284 = vlaneseq
    %v1285 = vshrl.u32 %v1284, 7
    %v1286 = vsub.s32 0, %v1285
    %v1287 = vrot.slane %v1282, %v1286
    %1289 = vmatprep.subr.mxu0 0.0
    %1290 = vmatpush1.msra.mxu0 %v1276
    %1291 = vmatprep.subr.mxu0 0.0
    %1292 = vmatpush1.msra.mxu0 %v1277
    %1293 = vmatprep.subr.mxu0 0.0
    %1294 = vmatpush1.msra.mxu0 %v1278
    %1295 = vmatprep.subr.mxu0 0.0
    %1296 = vmatpush1.msra.mxu0 %v1279
    %1297 = vmatprep.subr.mxu0 0.0
    %1298 = vmatpush1.msra.mxu0 %v1280
    %1299 = vmatprep.subr.mxu0 0.0
    %1300 = vmatpush1.msra.mxu0 0.0
    %1301 = vmatprep.subr.mxu0 0.0
    %1302 = vmatpush1.msra.mxu0 0.0
    %1303 = vmatprep.subr.mxu0 0.0
    %1304 = vmatpush1.msra.mxu0 0.0
    %1305 = vmatprep.subr.mxu0 0.0
    %1306 = vmatpush1.msra.mxu0 0.0
    %1307 = vmatprep.subr.mxu0 0.0
    %1308 = vmatpush1.msra.mxu0 0.0
    %1309 = vmatprep.subr.mxu0 0.0
    %1310 = vmatpush1.msra.mxu0 0.0
    %1311 = vmatprep.subr.mxu0 0.0
    %1312 = vmatpush1.msra.mxu0 0.0
    %1313 = vmatprep.subr.mxu0 0.0
    %1314 = vmatpush1.msra.mxu0 0.0
    %1315 = vmatprep.subr.mxu0 0.0
    %1316 = vmatpush1.msra.mxu0 0.0
    %1317 = vmatprep.subr.mxu0 0.0
    %1318 = vmatpush1.msra.mxu0 0.0
    %1319 = vmatprep.subr.mxu0 0.0
    %1320 = vmatpush1.msra.mxu0 0.0
    %1321 = vmatprep.subr.mxu0 0.0
    %1322 = vmatpush1.msra.mxu0 0.0
    %1323 = vmatprep.subr.mxu0 0.0
    %1324 = vmatpush1.msra.mxu0 0.0
    %1325 = vmatprep.subr.mxu0 0.0
    %1326 = vmatpush1.msra.mxu0 0.0
    %1327 = vmatprep.subr.mxu0 0.0
    %1328 = vmatpush1.msra.mxu0 0.0
    %1329 = vmatprep.subr.mxu0 0.0
    %1330 = vmatpush1.msra.mxu0 0.0
    %1331 = vmatprep.subr.mxu0 0.0
    %1332 = vmatpush1.msra.mxu0 0.0
    %1333 = vmatprep.subr.mxu0 0.0
    %1334 = vmatpush1.msra.mxu0 0.0
    %1335 = vmatprep.subr.mxu0 0.0
    %1336 = vmatpush1.msra.mxu0 0.0
    %1337 = vmatprep.subr.mxu0 0.0
    %1338 = vmatpush1.msra.mxu0 0.0
    %1339 = vmatprep.subr.mxu0 0.0
    %1340 = vmatpush1.msra.mxu0 0.0
    %1341 = vmatprep.subr.mxu0 0.0
    %1342 = vmatpush1.msra.mxu0 0.0
    %1343 = vmatprep.subr.mxu0 0.0
    %1344 = vmatpush1.msra.mxu0 0.0
    %1345 = vmatprep.subr.mxu0 0.0
    %1346 = vmatpush1.msra.mxu0 0.0
    %1347 = vmatprep.subr.mxu0 0.0
    %1348 = vmatpush1.msra.mxu0 0.0
    %1349 = vmatprep.subr.mxu0 0.0
    %1350 = vmatpush1.msra.mxu0 0.0
    %1351 = vmatprep.subr.mxu0 0.0
    %1352 = vmatpush1.msra.mxu0 0.0
    %1353 = vmatprep.mubr.f32.mxu0 0.0
    %1354 = vmatmul.mubr.f32.gmra.mrb[0].mxu0 %v38
    %v1355 = vpop.f32.mrb[0].mxu0
    %v1356 = vadd.f32 %v1287, %v1355
    %v1357 = vpop.f32.mrb[0].mxu0
    %1358 = vmatprep.mubr.f32.mxu0 0.0
    %1359 = vmatmul.mubr.f32.gmra.mrb[0].mxu0 %v41
    %v1360 = vpop.f32.mrb[0].mxu0
    %v1361 = vadd.f32 %v1287, %v1360
    %v1362 = vpop.f32.mrb[0].mxu0
    %1363 = vdwg.mxu0
    %vm1364 = vcmask 64512
    %v1366 = vsel %vm1364, %v110, 0
    %v1369 = vsel %vm1364, %v199, 0
    %1371 = vmatprep.subr.mxu0 0.0
    %1372 = vmatpush1.xpose.msra.mxu0 %v1369
    %1373 = vmatprep.subr.mxu0 0.0
    %1374 = vmatpush1.xpose.msra.mxu0 0.0
    %1375 = vmatprep.subr.mxu0 0.0
    %1376 = vmatpush1.xpose.msra.mxu0 0.0
    %1377 = vmatprep.subr.mxu0 0.0
    %1378 = vmatpush1.xpose.msra.mxu0 0.0
    %1379 = vmatprep.subr.mxu0 0.0
    %1380 = vmatpush1.xpose.msra.mxu0 0.0
    %1381 = vmatprep.subr.mxu0 0.0
    %1382 = vmatpush1.xpose.msra.mxu0 0.0
    %1383 = vmatprep.subr.mxu0 0.0
    %1384 = vmatpush1.xpose.msra.mxu0 0.0
    %1385 = vmatprep.subr.mxu0 0.0
    %1386 = vmatpush1.xpose.msra.mxu0 0.0
    %1387 = vmatprep.subr.mxu0 0.0
    %1388 = vmatpush1.xpose.msra.mxu0 0.0
    %1389 = vmatprep.subr.mxu0 0.0
    %1390 = vmatpush1.xpose.msra.mxu0 0.0
    %1391 = vmatprep.subr.mxu0 0.0
    %1392 = vmatpush1.xpose.msra.mxu0 0.0
    %1393 = vmatprep.subr.mxu0 0.0
    %1394 = vmatpush1.xpose.msra.mxu0 0.0
    %1395 = vmatprep.subr.mxu0 0.0
    %1396 = vmatpush1.xpose.msra.mxu0 0.0
    %1397 = vmatprep.subr.mxu0 0.0
    %1398 = vmatpush1.xpose.msra.mxu0 0.0
    %1399 = vmatprep.subr.mxu0 0.0
    %1400 = vmatpush1.xpose.msra.mxu0 0.0
    %1401 = vmatprep.subr.mxu0 0.0
    %1402 = vmatpush1.xpose.msra.mxu0 0.0
    %1403 = vmatprep.subr.mxu0 0.0
    %1404 = vmatpush1.xpose.msra.mxu0 0.0
    %1405 = vmatprep.subr.mxu0 0.0
    %1406 = vmatpush1.xpose.msra.mxu0 0.0
    %1407 = vmatprep.subr.mxu0 0.0
    %1408 = vmatpush1.xpose.msra.mxu0 0.0
    %1409 = vmatprep.subr.mxu0 0.0
    %1410 = vmatpush1.xpose.msra.mxu0 0.0
    %1411 = vmatprep.subr.mxu0 0.0
    %1412 = vmatpush1.xpose.msra.mxu0 0.0
    %1413 = vmatprep.subr.mxu0 0.0
    %1414 = vmatpush1.xpose.msra.mxu0 0.0
    %1415 = vmatprep.subr.mxu0 0.0
    %1416 = vmatpush1.xpose.msra.mxu0 0.0
    %1417 = vmatprep.subr.mxu0 0.0
    %1418 = vmatpush1.xpose.msra.mxu0 0.0
    %1419 = vmatprep.subr.mxu0 0.0
    %1420 = vmatpush1.xpose.msra.mxu0 0.0
    %1421 = vmatprep.subr.mxu0 0.0
    %1422 = vmatpush1.xpose.msra.mxu0 0.0
    %1423 = vmatprep.subr.mxu0 0.0
    %1424 = vmatpush1.xpose.msra.mxu0 0.0
    %1425 = vmatprep.subr.mxu0 0.0
    %1426 = vmatpush1.xpose.msra.mxu0 0.0
    %1427 = vmatprep.subr.mxu0 0.0
    %1428 = vmatpush1.xpose.msra.mxu0 0.0
    %1429 = vmatprep.subr.mxu0 0.0
    %1430 = vmatpush1.xpose.msra.mxu0 0.0
    %1431 = vmatprep.subr.mxu0 0.0
    %1432 = vmatpush1.xpose.msra.mxu0 0.0
    %1433 = vmatprep.subr.mxu0 0.0
    %1434 = vmatpush1.xpose.msra.mxu0 0.0
    %1435 = vmatprep.mubr.f32.mxu0 0.0
    %1436 = vmatmul.mubr.f32.gmra.mrb[0].mxu0 %v1366
    %v1437 = vpop.f32.mrb[0].mxu0
    %v1438 = vadd.f32 0.0, %v1437
    %v1439 = vpop.f32.mrb[0].mxu0
    %1440 = vdwg.mxu0
    %v1441 = vsel %vm1364, %v1438, -inf
    %1442 = vmax.xlane.f32.xlu0 %v1441
    %v1443 = vpop.xlane.xlu0 %1442
    %v1444 = vsub.f32 %v1438, %v1443
    %v1445 = vmul.f32 %v1444, 1.442695
    %v1446 = vpow.pop %v1445
    %v1447 = vsel %vm1364, %v1446, 0.0
    %1448 = vadd.xlane.f32.xlu0 %v1447
    %v1449 = vpop.xlane.xlu0 %1448
    %v1450 = vrcp.pop %v1449
    %v1451 = vmul.f32 %v1446, %v1450
    %v1453 = vsel %vm1364, %v1451, 0
    %1455 = vmatprep.subr.mxu0 0.0
    %1456 = vmatpush1.msra.mxu0 %v288
    %1457 = vmatprep.subr.mxu0 0.0
    %1458 = vmatpush1.msra.mxu0 0.0
    %1459 = vmatprep.subr.mxu0 0.0
    %1460 = vmatpush1.msra.mxu0 0.0
    %1461 = vmatprep.subr.mxu0 0.0
    %1462 = vmatpush1.msra.mxu0 0.0
    %1463 = vmatprep.subr.mxu0 0.0
    %1464 = vmatpush1.msra.mxu0 0.0
    %1465 = vmatprep.subr.mxu0 0.0
    %1466 = vmatpush1.msra.mxu0 0.0
    %1467 = vmatprep.subr.mxu0 0.0
    %1468 = vmatpush1.msra.mxu0 0.0
    %1469 = vmatprep.subr.mxu0 0.0
    %1470 = vmatpush1.msra.mxu0 0.0
    %1471 = vmatprep.subr.mxu0 0.0
    %1472 = vmatpush1.msra.mxu0 0.0
    %1473 = vmatprep.subr.mxu0 0.0
    %1474 = vmatpush1.msra.mxu0 0.0
    %1475 = vmatprep.subr.mxu0 0.0
    %1476 = vmatpush1.msra.mxu0 0.0
    %1477 = vmatprep.subr.mxu0 0.0
    %1478 = vmatpush1.msra.mxu0 0.0
    %1479 = vmatprep.subr.mxu0 0.0
    %1480 = vmatpush1.msra.mxu0 0.0
    %1481 = vmatprep.subr.mxu0 0.0
    %1482 = vmatpush1.msra.mxu0 0.0
    %1483 = vmatprep.subr.mxu0 0.0
    %1484 = vmatpush1.msra.mxu0 0.0
    %1485 = vmatprep.subr.mxu0 0.0
    %1486 = vmatpush1.msra.mxu0 0.0
    %1487 = vmatprep.subr.mxu0 0.0
    %1488 = vmatpush1.msra.mxu0 0.0
    %1489 = vmatprep.subr.mxu0 0.0
    %1490 = vmatpush1.msra.mxu0 0.0
    %1491 = vmatprep.subr.mxu0 0.0
    %1492 = vmatpush1.msra.mxu0 0.0
    %1493 = vmatprep.subr.mxu0 0.0
    %1494 = vmatpush1.msra.mxu0 0.0
    %1495 = vmatprep.subr.mxu0 0.0
    %1496 = vmatpush1.msra.mxu0 0.0
    %1497 = vmatprep.subr.mxu0 0.0
    %1498 = vmatpush1.msra.mxu0 0.0
    %1499 = vmatprep.subr.mxu0 0.0
    %1500 = vmatpush1.msra.mxu0 0.0
    %1501 = vmatprep.subr.mxu0 0.0
    %1502 = vmatpush1.msra.mxu0 0.0
    %1503 = vmatprep.subr.mxu0 0.0
    %1504 = vmatpush1.msra.mxu0 0.0
    %1505 = vmatprep.subr.mxu0 0.0
    %1506 = vmatpush1.msra.mxu0 0.0
    %1507 = vmatprep.subr.mxu0 0.0
    %1508 = vmatpush1.msra.mxu0 0.0
    %1509 = vmatprep.subr.mxu0 0.0
    %1510 = vmatpush1.msra.mxu0 0.0
    %1511 = vmatprep.subr.mxu0 0.0
    %1512 = vmatpush1.msra.mxu0 0.0
    %1513 = vmatprep.subr.mxu0 0.0
    %1514 = vmatpush1.msra.mxu0 0.0
    %1515 = vmatprep.subr.mxu0 0.0
    %1516 = vmatpush1.msra.mxu0 0.0
    %1517 = vmatprep.subr.mxu0 0.0
    %1518 = vmatpush1.msra.mxu0 0.0
    %1519 = vmatprep.mubr.f32.mxu0 0.0
    %1520 = vmatmul.mubr.f32.gmra.mrb[0].mxu0 %v1453
    %v1521 = vpop.f32.mrb[0].mxu0
    %v1522 = vadd.f32 0.0, %v1521
    %v1523 = vpop.f32.mrb[0].mxu0
    %1524 = vdwg.mxu0
    %v1525 = vld [vmem:[%s3] sm:$0xff]
    %v1527 = vsel %vm1364, %v377, 0
    %v1530 = vsel %vm1364, %v466, 0
    %1532 = vmatprep.subr.mxu0 0.0
    %1533 = vmatpush1.xpose.msra.mxu0 %v1530
    %1534 = vmatprep.subr.mxu0 0.0
    %1535 = vmatpush1.xpose.msra.mxu0 0.0
    %1536 = vmatprep.subr.mxu0 0.0
    %1537 = vmatpush1.xpose.msra.mxu0 0.0
    %1538 = vmatprep.subr.mxu0 0.0
    %1539 = vmatpush1.xpose.msra.mxu0 0.0
    %1540 = vmatprep.subr.mxu0 0.0
    %1541 = vmatpush1.xpose.msra.mxu0 0.0
    %1542 = vmatprep.subr.mxu0 0.0
    %1543 = vmatpush1.xpose.msra.mxu0 0.0
    %1544 = vmatprep.subr.mxu0 0.0
    %1545 = vmatpush1.xpose.msra.mxu0 0.0
    %1546 = vmatprep.subr.mxu0 0.0
    %1547 = vmatpush1.xpose.msra.mxu0 0.0
    %1548 = vmatprep.subr.mxu0 0.0
    %1549 = vmatpush1.xpose.msra.mxu0 0.0
    %1550 = vmatprep.subr.mxu0 0.0
    %1551 = vmatpush1.xpose.msra.mxu0 0.0
    %1552 = vmatprep.subr.mxu0 0.0
    %1553 = vmatpush1.xpose.msra.mxu0 0.0
    %1554 = vmatprep.subr.mxu0 0.0
    %1555 = vmatpush1.xpose.msra.mxu0 0.0
    %1556 = vmatprep.subr.mxu0 0.0
    %1557 = vmatpush1.xpose.msra.mxu0 0.0
    %1558 = vmatprep.subr.mxu0 0.0
    %1559 = vmatpush1.xpose.msra.mxu0 0.0
    %1560 = vmatprep.subr.mxu0 0.0
    %1561 = vmatpush1.xpose.msra.mxu0 0.0
    %1562 = vmatprep.subr.mxu0 0.0
    %1563 = vmatpush1.xpose.msra.mxu0 0.0
    %1564 = vmatprep.subr.mxu0 0.0
    %1565 = vmatpush1.xpose.msra.mxu0 0.0
    %1566 = vmatprep.subr.mxu0 0.0
    %1567 = vmatpush1.xpose.msra.mxu0 0.0
    %1568 = vmatprep.subr.mxu0 0.0
    %1569 = vmatpush1.xpose.msra.mxu0 0.0
    %1570 = vmatprep.subr.mxu0 0.0
    %1571 = vmatpush1.xpose.msra.mxu0 0.0
    %1572 = vmatprep.subr.mxu0 0.0
    %1573 = vmatpush1.xpose.msra.mxu0 0.0
    %1574 = vmatprep.subr.mxu0 0.0
    %1575 = vmatpush1.xpose.msra.mxu0 0.0
    %1576 = vmatprep.subr.mxu0 0.0
    %1577 = vmatpush1.xpose.msra.mxu0 0.0
    %1578 = vmatprep.subr.mxu0 0.0
    %1579 = vmatpush1.xpose.msra.mxu0 0.0
    %1580 = vmatprep.subr.mxu0 0.0
    %1581 = vmatpush1.xpose.msra.mxu0 0.0
    %1582 = vmatprep.subr.mxu0 0.0
    %1583 = vmatpush1.xpose.msra.mxu0 0.0
    %1584 = vmatprep.subr.mxu0 0.0
    %1585 = vmatpush1.xpose.msra.mxu0 0.0
    %1586 = vmatprep.subr.mxu0 0.0
    %1587 = vmatpush1.xpose.msra.mxu0 0.0
    %1588 = vmatprep.subr.mxu0 0.0
    %1589 = vmatpush1.xpose.msra.mxu0 0.0
    %1590 = vmatprep.subr.mxu0 0.0
    %1591 = vmatpush1.xpose.msra.mxu0 0.0
    %1592 = vmatprep.subr.mxu0 0.0
    %1593 = vmatpush1.xpose.msra.mxu0 0.0
    %1594 = vmatprep.subr.mxu0 0.0
    %1595 = vmatpush1.xpose.msra.mxu0 0.0
    %1596 = vmatprep.mubr.f32.mxu0 0.0
    %1597 = vmatmul.mubr.f32.gmra.mrb[0].mxu0 %v1527
    %v1598 = vpop.f32.mrb[0].mxu0
    %v1599 = vadd.f32 0.0, %v1598
    %v1600 = vpop.f32.mrb[0].mxu0
    %1601 = vdwg.mxu0
    %v1602 = vsel %vm1364, %v1599, -inf
    %1603 = vmax.xlane.f32.xlu0 %v1602
    %v1604 = vpop.xlane.xlu0 %1603
    %v1605 = vsub.f32 %v1599, %v1604
    %v1606 = vmul.f32 %v1605, 1.442695
    %v1607 = vpow.pop %v1606
    %v1608 = vsel %vm1364, %v1607, 0.0
    %1609 = vadd.xlane.f32.xlu0 %v1608
    %v1610 = vpop.xlane.xlu0 %1609
    %v1611 = vrcp.pop %v1610
    %v1612 = vmul.f32 %v1607, %v1611
    %v1614 = vsel %vm1364, %v1612, 0
    %1616 = vmatprep.subr.mxu0 0.0
    %1617 = vmatpush1.msra.mxu0 %v555
    %1618 = vmatprep.subr.mxu0 0.0
    %1619 = vmatpush1.msra.mxu0 0.0
    %1620 = vmatprep.subr.mxu0 0.0
    %1621 = vmatpush1.msra.mxu0 0.0
    %1622 = vmatprep.subr.mxu0 0.0
    %1623 = vmatpush1.msra.mxu0 0.0
    %1624 = vmatprep.subr.mxu0 0.0
    %1625 = vmatpush1.msra.mxu0 0.0
    %1626 = vmatprep.subr.mxu0 0.0
    %1627 = vmatpush1.msra.mxu0 0.0
    %1628 = vmatprep.subr.mxu0 0.0
    %1629 = vmatpush1.msra.mxu0 0.0
    %1630 = vmatprep.subr.mxu0 0.0
    %1631 = vmatpush1.msra.mxu0 0.0
    %1632 = vmatprep.subr.mxu0 0.0
    %1633 = vmatpush1.msra.mxu0 0.0
    %1634 = vmatprep.subr.mxu0 0.0
    %1635 = vmatpush1.msra.mxu0 0.0
    %1636 = vmatprep.subr.mxu0 0.0
    %1637 = vmatpush1.msra.mxu0 0.0
    %1638 = vmatprep.subr.mxu0 0.0
    %1639 = vmatpush1.msra.mxu0 0.0
    %1640 = vmatprep.subr.mxu0 0.0
    %1641 = vmatpush1.msra.mxu0 0.0
    %1642 = vmatprep.subr.mxu0 0.0
    %1643 = vmatpush1.msra.mxu0 0.0
    %1644 = vmatprep.subr.mxu0 0.0
    %1645 = vmatpush1.msra.mxu0 0.0
    %1646 = vmatprep.subr.mxu0 0.0
    %1647 = vmatpush1.msra.mxu0 0.0
    %1648 = vmatprep.subr.mxu0 0.0
    %1649 = vmatpush1.msra.mxu0 0.0
    %1650 = vmatprep.subr.mxu0 0.0
    %1651 = vmatpush1.msra.mxu0 0.0
    %1652 = vmatprep.subr.mxu0 0.0
    %1653 = vmatpush1.msra.mxu0 0.0
    %1654 = vmatprep.subr.mxu0 0.0
    %1655 = vmatpush1.msra.mxu0 0.0
    %1656 = vmatprep.subr.mxu0 0.0
    %1657 = vmatpush1.msra.mxu0 0.0
    %1658 = vmatprep.subr.mxu0 0.0
    %1659 = vmatpush1.msra.mxu0 0.0
    %1660 = vmatprep.subr.mxu0 0.0
    %1661 = vmatpush1.msra.mxu0 0.0
    %1662 = vmatprep.subr.mxu0 0.0
    %1663 = vmatpush1.msra.mxu0 0.0
    %1664 = vmatprep.subr.mxu0 0.0
    %1665 = vmatpush1.msra.mxu0 0.0
    %1666 = vmatprep.subr.mxu0 0.0
    %1667 = vmatpush1.msra.mxu0 0.0
    %1668 = vmatprep.subr.mxu0 0.0
    %1669 = vmatpush1.msra.mxu0 0.0
    %1670 = vmatprep.subr.mxu0 0.0
    %1671 = vmatpush1.msra.mxu0 0.0
    %1672 = vmatprep.subr.mxu0 0.0
    %1673 = vmatpush1.msra.mxu0 0.0
    %1674 = vmatprep.subr.mxu0 0.0
    %1675 = vmatpush1.msra.mxu0 0.0
    %1676 = vmatprep.subr.mxu0 0.0
    %1677 = vmatpush1.msra.mxu0 0.0
    %1678 = vmatprep.subr.mxu0 0.0
    %1679 = vmatpush1.msra.mxu0 0.0
    %1680 = vmatprep.mubr.f32.mxu0 0.0
    %1681 = vmatmul.mubr.f32.gmra.mrb[0].mxu0 %v1614
    %v1682 = vpop.f32.mrb[0].mxu0
    %v1683 = vadd.f32 0.0, %v1682
    %v1684 = vpop.f32.mrb[0].mxu0
    %1685 = vdwg.mxu0
    %s1686 = scalar_lea.vmem %s3, 8
    %v1687 = vld [vmem:[%s1686] sm:$0xff]
    %v1689 = vsel %vm1364, %v1683, 0
    %1691 = vmatprep.subr.mxu0 0.0
    %1692 = vmatpush1.msra.mxu0 %v1687
    %1693 = vmatprep.subr.mxu0 0.0
    %1694 = vmatpush1.msra.mxu0 0.0
    %1695 = vmatprep.subr.mxu0 0.0
    %1696 = vmatpush1.msra.mxu0 0.0
    %1697 = vmatprep.subr.mxu0 0.0
    %1698 = vmatpush1.msra.mxu0 0.0
    %1699 = vmatprep.subr.mxu0 0.0
    %1700 = vmatpush1.msra.mxu0 0.0
    %1701 = vmatprep.subr.mxu0 0.0
    %1702 = vmatpush1.msra.mxu0 0.0
    %1703 = vmatprep.subr.mxu0 0.0
    %1704 = vmatpush1.msra.mxu0 0.0
    %1705 = vmatprep.subr.mxu0 0.0
    %1706 = vmatpush1.msra.mxu0 0.0
    %1707 = vmatprep.subr.mxu0 0.0
    %1708 = vmatpush1.msra.mxu0 0.0
    %1709 = vmatprep.subr.mxu0 0.0
    %1710 = vmatpush1.msra.mxu0 0.0
    %1711 = vmatprep.subr.mxu0 0.0
    %1712 = vmatpush1.msra.mxu0 0.0
    %1713 = vmatprep.subr.mxu0 0.0
    %1714 = vmatpush1.msra.mxu0 0.0
    %1715 = vmatprep.subr.mxu0 0.0
    %1716 = vmatpush1.msra.mxu0 0.0
    %1717 = vmatprep.subr.mxu0 0.0
    %1718 = vmatpush1.msra.mxu0 0.0
    %1719 = vmatprep.subr.mxu0 0.0
    %1720 = vmatpush1.msra.mxu0 0.0
    %1721 = vmatprep.subr.mxu0 0.0
    %1722 = vmatpush1.msra.mxu0 0.0
    %1723 = vmatprep.subr.mxu0 0.0
    %1724 = vmatpush1.msra.mxu0 0.0
    %1725 = vmatprep.subr.mxu0 0.0
    %1726 = vmatpush1.msra.mxu0 0.0
    %1727 = vmatprep.subr.mxu0 0.0
    %1728 = vmatpush1.msra.mxu0 0.0
    %1729 = vmatprep.subr.mxu0 0.0
    %1730 = vmatpush1.msra.mxu0 0.0
    %1731 = vmatprep.subr.mxu0 0.0
    %1732 = vmatpush1.msra.mxu0 0.0
    %1733 = vmatprep.subr.mxu0 0.0
    %1734 = vmatpush1.msra.mxu0 0.0
    %1735 = vmatprep.subr.mxu0 0.0
    %1736 = vmatpush1.msra.mxu0 0.0
    %1737 = vmatprep.subr.mxu0 0.0
    %1738 = vmatpush1.msra.mxu0 0.0
    %1739 = vmatprep.subr.mxu0 0.0
    %1740 = vmatpush1.msra.mxu0 0.0
    %1741 = vmatprep.subr.mxu0 0.0
    %1742 = vmatpush1.msra.mxu0 0.0
    %1743 = vmatprep.subr.mxu0 0.0
    %1744 = vmatpush1.msra.mxu0 0.0
    %1745 = vmatprep.subr.mxu0 0.0
    %1746 = vmatpush1.msra.mxu0 0.0
    %1747 = vmatprep.subr.mxu0 0.0
    %1748 = vmatpush1.msra.mxu0 0.0
    %1749 = vmatprep.subr.mxu0 0.0
    %1750 = vmatpush1.msra.mxu0 0.0
    %1751 = vmatprep.subr.mxu0 0.0
    %1752 = vmatpush1.msra.mxu0 0.0
    %1753 = vmatprep.subr.mxu0 0.0
    %1754 = vmatpush1.msra.mxu0 0.0
    %1755 = vmatprep.mubr.f32.mxu0 0.0
    %1756 = vmatmul.mubr.f32.gmra.mrb[0].mxu0 %v1689
    %v1757 = vpop.f32.mrb[0].mxu0
    %v1758 = vadd.f32 0.0, %v1757
    %v1759 = vpop.f32.mrb[0].mxu0
    %1760 = vdwg.mxu0
    %v1762 = vsel %vm1364, %v1522, 0
    %1764 = vmatprep.subr.mxu0 0.0
    %1765 = vmatpush1.msra.mxu0 %v1525
    %1766 = vmatprep.subr.mxu0 0.0
    %1767 = vmatpush1.msra.mxu0 0.0
    %1768 = vmatprep.subr.mxu0 0.0
    %1769 = vmatpush1.msra.mxu0 0.0
    %1770 = vmatprep.subr.mxu0 0.0
    %1771 = vmatpush1.msra.mxu0 0.0
    %1772 = vmatprep.subr.mxu0 0.0
    %1773 = vmatpush1.msra.mxu0 0.0
    %1774 = vmatprep.subr.mxu0 0.0
    %1775 = vmatpush1.msra.mxu0 0.0
    %1776 = vmatprep.subr.mxu0 0.0
    %1777 = vmatpush1.msra.mxu0 0.0
    %1778 = vmatprep.subr.mxu0 0.0
    %1779 = vmatpush1.msra.mxu0 0.0
    %1780 = vmatprep.subr.mxu0 0.0
    %1781 = vmatpush1.msra.mxu0 0.0
    %1782 = vmatprep.subr.mxu0 0.0
    %1783 = vmatpush1.msra.mxu0 0.0
    %1784 = vmatprep.subr.mxu0 0.0
    %1785 = vmatpush1.msra.mxu0 0.0
    %1786 = vmatprep.subr.mxu0 0.0
    %1787 = vmatpush1.msra.mxu0 0.0
    %1788 = vmatprep.subr.mxu0 0.0
    %1789 = vmatpush1.msra.mxu0 0.0
    %1790 = vmatprep.subr.mxu0 0.0
    %1791 = vmatpush1.msra.mxu0 0.0
    %1792 = vmatprep.subr.mxu0 0.0
    %1793 = vmatpush1.msra.mxu0 0.0
    %1794 = vmatprep.subr.mxu0 0.0
    %1795 = vmatpush1.msra.mxu0 0.0
    %1796 = vmatprep.subr.mxu0 0.0
    %1797 = vmatpush1.msra.mxu0 0.0
    %1798 = vmatprep.subr.mxu0 0.0
    %1799 = vmatpush1.msra.mxu0 0.0
    %1800 = vmatprep.subr.mxu0 0.0
    %1801 = vmatpush1.msra.mxu0 0.0
    %1802 = vmatprep.subr.mxu0 0.0
    %1803 = vmatpush1.msra.mxu0 0.0
    %1804 = vmatprep.subr.mxu0 0.0
    %1805 = vmatpush1.msra.mxu0 0.0
    %1806 = vmatprep.subr.mxu0 0.0
    %1807 = vmatpush1.msra.mxu0 0.0
    %1808 = vmatprep.subr.mxu0 0.0
    %1809 = vmatpush1.msra.mxu0 0.0
    %1810 = vmatprep.subr.mxu0 0.0
    %1811 = vmatpush1.msra.mxu0 0.0
    %1812 = vmatprep.subr.mxu0 0.0
    %1813 = vmatpush1.msra.mxu0 0.0
    %1814 = vmatprep.subr.mxu0 0.0
    %1815 = vmatpush1.msra.mxu0 0.0
    %1816 = vmatprep.subr.mxu0 0.0
    %1817 = vmatpush1.msra.mxu0 0.0
    %1818 = vmatprep.subr.mxu0 0.0
    %1819 = vmatpush1.msra.mxu0 0.0
    %1820 = vmatprep.subr.mxu0 0.0
    %1821 = vmatpush1.msra.mxu0 0.0
    %1822 = vmatprep.subr.mxu0 0.0
    %1823 = vmatpush1.msra.mxu0 0.0
    %1824 = vmatprep.subr.mxu0 0.0
    %1825 = vmatpush1.msra.mxu0 0.0
    %1826 = vmatprep.subr.mxu0 0.0
    %1827 = vmatpush1.msra.mxu0 0.0
    %1828 = vmatprep.mubr.f32.mxu0 0.0
    %1829 = vmatmul.mubr.f32.gmra.mrb[0].mxu0 %v1762
    %v1830 = vpop.f32.mrb[0].mxu0
    %v1831 = vadd.f32 %v1758, %v1830
    %v1832 = vpop.f32.mrb[0].mxu0
    %1833 = vdwg.mxu0
    %v1835 = vsel %vm1364, %v644, 0
    %v1838 = vsel %vm1364, %v733, 0
    %1840 = vmatprep.subr.mxu0 0.0
    %1841 = vmatpush1.xpose.msra.mxu0 %v1838
    %1842 = vmatprep.subr.mxu0 0.0
    %1843 = vmatpush1.xpose.msra.mxu0 0.0
    %1844 = vmatprep.subr.mxu0 0.0
    %1845 = vmatpush1.xpose.msra.mxu0 0.0
    %1846 = vmatprep.subr.mxu0 0.0
    %1847 = vmatpush1.xpose.msra.mxu0 0.0
    %1848 = vmatprep.subr.mxu0 0.0
    %1849 = vmatpush1.xpose.msra.mxu0 0.0
    %1850 = vmatprep.subr.mxu0 0.0
    %1851 = vmatpush1.xpose.msra.mxu0 0.0
    %1852 = vmatprep.subr.mxu0 0.0
    %1853 = vmatpush1.xpose.msra.mxu0 0.0
    %1854 = vmatprep.subr.mxu0 0.0
    %1855 = vmatpush1.xpose.msra.mxu0 0.0
    %1856 = vmatprep.subr.mxu0 0.0
    %1857 = vmatpush1.xpose.msra.mxu0 0.0
    %1858 = vmatprep.subr.mxu0 0.0
    %1859 = vmatpush1.xpose.msra.mxu0 0.0
    %1860 = vmatprep.subr.mxu0 0.0
    %1861 = vmatpush1.xpose.msra.mxu0 0.0
    %1862 = vmatprep.subr.mxu0 0.0
    %1863 = vmatpush1.xpose.msra.mxu0 0.0
    %1864 = vmatprep.subr.mxu0 0.0
    %1865 = vmatpush1.xpose.msra.mxu0 0.0
    %1866 = vmatprep.subr.mxu0 0.0
    %1867 = vmatpush1.xpose.msra.mxu0 0.0
    %1868 = vmatprep.subr.mxu0 0.0
    %1869 = vmatpush1.xpose.msra.mxu0 0.0
    %1870 = vmatprep.subr.mxu0 0.0
    %1871 = vmatpush1.xpose.msra.mxu0 0.0
    %1872 = vmatprep.subr.mxu0 0.0
    %1873 = vmatpush1.xpose.msra.mxu0 0.0
    %1874 = vmatprep.subr.mxu0 0.0
    %1875 = vmatpush1.xpose.msra.mxu0 0.0
    %1876 = vmatprep.subr.mxu0 0.0
    %1877 = vmatpush1.xpose.msra.mxu0 0.0
    %1878 = vmatprep.subr.mxu0 0.0
    %1879 = vmatpush1.xpose.msra.mxu0 0.0
    %1880 = vmatprep.subr.mxu0 0.0
    %1881 = vmatpush1.xpose.msra.mxu0 0.0
    %1882 = vmatprep.subr.mxu0 0.0
    %1883 = vmatpush1.xpose.msra.mxu0 0.0
    %1884 = vmatprep.subr.mxu0 0.0
    %1885 = vmatpush1.xpose.msra.mxu0 0.0
    %1886 = vmatprep.subr.mxu0 0.0
    %1887 = vmatpush1.xpose.msra.mxu0 0.0
    %1888 = vmatprep.subr.mxu0 0.0
    %1889 = vmatpush1.xpose.msra.mxu0 0.0
    %1890 = vmatprep.subr.mxu0 0.0
    %1891 = vmatpush1.xpose.msra.mxu0 0.0
    %1892 = vmatprep.subr.mxu0 0.0
    %1893 = vmatpush1.xpose.msra.mxu0 0.0
    %1894 = vmatprep.subr.mxu0 0.0
    %1895 = vmatpush1.xpose.msra.mxu0 0.0
    %1896 = vmatprep.subr.mxu0 0.0
    %1897 = vmatpush1.xpose.msra.mxu0 0.0
    %1898 = vmatprep.subr.mxu0 0.0
    %1899 = vmatpush1.xpose.msra.mxu0 0.0
    %1900 = vmatprep.subr.mxu0 0.0
    %1901 = vmatpush1.xpose.msra.mxu0 0.0
    %1902 = vmatprep.subr.mxu0 0.0
    %1903 = vmatpush1.xpose.msra.mxu0 0.0
    %1904 = vmatprep.mubr.f32.mxu0 0.0
    %1905 = vmatmul.mubr.f32.gmra.mrb[0].mxu0 %v1835
    %v1906 = vpop.f32.mrb[0].mxu0
    %v1907 = vadd.f32 0.0, %v1906
    %v1908 = vpop.f32.mrb[0].mxu0
    %1909 = vdwg.mxu0
    %v1910 = vsel %vm1364, %v1907, -inf
    %1911 = vmax.xlane.f32.xlu0 %v1910
    %v1912 = vpop.xlane.xlu0 %1911
    %v1913 = vsub.f32 %v1907, %v1912
    %v1914 = vmul.f32 %v1913, 1.442695
    %v1915 = vpow.pop %v1914
    %v1916 = vsel %vm1364, %v1915, 0.0
    %1917 = vadd.xlane.f32.xlu0 %v1916
    %v1918 = vpop.xlane.xlu0 %1917
    %v1919 = vrcp.pop %v1918
    %v1920 = vmul.f32 %v1915, %v1919
    %v1922 = vsel %vm1364, %v1920, 0
    %1924 = vmatprep.subr.mxu0 0.0
    %1925 = vmatpush1.msra.mxu0 %v822
    %1926 = vmatprep.subr.mxu0 0.0
    %1927 = vmatpush1.msra.mxu0 0.0
    %1928 = vmatprep.subr.mxu0 0.0
    %1929 = vmatpush1.msra.mxu0 0.0
    %1930 = vmatprep.subr.mxu0 0.0
    %1931 = vmatpush1.msra.mxu0 0.0
    %1932 = vmatprep.subr.mxu0 0.0
    %1933 = vmatpush1.msra.mxu0 0.0
    %1934 = vmatprep.subr.mxu0 0.0
    %1935 = vmatpush1.msra.mxu0 0.0
    %1936 = vmatprep.subr.mxu0 0.0
    %1937 = vmatpush1.msra.mxu0 0.0
    %1938 = vmatprep.subr.mxu0 0.0
    %1939 = vmatpush1.msra.mxu0 0.0
    %1940 = vmatprep.subr.mxu0 0.0
    %1941 = vmatpush1.msra.mxu0 0.0
    %1942 = vmatprep.subr.mxu0 0.0
    %1943 = vmatpush1.msra.mxu0 0.0
    %1944 = vmatprep.subr.mxu0 0.0
    %1945 = vmatpush1.msra.mxu0 0.0
    %1946 = vmatprep.subr.mxu0 0.0
    %1947 = vmatpush1.msra.mxu0 0.0
    %1948 = vmatprep.subr.mxu0 0.0
    %1949 = vmatpush1.msra.mxu0 0.0
    %1950 = vmatprep.subr.mxu0 0.0
    %1951 = vmatpush1.msra.mxu0 0.0
    %1952 = vmatprep.subr.mxu0 0.0
    %1953 = vmatpush1.msra.mxu0 0.0
    %1954 = vmatprep.subr.mxu0 0.0
    %1955 = vmatpush1.msra.mxu0 0.0
    %1956 = vmatprep.subr.mxu0 0.0
    %1957 = vmatpush1.msra.mxu0 0.0
    %1958 = vmatprep.subr.mxu0 0.0
    %1959 = vmatpush1.msra.mxu0 0.0
    %1960 = vmatprep.subr.mxu0 0.0
    %1961 = vmatpush1.msra.mxu0 0.0
    %1962 = vmatprep.subr.mxu0 0.0
    %1963 = vmatpush1.msra.mxu0 0.0
    %1964 = vmatprep.subr.mxu0 0.0
    %1965 = vmatpush1.msra.mxu0 0.0
    %1966 = vmatprep.subr.mxu0 0.0
    %1967 = vmatpush1.msra.mxu0 0.0
    %1968 = vmatprep.subr.mxu0 0.0
    %1969 = vmatpush1.msra.mxu0 0.0
    %1970 = vmatprep.subr.mxu0 0.0
    %1971 = vmatpush1.msra.mxu0 0.0
    %1972 = vmatprep.subr.mxu0 0.0
    %1973 = vmatpush1.msra.mxu0 0.0
    %1974 = vmatprep.subr.mxu0 0.0
    %1975 = vmatpush1.msra.mxu0 0.0
    %1976 = vmatprep.subr.mxu0 0.0
    %1977 = vmatpush1.msra.mxu0 0.0
    %1978 = vmatprep.subr.mxu0 0.0
    %1979 = vmatpush1.msra.mxu0 0.0
    %1980 = vmatprep.subr.mxu0 0.0
    %1981 = vmatpush1.msra.mxu0 0.0
    %1982 = vmatprep.subr.mxu0 0.0
    %1983 = vmatpush1.msra.mxu0 0.0
    %1984 = vmatprep.subr.mxu0 0.0
    %1985 = vmatpush1.msra.mxu0 0.0
    %1986 = vmatprep.subr.mxu0 0.0
    %1987 = vmatpush1.msra.mxu0 0.0
    %1988 = vmatprep.mubr.f32.mxu0 0.0
    %1989 = vmatmul.mubr.f32.gmra.mrb[0].mxu0 %v1922
    %v1990 = vpop.f32.mrb[0].mxu0
    %v1991 = vadd.f32 0.0, %v1990
    %v1992 = vpop.f32.mrb[0].mxu0
    %1993 = vdwg.mxu0
    %s1994 = scalar_lea.vmem %s3, 16
    %v1995 = vld [vmem:[%s1994] sm:$0xff]
    %v1997 = vsel %vm1364, %v1991, 0
    %1999 = vmatprep.subr.mxu0 0.0
    %2000 = vmatpush1.msra.mxu0 %v1995
    %2001 = vmatprep.subr.mxu0 0.0
    %2002 = vmatpush1.msra.mxu0 0.0
    %2003 = vmatprep.subr.mxu0 0.0
    %2004 = vmatpush1.msra.mxu0 0.0
    %2005 = vmatprep.subr.mxu0 0.0
    %2006 = vmatpush1.msra.mxu0 0.0
    %2007 = vmatprep.subr.mxu0 0.0
    %2008 = vmatpush1.msra.mxu0 0.0
    %2009 = vmatprep.subr.mxu0 0.0
    %2010 = vmatpush1.msra.mxu0 0.0
    %2011 = vmatprep.subr.mxu0 0.0
    %2012 = vmatpush1.msra.mxu0 0.0
    %2013 = vmatprep.subr.mxu0 0.0
    %2014 = vmatpush1.msra.mxu0 0.0
    %2015 = vmatprep.subr.mxu0 0.0
    %2016 = vmatpush1.msra.mxu0 0.0
    %2017 = vmatprep.subr.mxu0 0.0
    %2018 = vmatpush1.msra.mxu0 0.0
    %2019 = vmatprep.subr.mxu0 0.0
    %2020 = vmatpush1.msra.mxu0 0.0
    %2021 = vmatprep.subr.mxu0 0.0
    %2022 = vmatpush1.msra.mxu0 0.0
    %2023 = vmatprep.subr.mxu0 0.0
    %2024 = vmatpush1.msra.mxu0 0.0
    %2025 = vmatprep.subr.mxu0 0.0
    %2026 = vmatpush1.msra.mxu0 0.0
    %2027 = vmatprep.subr.mxu0 0.0
    %2028 = vmatpush1.msra.mxu0 0.0
    %2029 = vmatprep.subr.mxu0 0.0
    %2030 = vmatpush1.msra.mxu0 0.0
    %2031 = vmatprep.subr.mxu0 0.0
    %2032 = vmatpush1.msra.mxu0 0.0
    %2033 = vmatprep.subr.mxu0 0.0
    %2034 = vmatpush1.msra.mxu0 0.0
    %2035 = vmatprep.subr.mxu0 0.0
    %2036 = vmatpush1.msra.mxu0 0.0
    %2037 = vmatprep.subr.mxu0 0.0
    %2038 = vmatpush1.msra.mxu0 0.0
    %2039 = vmatprep.subr.mxu0 0.0
    %2040 = vmatpush1.msra.mxu0 0.0
    %2041 = vmatprep.subr.mxu0 0.0
    %2042 = vmatpush1.msra.mxu0 0.0
    %2043 = vmatprep.subr.mxu0 0.0
    %2044 = vmatpush1.msra.mxu0 0.0
    %2045 = vmatprep.subr.mxu0 0.0
    %2046 = vmatpush1.msra.mxu0 0.0
    %2047 = vmatprep.subr.mxu0 0.0
    %2048 = vmatpush1.msra.mxu0 0.0
    %2049 = vmatprep.subr.mxu0 0.0
    %2050 = vmatpush1.msra.mxu0 0.0
    %2051 = vmatprep.subr.mxu0 0.0
    %2052 = vmatpush1.msra.mxu0 0.0
    %2053 = vmatprep.subr.mxu0 0.0
    %2054 = vmatpush1.msra.mxu0 0.0
    %2055 = vmatprep.subr.mxu0 0.0
    %2056 = vmatpush1.msra.mxu0 0.0
    %2057 = vmatprep.subr.mxu0 0.0
    %2058 = vmatpush1.msra.mxu0 0.0
    %2059 = vmatprep.subr.mxu0 0.0
    %2060 = vmatpush1.msra.mxu0 0.0
    %2061 = vmatprep.subr.mxu0 0.0
    %2062 = vmatpush1.msra.mxu0 0.0
    %2063 = vmatprep.mubr.f32.mxu0 0.0
    %2064 = vmatmul.mubr.f32.gmra.mrb[0].mxu0 %v1997
    %v2065 = vpop.f32.mrb[0].mxu0
    %v2066 = vadd.f32 0.0, %v2065
    %v2067 = vpop.f32.mrb[0].mxu0
    %2068 = vdwg.mxu0
    %v2069 = vadd.f32 %v1831, %v2066
    %v2071 = vsel %vm1364, %v911, 0
    %v2074 = vsel %vm1364, %v1000, 0
    %2076 = vmatprep.subr.mxu0 0.0
    %2077 = vmatpush1.xpose.msra.mxu0 %v2074
    %2078 = vmatprep.subr.mxu0 0.0
    %2079 = vmatpush1.xpose.msra.mxu0 0.0
    %2080 = vmatprep.subr.mxu0 0.0
    %2081 = vmatpush1.xpose.msra.mxu0 0.0
    %2082 = vmatprep.subr.mxu0 0.0
    %2083 = vmatpush1.xpose.msra.mxu0 0.0
    %2084 = vmatprep.subr.mxu0 0.0
    %2085 = vmatpush1.xpose.msra.mxu0 0.0
    %2086 = vmatprep.subr.mxu0 0.0
    %2087 = vmatpush1.xpose.msra.mxu0 0.0
    %2088 = vmatprep.subr.mxu0 0.0
    %2089 = vmatpush1.xpose.msra.mxu0 0.0
    %2090 = vmatprep.subr.mxu0 0.0
    %2091 = vmatpush1.xpose.msra.mxu0 0.0
    %2092 = vmatprep.subr.mxu0 0.0
    %2093 = vmatpush1.xpose.msra.mxu0 0.0
    %2094 = vmatprep.subr.mxu0 0.0
    %2095 = vmatpush1.xpose.msra.mxu0 0.0
    %2096 = vmatprep.subr.mxu0 0.0
    %2097 = vmatpush1.xpose.msra.mxu0 0.0
    %2098 = vmatprep.subr.mxu0 0.0
    %2099 = vmatpush1.xpose.msra.mxu0 0.0
    %2100 = vmatprep.subr.mxu0 0.0
    %2101 = vmatpush1.xpose.msra.mxu0 0.0
    %2102 = vmatprep.subr.mxu0 0.0
    %2103 = vmatpush1.xpose.msra.mxu0 0.0
    %2104 = vmatprep.subr.mxu0 0.0
    %2105 = vmatpush1.xpose.msra.mxu0 0.0
    %2106 = vmatprep.subr.mxu0 0.0
    %2107 = vmatpush1.xpose.msra.mxu0 0.0
    %2108 = vmatprep.subr.mxu0 0.0
    %2109 = vmatpush1.xpose.msra.mxu0 0.0
    %2110 = vmatprep.subr.mxu0 0.0
    %2111 = vmatpush1.xpose.msra.mxu0 0.0
    %2112 = vmatprep.subr.mxu0 0.0
    %2113 = vmatpush1.xpose.msra.mxu0 0.0
    %2114 = vmatprep.subr.mxu0 0.0
    %2115 = vmatpush1.xpose.msra.mxu0 0.0
    %2116 = vmatprep.subr.mxu0 0.0
    %2117 = vmatpush1.xpose.msra.mxu0 0.0
    %2118 = vmatprep.subr.mxu0 0.0
    %2119 = vmatpush1.xpose.msra.mxu0 0.0
    %2120 = vmatprep.subr.mxu0 0.0
    %2121 = vmatpush1.xpose.msra.mxu0 0.0
    %2122 = vmatprep.subr.mxu0 0.0
    %2123 = vmatpush1.xpose.msra.mxu0 0.0
    %2124 = vmatprep.subr.mxu0 0.0
    %2125 = vmatpush1.xpose.msra.mxu0 0.0
    %2126 = vmatprep.subr.mxu0 0.0
    %2127 = vmatpush1.xpose.msra.mxu0 0.0
    %2128 = vmatprep.subr.mxu0 0.0
    %2129 = vmatpush1.xpose.msra.mxu0 0.0
    %2130 = vmatprep.subr.mxu0 0.0
    %2131 = vmatpush1.xpose.msra.mxu0 0.0
    %2132 = vmatprep.subr.mxu0 0.0
    %2133 = vmatpush1.xpose.msra.mxu0 0.0
    %2134 = vmatprep.subr.mxu0 0.0
    %2135 = vmatpush1.xpose.msra.mxu0 0.0
    %2136 = vmatprep.subr.mxu0 0.0
    %2137 = vmatpush1.xpose.msra.mxu0 0.0
    %2138 = vmatprep.subr.mxu0 0.0
    %2139 = vmatpush1.xpose.msra.mxu0 0.0
    %2140 = vmatprep.mubr.f32.mxu0 0.0
    %2141 = vmatmul.mubr.f32.gmra.mrb[0].mxu0 %v2071
    %v2142 = vpop.f32.mrb[0].mxu0
    %v2143 = vadd.f32 0.0, %v2142
    %v2144 = vpop.f32.mrb[0].mxu0
    %2145 = vdwg.mxu0
    %v2146 = vsel %vm1364, %v2143, -inf
    %2147 = vmax.xlane.f32.xlu0 %v2146
    %v2148 = vpop.xlane.xlu0 %2147
    %v2149 = vsub.f32 %v2143, %v2148
    %v2150 = vmul.f32 %v2149, 1.442695
    %v2151 = vpow.pop %v2150
    %v2152 = vsel %vm1364, %v2151, 0.0
    %2153 = vadd.xlane.f32.xlu0 %v2152
    %v2154 = vpop.xlane.xlu0 %2153
    %v2155 = vrcp.pop %v2154
    %v2156 = vmul.f32 %v2151, %v2155
    %v2158 = vsel %vm1364, %v2156, 0
    %2160 = vmatprep.subr.mxu0 0.0
    %2161 = vmatpush1.msra.mxu0 %v1089
    %2162 = vmatprep.subr.mxu0 0.0
    %2163 = vmatpush1.msra.mxu0 0.0
    %2164 = vmatprep.subr.mxu0 0.0
    %2165 = vmatpush1.msra.mxu0 0.0
    %2166 = vmatprep.subr.mxu0 0.0
    %2167 = vmatpush1.msra.mxu0 0.0
    %2168 = vmatprep.subr.mxu0 0.0
    %2169 = vmatpush1.msra.mxu0 0.0
    %2170 = vmatprep.subr.mxu0 0.0
    %2171 = vmatpush1.msra.mxu0 0.0
    %2172 = vmatprep.subr.mxu0 0.0
    %2173 = vmatpush1.msra.mxu0 0.0
    %2174 = vmatprep.subr.mxu0 0.0
    %2175 = vmatpush1.msra.mxu0 0.0
    %2176 = vmatprep.subr.mxu0 0.0
    %2177 = vmatpush1.msra.mxu0 0.0
    %2178 = vmatprep.subr.mxu0 0.0
    %2179 = vmatpush1.msra.mxu0 0.0
    %2180 = vmatprep.subr.mxu0 0.0
    %2181 = vmatpush1.msra.mxu0 0.0
    %2182 = vmatprep.subr.mxu0 0.0
    %2183 = vmatpush1.msra.mxu0 0.0
    %2184 = vmatprep.subr.mxu0 0.0
    %2185 = vmatpush1.msra.mxu0 0.0
    %2186 = vmatprep.subr.mxu0 0.0
    %2187 = vmatpush1.msra.mxu0 0.0
    %2188 = vmatprep.subr.mxu0 0.0
    %2189 = vmatpush1.msra.mxu0 0.0
    %2190 = vmatprep.subr.mxu0 0.0
    %2191 = vmatpush1.msra.mxu0 0.0
    %2192 = vmatprep.subr.mxu0 0.0
    %2193 = vmatpush1.msra.mxu0 0.0
    %2194 = vmatprep.subr.mxu0 0.0
    %2195 = vmatpush1.msra.mxu0 0.0
    %2196 = vmatprep.subr.mxu0 0.0
    %2197 = vmatpush1.msra.mxu0 0.0
    %2198 = vmatprep.subr.mxu0 0.0
    %2199 = vmatpush1.msra.mxu0 0.0
    %2200 = vmatprep.subr.mxu0 0.0
    %2201 = vmatpush1.msra.mxu0 0.0
    %2202 = vmatprep.subr.mxu0 0.0
    %2203 = vmatpush1.msra.mxu0 0.0
    %2204 = vmatprep.subr.mxu0 0.0
    %2205 = vmatpush1.msra.mxu0 0.0
    %2206 = vmatprep.subr.mxu0 0.0
    %2207 = vmatpush1.msra.mxu0 0.0
    %2208 = vmatprep.subr.mxu0 0.0
    %2209 = vmatpush1.msra.mxu0 0.0
    %2210 = vmatprep.subr.mxu0 0.0
    %2211 = vmatpush1.msra.mxu0 0.0
    %2212 = vmatprep.subr.mxu0 0.0
    %2213 = vmatpush1.msra.mxu0 0.0
    %2214 = vmatprep.subr.mxu0 0.0
    %2215 = vmatpush1.msra.mxu0 0.0
    %2216 = vmatprep.subr.mxu0 0.0
    %2217 = vmatpush1.msra.mxu0 0.0
    %2218 = vmatprep.subr.mxu0 0.0
    %2219 = vmatpush1.msra.mxu0 0.0
    %2220 = vmatprep.subr.mxu0 0.0
    %2221 = vmatpush1.msra.mxu0 0.0
    %2222 = vmatprep.subr.mxu0 0.0
    %2223 = vmatpush1.msra.mxu0 0.0
    %2224 = vmatprep.mubr.f32.mxu0 0.0
    %2225 = vmatmul.mubr.f32.gmra.mrb[0].mxu0 %v2158
    %v2226 = vpop.f32.mrb[0].mxu0
    %v2227 = vadd.f32 0.0, %v2226
    %v2228 = vpop.f32.mrb[0].mxu0
    %2229 = vdwg.mxu0
    %s2230 = scalar_lea.vmem %s3, 24
    %v2231 = vld [vmem:[%s2230] sm:$0xff]
    %v2233 = vsel %vm1364, %v2227, 0
    %2235 = vmatprep.subr.mxu0 0.0
    %2236 = vmatpush1.msra.mxu0 %v2231
    %2237 = vmatprep.subr.mxu0 0.0
    %2238 = vmatpush1.msra.mxu0 0.0
    %2239 = vmatprep.subr.mxu0 0.0
    %2240 = vmatpush1.msra.mxu0 0.0
    %2241 = vmatprep.subr.mxu0 0.0
    %2242 = vmatpush1.msra.mxu0 0.0
    %2243 = vmatprep.subr.mxu0 0.0
    %2244 = vmatpush1.msra.mxu0 0.0
    %2245 = vmatprep.subr.mxu0 0.0
    %2246 = vmatpush1.msra.mxu0 0.0
    %2247 = vmatprep.subr.mxu0 0.0
    %2248 = vmatpush1.msra.mxu0 0.0
    %2249 = vmatprep.subr.mxu0 0.0
    %2250 = vmatpush1.msra.mxu0 0.0
    %2251 = vmatprep.subr.mxu0 0.0
    %2252 = vmatpush1.msra.mxu0 0.0
    %2253 = vmatprep.subr.mxu0 0.0
    %2254 = vmatpush1.msra.mxu0 0.0
    %2255 = vmatprep.subr.mxu0 0.0
    %2256 = vmatpush1.msra.mxu0 0.0
    %2257 = vmatprep.subr.mxu0 0.0
    %2258 = vmatpush1.msra.mxu0 0.0
    %2259 = vmatprep.subr.mxu0 0.0
    %2260 = vmatpush1.msra.mxu0 0.0
    %2261 = vmatprep.subr.mxu0 0.0
    %2262 = vmatpush1.msra.mxu0 0.0
    %2263 = vmatprep.subr.mxu0 0.0
    %2264 = vmatpush1.msra.mxu0 0.0
    %2265 = vmatprep.subr.mxu0 0.0
    %2266 = vmatpush1.msra.mxu0 0.0
    %2267 = vmatprep.subr.mxu0 0.0
    %2268 = vmatpush1.msra.mxu0 0.0
    %2269 = vmatprep.subr.mxu0 0.0
    %2270 = vmatpush1.msra.mxu0 0.0
    %2271 = vmatprep.subr.mxu0 0.0
    %2272 = vmatpush1.msra.mxu0 0.0
    %2273 = vmatprep.subr.mxu0 0.0
    %2274 = vmatpush1.msra.mxu0 0.0
    %2275 = vmatprep.subr.mxu0 0.0
    %2276 = vmatpush1.msra.mxu0 0.0
    %2277 = vmatprep.subr.mxu0 0.0
    %2278 = vmatpush1.msra.mxu0 0.0
    %2279 = vmatprep.subr.mxu0 0.0
    %2280 = vmatpush1.msra.mxu0 0.0
    %2281 = vmatprep.subr.mxu0 0.0
    %2282 = vmatpush1.msra.mxu0 0.0
    %2283 = vmatprep.subr.mxu0 0.0
    %2284 = vmatpush1.msra.mxu0 0.0
    %2285 = vmatprep.subr.mxu0 0.0
    %2286 = vmatpush1.msra.mxu0 0.0
    %2287 = vmatprep.subr.mxu0 0.0
    %2288 = vmatpush1.msra.mxu0 0.0
    %2289 = vmatprep.subr.mxu0 0.0
    %2290 = vmatpush1.msra.mxu0 0.0
    %2291 = vmatprep.subr.mxu0 0.0
    %2292 = vmatpush1.msra.mxu0 0.0
    %2293 = vmatprep.subr.mxu0 0.0
    %2294 = vmatpush1.msra.mxu0 0.0
    %2295 = vmatprep.subr.mxu0 0.0
    %2296 = vmatpush1.msra.mxu0 0.0
    %2297 = vmatprep.subr.mxu0 0.0
    %2298 = vmatpush1.msra.mxu0 0.0
    %2299 = vmatprep.mubr.f32.mxu0 0.0
    %2300 = vmatmul.mubr.f32.gmra.mrb[0].mxu0 %v2233
    %v2301 = vpop.f32.mrb[0].mxu0
    %v2302 = vadd.f32 0.0, %v2301
    %v2303 = vpop.f32.mrb[0].mxu0
    %2304 = vdwg.mxu0
    %v2305 = vadd.f32 %v2069, %v2302
    %v2307 = vsel %vm1364, %v1178, 0
    %v2310 = vsel %vm1364, %v1267, 0
    %2312 = vmatprep.subr.mxu0 0.0
    %2313 = vmatpush1.xpose.msra.mxu0 %v2310
    %2314 = vmatprep.subr.mxu0 0.0
    %2315 = vmatpush1.xpose.msra.mxu0 0.0
    %2316 = vmatprep.subr.mxu0 0.0
    %2317 = vmatpush1.xpose.msra.mxu0 0.0
    %2318 = vmatprep.subr.mxu0 0.0
    %2319 = vmatpush1.xpose.msra.mxu0 0.0
    %2320 = vmatprep.subr.mxu0 0.0
    %2321 = vmatpush1.xpose.msra.mxu0 0.0
    %2322 = vmatprep.subr.mxu0 0.0
    %2323 = vmatpush1.xpose.msra.mxu0 0.0
    %2324 = vmatprep.subr.mxu0 0.0
    %2325 = vmatpush1.xpose.msra.mxu0 0.0
    %2326 = vmatprep.subr.mxu0 0.0
    %2327 = vmatpush1.xpose.msra.mxu0 0.0
    %2328 = vmatprep.subr.mxu0 0.0
    %2329 = vmatpush1.xpose.msra.mxu0 0.0
    %2330 = vmatprep.subr.mxu0 0.0
    %2331 = vmatpush1.xpose.msra.mxu0 0.0
    %2332 = vmatprep.subr.mxu0 0.0
    %2333 = vmatpush1.xpose.msra.mxu0 0.0
    %2334 = vmatprep.subr.mxu0 0.0
    %2335 = vmatpush1.xpose.msra.mxu0 0.0
    %2336 = vmatprep.subr.mxu0 0.0
    %2337 = vmatpush1.xpose.msra.mxu0 0.0
    %2338 = vmatprep.subr.mxu0 0.0
    %2339 = vmatpush1.xpose.msra.mxu0 0.0
    %2340 = vmatprep.subr.mxu0 0.0
    %2341 = vmatpush1.xpose.msra.mxu0 0.0
    %2342 = vmatprep.subr.mxu0 0.0
    %2343 = vmatpush1.xpose.msra.mxu0 0.0
    %2344 = vmatprep.subr.mxu0 0.0
    %2345 = vmatpush1.xpose.msra.mxu0 0.0
    %2346 = vmatprep.subr.mxu0 0.0
    %2347 = vmatpush1.xpose.msra.mxu0 0.0
    %2348 = vmatprep.subr.mxu0 0.0
    %2349 = vmatpush1.xpose.msra.mxu0 0.0
    %2350 = vmatprep.subr.mxu0 0.0
    %2351 = vmatpush1.xpose.msra.mxu0 0.0
    %2352 = vmatprep.subr.mxu0 0.0
    %2353 = vmatpush1.xpose.msra.mxu0 0.0
    %2354 = vmatprep.subr.mxu0 0.0
    %2355 = vmatpush1.xpose.msra.mxu0 0.0
    %2356 = vmatprep.subr.mxu0 0.0
    %2357 = vmatpush1.xpose.msra.mxu0 0.0
    %2358 = vmatprep.subr.mxu0 0.0
    %2359 = vmatpush1.xpose.msra.mxu0 0.0
    %2360 = vmatprep.subr.mxu0 0.0
    %2361 = vmatpush1.xpose.msra.mxu0 0.0
    %2362 = vmatprep.subr.mxu0 0.0
    %2363 = vmatpush1.xpose.msra.mxu0 0.0
    %2364 = vmatprep.subr.mxu0 0.0
    %2365 = vmatpush1.xpose.msra.mxu0 0.0
    %2366 = vmatprep.subr.mxu0 0.0
    %2367 = vmatpush1.xpose.msra.mxu0 0.0
    %2368 = vmatprep.subr.mxu0 0.0
    %2369 = vmatpush1.xpose.msra.mxu0 0.0
    %2370 = vmatprep.subr.mxu0 0.0
    %2371 = vmatpush1.xpose.msra.mxu0 0.0
    %2372 = vmatprep.subr.mxu0 0.0
    %2373 = vmatpush1.xpose.msra.mxu0 0.0
    %2374 = vmatprep.subr.mxu0 0.0
    %2375 = vmatpush1.xpose.msra.mxu0 0.0
    %2376 = vmatprep.mubr.f32.mxu0 0.0
    %2377 = vmatmul.mubr.f32.gmra.mrb[0].mxu0 %v2307
    %v2378 = vpop.f32.mrb[0].mxu0
    %v2379 = vadd.f32 0.0, %v2378
    %v2380 = vpop.f32.mrb[0].mxu0
    %2381 = vdwg.mxu0
    %v2382 = vsel %vm1364, %v2379, -inf
    %2383 = vmax.xlane.f32.xlu0 %v2382
    %v2384 = vpop.xlane.xlu0 %2383
    %v2385 = vsub.f32 %v2379, %v2384
    %v2386 = vmul.f32 %v2385, 1.442695
    %v2387 = vpow.pop %v2386
    %v2388 = vsel %vm1364, %v2387, 0.0
    %2389 = vadd.xlane.f32.xlu0 %v2388
    %v2390 = vpop.xlane.xlu0 %2389
    %v2391 = vrcp.pop %v2390
    %v2392 = vmul.f32 %v2387, %v2391
    %v2394 = vsel %vm1364, %v2392, 0
    %2396 = vmatprep.subr.mxu0 0.0
    %2397 = vmatpush1.msra.mxu0 %v1356
    %2398 = vmatprep.subr.mxu0 0.0
    %2399 = vmatpush1.msra.mxu0 0.0
    %2400 = vmatprep.subr.mxu0 0.0
    %2401 = vmatpush1.msra.mxu0 0.0
    %2402 = vmatprep.subr.mxu0 0.0
    %2403 = vmatpush1.msra.mxu0 0.0
    %2404 = vmatprep.subr.mxu0 0.0
    %2405 = vmatpush1.msra.mxu0 0.0
    %2406 = vmatprep.subr.mxu0 0.0
    %2407 = vmatpush1.msra.mxu0 0.0
    %2408 = vmatprep.subr.mxu0 0.0
    %2409 = vmatpush1.msra.mxu0 0.0
    %2410 = vmatprep.subr.mxu0 0.0
    %2411 = vmatpush1.msra.mxu0 0.0
    %2412 = vmatprep.subr.mxu0 0.0
    %2413 = vmatpush1.msra.mxu0 0.0
    %2414 = vmatprep.subr.mxu0 0.0
    %2415 = vmatpush1.msra.mxu0 0.0
    %2416 = vmatprep.subr.mxu0 0.0
    %2417 = vmatpush1.msra.mxu0 0.0
    %2418 = vmatprep.subr.mxu0 0.0
    %2419 = vmatpush1.msra.mxu0 0.0
    %2420 = vmatprep.subr.mxu0 0.0
    %2421 = vmatpush1.msra.mxu0 0.0
    %2422 = vmatprep.subr.mxu0 0.0
    %2423 = vmatpush1.msra.mxu0 0.0
    %2424 = vmatprep.subr.mxu0 0.0
    %2425 = vmatpush1.msra.mxu0 0.0
    %2426 = vmatprep.subr.mxu0 0.0
    %2427 = vmatpush1.msra.mxu0 0.0
    %2428 = vmatprep.subr.mxu0 0.0
    %2429 = vmatpush1.msra.mxu0 0.0
    %2430 = vmatprep.subr.mxu0 0.0
    %2431 = vmatpush1.msra.mxu0 0.0
    %2432 = vmatprep.subr.mxu0 0.0
    %2433 = vmatpush1.msra.mxu0 0.0
    %2434 = vmatprep.subr.mxu0 0.0
    %2435 = vmatpush1.msra.mxu0 0.0
    %2436 = vmatprep.subr.mxu0 0.0
    %2437 = vmatpush1.msra.mxu0 0.0
    %2438 = vmatprep.subr.mxu0 0.0
    %2439 = vmatpush1.msra.mxu0 0.0
    %2440 = vmatprep.subr.mxu0 0.0
    %2441 = vmatpush1.msra.mxu0 0.0
    %2442 = vmatprep.subr.mxu0 0.0
    %2443 = vmatpush1.msra.mxu0 0.0
    %2444 = vmatprep.subr.mxu0 0.0
    %2445 = vmatpush1.msra.mxu0 0.0
    %2446 = vmatprep.subr.mxu0 0.0
    %2447 = vmatpush1.msra.mxu0 0.0
    %2448 = vmatprep.subr.mxu0 0.0
    %2449 = vmatpush1.msra.mxu0 0.0
    %2450 = vmatprep.subr.mxu0 0.0
    %2451 = vmatpush1.msra.mxu0 0.0
    %2452 = vmatprep.subr.mxu0 0.0
    %2453 = vmatpush1.msra.mxu0 0.0
    %2454 = vmatprep.subr.mxu0 0.0
    %2455 = vmatpush1.msra.mxu0 0.0
    %2456 = vmatprep.subr.mxu0 0.0
    %2457 = vmatpush1.msra.mxu0 0.0
    %2458 = vmatprep.subr.mxu0 0.0
    %2459 = vmatpush1.msra.mxu0 0.0
    %2460 = vmatprep.mubr.f32.mxu0 0.0
    %2461 = vmatmul.mubr.f32.gmra.mrb[0].mxu0 %v2394
    %v2462 = vpop.f32.mrb[0].mxu0
    %v2463 = vadd.f32 0.0, %v2462
    %v2464 = vpop.f32.mrb[0].mxu0
    %2465 = vdwg.mxu0
    %s2466 = scalar_lea.vmem %s3, 32
    %v2467 = vld [vmem:[%s2466] sm:$0xff]
    %v2469 = vsel %vm1364, %v2463, 0
    %2471 = vmatprep.subr.mxu0 0.0
    %2472 = vmatpush1.msra.mxu0 %v2467
    %2473 = vmatprep.subr.mxu0 0.0
    %2474 = vmatpush1.msra.mxu0 0.0
    %2475 = vmatprep.subr.mxu0 0.0
    %2476 = vmatpush1.msra.mxu0 0.0
    %2477 = vmatprep.subr.mxu0 0.0
    %2478 = vmatpush1.msra.mxu0 0.0
    %2479 = vmatprep.subr.mxu0 0.0
    %2480 = vmatpush1.msra.mxu0 0.0
    %2481 = vmatprep.subr.mxu0 0.0
    %2482 = vmatpush1.msra.mxu0 0.0
    %2483 = vmatprep.subr.mxu0 0.0
    %2484 = vmatpush1.msra.mxu0 0.0
    %2485 = vmatprep.subr.mxu0 0.0
    %2486 = vmatpush1.msra.mxu0 0.0
    %2487 = vmatprep.subr.mxu0 0.0
    %2488 = vmatpush1.msra.mxu0 0.0
    %2489 = vmatprep.subr.mxu0 0.0
    %2490 = vmatpush1.msra.mxu0 0.0
    %2491 = vmatprep.subr.mxu0 0.0
    %2492 = vmatpush1.msra.mxu0 0.0
    %2493 = vmatprep.subr.mxu0 0.0
    %2494 = vmatpush1.msra.mxu0 0.0
    %2495 = vmatprep.subr.mxu0 0.0
    %2496 = vmatpush1.msra.mxu0 0.0
    %2497 = vmatprep.subr.mxu0 0.0
    %2498 = vmatpush1.msra.mxu0 0.0
    %2499 = vmatprep.subr.mxu0 0.0
    %2500 = vmatpush1.msra.mxu0 0.0
    %2501 = vmatprep.subr.mxu0 0.0
    %2502 = vmatpush1.msra.mxu0 0.0
    %2503 = vmatprep.subr.mxu0 0.0
    %2504 = vmatpush1.msra.mxu0 0.0
    %2505 = vmatprep.subr.mxu0 0.0
    %2506 = vmatpush1.msra.mxu0 0.0
    %2507 = vmatprep.subr.mxu0 0.0
    %2508 = vmatpush1.msra.mxu0 0.0
    %2509 = vmatprep.subr.mxu0 0.0
    %2510 = vmatpush1.msra.mxu0 0.0
    %2511 = vmatprep.subr.mxu0 0.0
    %2512 = vmatpush1.msra.mxu0 0.0
    %2513 = vmatprep.subr.mxu0 0.0
    %2514 = vmatpush1.msra.mxu0 0.0
    %2515 = vmatprep.subr.mxu0 0.0
    %2516 = vmatpush1.msra.mxu0 0.0
    %2517 = vmatprep.subr.mxu0 0.0
    %2518 = vmatpush1.msra.mxu0 0.0
    %2519 = vmatprep.subr.mxu0 0.0
    %2520 = vmatpush1.msra.mxu0 0.0
    %2521 = vmatprep.subr.mxu0 0.0
    %2522 = vmatpush1.msra.mxu0 0.0
    %2523 = vmatprep.subr.mxu0 0.0
    %2524 = vmatpush1.msra.mxu0 0.0
    %2525 = vmatprep.subr.mxu0 0.0
    %2526 = vmatpush1.msra.mxu0 0.0
    %2527 = vmatprep.subr.mxu0 0.0
    %2528 = vmatpush1.msra.mxu0 0.0
    %2529 = vmatprep.subr.mxu0 0.0
    %2530 = vmatpush1.msra.mxu0 0.0
    %2531 = vmatprep.subr.mxu0 0.0
    %2532 = vmatpush1.msra.mxu0 0.0
    %2533 = vmatprep.subr.mxu0 0.0
    %2534 = vmatpush1.msra.mxu0 0.0
    %2535 = vmatprep.mubr.f32.mxu0 0.0
    %2536 = vmatmul.mubr.f32.gmra.mrb[0].mxu0 %v2469
    %v2537 = vpop.f32.mrb[0].mxu0
    %v2538 = vadd.f32 0.0, %v2537
    %v2539 = vpop.f32.mrb[0].mxu0
    %2540 = vdwg.mxu0
    %v2541 = vadd.f32 %v2305, %v2538
    %v2543 = vlaneseq
    %v2544 = vshrl.u32 %v2543, 7
    %v2545 = vsub.s32 0, %v2544
    %v2546 = vrot.slane %v23, %v2545
    %v2548 = vadd.f32 %v2541, %v2546
    %2549 = vst.msk [vmem:[#allocation2] sm:$0xff] %vm36, %v2548
    %v2551 = vsel %vm1364, %v115, 0
    %v2554 = vsel %vm1364, %v204, 0
    %2556 = vmatprep.subr.mxu0 0.0
    %2557 = vmatpush1.xpose.msra.mxu0 %v2554
    %2558 = vmatprep.subr.mxu0 0.0
    %2559 = vmatpush1.xpose.msra.mxu0 0.0
    %2560 = vmatprep.subr.mxu0 0.0
    %2561 = vmatpush1.xpose.msra.mxu0 0.0
    %2562 = vmatprep.subr.mxu0 0.0
    %2563 = vmatpush1.xpose.msra.mxu0 0.0
    %2564 = vmatprep.subr.mxu0 0.0
    %2565 = vmatpush1.xpose.msra.mxu0 0.0
    %2566 = vmatprep.subr.mxu0 0.0
    %2567 = vmatpush1.xpose.msra.mxu0 0.0
    %2568 = vmatprep.subr.mxu0 0.0
    %2569 = vmatpush1.xpose.msra.mxu0 0.0
    %2570 = vmatprep.subr.mxu0 0.0
    %2571 = vmatpush1.xpose.msra.mxu0 0.0
    %2572 = vmatprep.subr.mxu0 0.0
    %2573 = vmatpush1.xpose.msra.mxu0 0.0
    %2574 = vmatprep.subr.mxu0 0.0
    %2575 = vmatpush1.xpose.msra.mxu0 0.0
    %2576 = vmatprep.subr.mxu0 0.0
    %2577 = vmatpush1.xpose.msra.mxu0 0.0
    %2578 = vmatprep.subr.mxu0 0.0
    %2579 = vmatpush1.xpose.msra.mxu0 0.0
    %2580 = vmatprep.subr.mxu0 0.0
    %2581 = vmatpush1.xpose.msra.mxu0 0.0
    %2582 = vmatprep.subr.mxu0 0.0
    %2583 = vmatpush1.xpose.msra.mxu0 0.0
    %2584 = vmatprep.subr.mxu0 0.0
    %2585 = vmatpush1.xpose.msra.mxu0 0.0
    %2586 = vmatprep.subr.mxu0 0.0
    %2587 = vmatpush1.xpose.msra.mxu0 0.0
    %2588 = vmatprep.subr.mxu0 0.0
    %2589 = vmatpush1.xpose.msra.mxu0 0.0
    %2590 = vmatprep.subr.mxu0 0.0
    %2591 = vmatpush1.xpose.msra.mxu0 0.0
    %2592 = vmatprep.subr.mxu0 0.0
    %2593 = vmatpush1.xpose.msra.mxu0 0.0
    %2594 = vmatprep.subr.mxu0 0.0
    %2595 = vmatpush1.xpose.msra.mxu0 0.0
    %2596 = vmatprep.subr.mxu0 0.0
    %2597 = vmatpush1.xpose.msra.mxu0 0.0
    %2598 = vmatprep.subr.mxu0 0.0
    %2599 = vmatpush1.xpose.msra.mxu0 0.0
    %2600 = vmatprep.subr.mxu0 0.0
    %2601 = vmatpush1.xpose.msra.mxu0 0.0
    %2602 = vmatprep.subr.mxu0 0.0
    %2603 = vmatpush1.xpose.msra.mxu0 0.0
    %2604 = vmatprep.subr.mxu0 0.0
    %2605 = vmatpush1.xpose.msra.mxu0 0.0
    %2606 = vmatprep.subr.mxu0 0.0
    %2607 = vmatpush1.xpose.msra.mxu0 0.0
    %2608 = vmatprep.subr.mxu0 0.0
    %2609 = vmatpush1.xpose.msra.mxu0 0.0
    %2610 = vmatprep.subr.mxu0 0.0
    %2611 = vmatpush1.xpose.msra.mxu0 0.0
    %2612 = vmatprep.subr.mxu0 0.0
    %2613 = vmatpush1.xpose.msra.mxu0 0.0
    %2614 = vmatprep.subr.mxu0 0.0
    %2615 = vmatpush1.xpose.msra.mxu0 0.0
    %2616 = vmatprep.subr.mxu0 0.0
    %2617 = vmatpush1.xpose.msra.mxu0 0.0
    %2618 = vmatprep.subr.mxu0 0.0
    %2619 = vmatpush1.xpose.msra.mxu0 0.0
    %2620 = vmatprep.mubr.f32.mxu0 0.0
    %2621 = vmatmul.mubr.f32.gmra.mrb[0].mxu0 %v2551
    %v2622 = vpop.f32.mrb[0].mxu0
    %v2623 = vadd.f32 0.0, %v2622
    %v2624 = vpop.f32.mrb[0].mxu0
    %2625 = vdwg.mxu0
    %v2626 = vsel %vm1364, %v2623, -inf
    %2627 = vmax.xlane.f32.xlu0 %v2626
    %v2628 = vpop.xlane.xlu0 %2627
    %v2629 = vsub.f32 %v2623, %v2628
    %v2630 = vmul.f32 %v2629, 1.442695
    %v2631 = vpow.pop %v2630
    %v2632 = vsel %vm1364, %v2631, 0.0
    %2633 = vadd.xlane.f32.xlu0 %v2632
    %v2634 = vpop.xlane.xlu0 %2633
    %v2635 = vrcp.pop %v2634
    %v2636 = vmul.f32 %v2631, %v2635
    %v2638 = vsel %vm1364, %v2636, 0
    %2640 = vmatprep.subr.mxu0 0.0
    %2641 = vmatpush1.msra.mxu0 %v293
    %2642 = vmatprep.subr.mxu0 0.0
    %2643 = vmatpush1.msra.mxu0 0.0
    %2644 = vmatprep.subr.mxu0 0.0
    %2645 = vmatpush1.msra.mxu0 0.0
    %2646 = vmatprep.subr.mxu0 0.0
    %2647 = vmatpush1.msra.mxu0 0.0
    %2648 = vmatprep.subr.mxu0 0.0
    %2649 = vmatpush1.msra.mxu0 0.0
    %2650 = vmatprep.subr.mxu0 0.0
    %2651 = vmatpush1.msra.mxu0 0.0
    %2652 = vmatprep.subr.mxu0 0.0
    %2653 = vmatpush1.msra.mxu0 0.0
    %2654 = vmatprep.subr.mxu0 0.0
    %2655 = vmatpush1.msra.mxu0 0.0
    %2656 = vmatprep.subr.mxu0 0.0
    %2657 = vmatpush1.msra.mxu0 0.0
    %2658 = vmatprep.subr.mxu0 0.0
    %2659 = vmatpush1.msra.mxu0 0.0
    %2660 = vmatprep.subr.mxu0 0.0
    %2661 = vmatpush1.msra.mxu0 0.0
    %2662 = vmatprep.subr.mxu0 0.0
    %2663 = vmatpush1.msra.mxu0 0.0
    %2664 = vmatprep.subr.mxu0 0.0
    %2665 = vmatpush1.msra.mxu0 0.0
    %2666 = vmatprep.subr.mxu0 0.0
    %2667 = vmatpush1.msra.mxu0 0.0
    %2668 = vmatprep.subr.mxu0 0.0
    %2669 = vmatpush1.msra.mxu0 0.0
    %2670 = vmatprep.subr.mxu0 0.0
    %2671 = vmatpush1.msra.mxu0 0.0
    %2672 = vmatprep.subr.mxu0 0.0
    %2673 = vmatpush1.msra.mxu0 0.0
    %2674 = vmatprep.subr.mxu0 0.0
    %2675 = vmatpush1.msra.mxu0 0.0
    %2676 = vmatprep.subr.mxu0 0.0
    %2677 = vmatpush1.msra.mxu0 0.0
    %2678 = vmatprep.subr.mxu0 0.0
    %2679 = vmatpush1.msra.mxu0 0.0
    %2680 = vmatprep.subr.mxu0 0.0
    %2681 = vmatpush1.msra.mxu0 0.0
    %2682 = vmatprep.subr.mxu0 0.0
    %2683 = vmatpush1.msra.mxu0 0.0
    %2684 = vmatprep.subr.mxu0 0.0
    %2685 = vmatpush1.msra.mxu0 0.0
    %2686 = vmatprep.subr.mxu0 0.0
    %2687 = vmatpush1.msra.mxu0 0.0
    %2688 = vmatprep.subr.mxu0 0.0
    %2689 = vmatpush1.msra.mxu0 0.0
    %2690 = vmatprep.subr.mxu0 0.0
    %2691 = vmatpush1.msra.mxu0 0.0
    %2692 = vmatprep.subr.mxu0 0.0
    %2693 = vmatpush1.msra.mxu0 0.0
    %2694 = vmatprep.subr.mxu0 0.0
    %2695 = vmatpush1.msra.mxu0 0.0
    %2696 = vmatprep.subr.mxu0 0.0
    %2697 = vmatpush1.msra.mxu0 0.0
    %2698 = vmatprep.subr.mxu0 0.0
    %2699 = vmatpush1.msra.mxu0 0.0
    %2700 = vmatprep.subr.mxu0 0.0
    %2701 = vmatpush1.msra.mxu0 0.0
    %2702 = vmatprep.subr.mxu0 0.0
    %2703 = vmatpush1.msra.mxu0 0.0
    %2704 = vmatprep.mubr.f32.mxu0 0.0
    %2705 = vmatmul.mubr.f32.gmra.mrb[0].mxu0 %v2638
    %v2706 = vpop.f32.mrb[0].mxu0
    %v2707 = vadd.f32 0.0, %v2706
    %v2708 = vpop.f32.mrb[0].mxu0
    %2709 = vdwg.mxu0
    %v2710 = vld [vmem:[%s3] sm:$0xff]
    %v2712 = vsel %vm1364, %v382, 0
    %v2715 = vsel %vm1364, %v471, 0
    %2717 = vmatprep.subr.mxu0 0.0
    %2718 = vmatpush1.xpose.msra.mxu0 %v2715
    %2719 = vmatprep.subr.mxu0 0.0
    %2720 = vmatpush1.xpose.msra.mxu0 0.0
    %2721 = vmatprep.subr.mxu0 0.0
    %2722 = vmatpush1.xpose.msra.mxu0 0.0
    %2723 = vmatprep.subr.mxu0 0.0
    %2724 = vmatpush1.xpose.msra.mxu0 0.0
    %2725 = vmatprep.subr.mxu0 0.0
    %2726 = vmatpush1.xpose.msra.mxu0 0.0
    %2727 = vmatprep.subr.mxu0 0.0
    %2728 = vmatpush1.xpose.msra.mxu0 0.0
    %2729 = vmatprep.subr.mxu0 0.0
    %2730 = vmatpush1.xpose.msra.mxu0 0.0
    %2731 = vmatprep.subr.mxu0 0.0
    %2732 = vmatpush1.xpose.msra.mxu0 0.0
    %2733 = vmatprep.subr.mxu0 0.0
    %2734 = vmatpush1.xpose.msra.mxu0 0.0
    %2735 = vmatprep.subr.mxu0 0.0
    %2736 = vmatpush1.xpose.msra.mxu0 0.0
    %2737 = vmatprep.subr.mxu0 0.0
    %2738 = vmatpush1.xpose.msra.mxu0 0.0
    %2739 = vmatprep.subr.mxu0 0.0
    %2740 = vmatpush1.xpose.msra.mxu0 0.0
    %2741 = vmatprep.subr.mxu0 0.0
    %2742 = vmatpush1.xpose.msra.mxu0 0.0
    %2743 = vmatprep.subr.mxu0 0.0
    %2744 = vmatpush1.xpose.msra.mxu0 0.0
    %2745 = vmatprep.subr.mxu0 0.0
    %2746 = vmatpush1.xpose.msra.mxu0 0.0
    %2747 = vmatprep.subr.mxu0 0.0
    %2748 = vmatpush1.xpose.msra.mxu0 0.0
    %2749 = vmatprep.subr.mxu0 0.0
    %2750 = vmatpush1.xpose.msra.mxu0 0.0
    %2751 = vmatprep.subr.mxu0 0.0
    %2752 = vmatpush1.xpose.msra.mxu0 0.0
    %2753 = vmatprep.subr.mxu0 0.0
    %2754 = vmatpush1.xpose.msra.mxu0 0.0
    %2755 = vmatprep.subr.mxu0 0.0
    %2756 = vmatpush1.xpose.msra.mxu0 0.0
    %2757 = vmatprep.subr.mxu0 0.0
    %2758 = vmatpush1.xpose.msra.mxu0 0.0
    %2759 = vmatprep.subr.mxu0 0.0
    %2760 = vmatpush1.xpose.msra.mxu0 0.0
    %2761 = vmatprep.subr.mxu0 0.0
    %2762 = vmatpush1.xpose.msra.mxu0 0.0
    %2763 = vmatprep.subr.mxu0 0.0
    %2764 = vmatpush1.xpose.msra.mxu0 0.0
    %2765 = vmatprep.subr.mxu0 0.0
    %2766 = vmatpush1.xpose.msra.mxu0 0.0
    %2767 = vmatprep.subr.mxu0 0.0
    %2768 = vmatpush1.xpose.msra.mxu0 0.0
    %2769 = vmatprep.subr.mxu0 0.0
    %2770 = vmatpush1.xpose.msra.mxu0 0.0
    %2771 = vmatprep.subr.mxu0 0.0
    %2772 = vmatpush1.xpose.msra.mxu0 0.0
    %2773 = vmatprep.subr.mxu0 0.0
    %2774 = vmatpush1.xpose.msra.mxu0 0.0
    %2775 = vmatprep.subr.mxu0 0.0
    %2776 = vmatpush1.xpose.msra.mxu0 0.0
    %2777 = vmatprep.subr.mxu0 0.0
    %2778 = vmatpush1.xpose.msra.mxu0 0.0
    %2779 = vmatprep.subr.mxu0 0.0
    %2780 = vmatpush1.xpose.msra.mxu0 0.0
    %2781 = vmatprep.mubr.f32.mxu0 0.0
    %2782 = vmatmul.mubr.f32.gmra.mrb[0].mxu0 %v2712
    %v2783 = vpop.f32.mrb[0].mxu0
    %v2784 = vadd.f32 0.0, %v2783
    %v2785 = vpop.f32.mrb[0].mxu0
    %2786 = vdwg.mxu0
    %v2787 = vsel %vm1364, %v2784, -inf
    %2788 = vmax.xlane.f32.xlu0 %v2787
    %v2789 = vpop.xlane.xlu0 %2788
    %v2790 = vsub.f32 %v2784, %v2789
    %v2791 = vmul.f32 %v2790, 1.442695
    %v2792 = vpow.pop %v2791
    %v2793 = vsel %vm1364, %v2792, 0.0
    %2794 = vadd.xlane.f32.xlu0 %v2793
    %v2795 = vpop.xlane.xlu0 %2794
    %v2796 = vrcp.pop %v2795
    %v2797 = vmul.f32 %v2792, %v2796
    %v2799 = vsel %vm1364, %v2797, 0
    %2801 = vmatprep.subr.mxu0 0.0
    %2802 = vmatpush1.msra.mxu0 %v560
    %2803 = vmatprep.subr.mxu0 0.0
    %2804 = vmatpush1.msra.mxu0 0.0
    %2805 = vmatprep.subr.mxu0 0.0
    %2806 = vmatpush1.msra.mxu0 0.0
    %2807 = vmatprep.subr.mxu0 0.0
    %2808 = vmatpush1.msra.mxu0 0.0
    %2809 = vmatprep.subr.mxu0 0.0
    %2810 = vmatpush1.msra.mxu0 0.0
    %2811 = vmatprep.subr.mxu0 0.0
    %2812 = vmatpush1.msra.mxu0 0.0
    %2813 = vmatprep.subr.mxu0 0.0
    %2814 = vmatpush1.msra.mxu0 0.0
    %2815 = vmatprep.subr.mxu0 0.0
    %2816 = vmatpush1.msra.mxu0 0.0
    %2817 = vmatprep.subr.mxu0 0.0
    %2818 = vmatpush1.msra.mxu0 0.0
    %2819 = vmatprep.subr.mxu0 0.0
    %2820 = vmatpush1.msra.mxu0 0.0
    %2821 = vmatprep.subr.mxu0 0.0
    %2822 = vmatpush1.msra.mxu0 0.0
    %2823 = vmatprep.subr.mxu0 0.0
    %2824 = vmatpush1.msra.mxu0 0.0
    %2825 = vmatprep.subr.mxu0 0.0
    %2826 = vmatpush1.msra.mxu0 0.0
    %2827 = vmatprep.subr.mxu0 0.0
    %2828 = vmatpush1.msra.mxu0 0.0
    %2829 = vmatprep.subr.mxu0 0.0
    %2830 = vmatpush1.msra.mxu0 0.0
    %2831 = vmatprep.subr.mxu0 0.0
    %2832 = vmatpush1.msra.mxu0 0.0
    %2833 = vmatprep.subr.mxu0 0.0
    %2834 = vmatpush1.msra.mxu0 0.0
    %2835 = vmatprep.subr.mxu0 0.0
    %2836 = vmatpush1.msra.mxu0 0.0
    %2837 = vmatprep.subr.mxu0 0.0
    %2838 = vmatpush1.msra.mxu0 0.0
    %2839 = vmatprep.subr.mxu0 0.0
    %2840 = vmatpush1.msra.mxu0 0.0
    %2841 = vmatprep.subr.mxu0 0.0
    %2842 = vmatpush1.msra.mxu0 0.0
    %2843 = vmatprep.subr.mxu0 0.0
    %2844 = vmatpush1.msra.mxu0 0.0
    %2845 = vmatprep.subr.mxu0 0.0
    %2846 = vmatpush1.msra.mxu0 0.0
    %2847 = vmatprep.subr.mxu0 0.0
    %2848 = vmatpush1.msra.mxu0 0.0
    %2849 = vmatprep.subr.mxu0 0.0
    %2850 = vmatpush1.msra.mxu0 0.0
    %2851 = vmatprep.subr.mxu0 0.0
    %2852 = vmatpush1.msra.mxu0 0.0
    %2853 = vmatprep.subr.mxu0 0.0
    %2854 = vmatpush1.msra.mxu0 0.0
    %2855 = vmatprep.subr.mxu0 0.0
    %2856 = vmatpush1.msra.mxu0 0.0
    %2857 = vmatprep.subr.mxu0 0.0
    %2858 = vmatpush1.msra.mxu0 0.0
    %2859 = vmatprep.subr.mxu0 0.0
    %2860 = vmatpush1.msra.mxu0 0.0
    %2861 = vmatprep.subr.mxu0 0.0
    %2862 = vmatpush1.msra.mxu0 0.0
    %2863 = vmatprep.subr.mxu0 0.0
    %2864 = vmatpush1.msra.mxu0 0.0
    %2865 = vmatprep.mubr.f32.mxu0 0.0
    %2866 = vmatmul.mubr.f32.gmra.mrb[0].mxu0 %v2799
    %v2867 = vpop.f32.mrb[0].mxu0
    %v2868 = vadd.f32 0.0, %v2867
    %v2869 = vpop.f32.mrb[0].mxu0
    %2870 = vdwg.mxu0
    %v2871 = vld [vmem:[%s1686] sm:$0xff]
    %v2873 = vsel %vm1364, %v2868, 0
    %2875 = vmatprep.subr.mxu0 0.0
    %2876 = vmatpush1.msra.mxu0 %v2871
    %2877 = vmatprep.subr.mxu0 0.0
    %2878 = vmatpush1.msra.mxu0 0.0
    %2879 = vmatprep.subr.mxu0 0.0
    %2880 = vmatpush1.msra.mxu0 0.0
    %2881 = vmatprep.subr.mxu0 0.0
    %2882 = vmatpush1.msra.mxu0 0.0
    %2883 = vmatprep.subr.mxu0 0.0
    %2884 = vmatpush1.msra.mxu0 0.0
    %2885 = vmatprep.subr.mxu0 0.0
    %2886 = vmatpush1.msra.mxu0 0.0
    %2887 = vmatprep.subr.mxu0 0.0
    %2888 = vmatpush1.msra.mxu0 0.0
    %2889 = vmatprep.subr.mxu0 0.0
    %2890 = vmatpush1.msra.mxu0 0.0
    %2891 = vmatprep.subr.mxu0 0.0
    %2892 = vmatpush1.msra.mxu0 0.0
    %2893 = vmatprep.subr.mxu0 0.0
    %2894 = vmatpush1.msra.mxu0 0.0
    %2895 = vmatprep.subr.mxu0 0.0
    %2896 = vmatpush1.msra.mxu0 0.0
    %2897 = vmatprep.subr.mxu0 0.0
    %2898 = vmatpush1.msra.mxu0 0.0
    %2899 = vmatprep.subr.mxu0 0.0
    %2900 = vmatpush1.msra.mxu0 0.0
    %2901 = vmatprep.subr.mxu0 0.0
    %2902 = vmatpush1.msra.mxu0 0.0
    %2903 = vmatprep.subr.mxu0 0.0
    %2904 = vmatpush1.msra.mxu0 0.0
    %2905 = vmatprep.subr.mxu0 0.0
    %2906 = vmatpush1.msra.mxu0 0.0
    %2907 = vmatprep.subr.mxu0 0.0
    %2908 = vmatpush1.msra.mxu0 0.0
    %2909 = vmatprep.subr.mxu0 0.0
    %2910 = vmatpush1.msra.mxu0 0.0
    %2911 = vmatprep.subr.mxu0 0.0
    %2912 = vmatpush1.msra.mxu0 0.0
    %2913 = vmatprep.subr.mxu0 0.0
    %2914 = vmatpush1.msra.mxu0 0.0
    %2915 = vmatprep.subr.mxu0 0.0
    %2916 = vmatpush1.msra.mxu0 0.0
    %2917 = vmatprep.subr.mxu0 0.0
    %2918 = vmatpush1.msra.mxu0 0.0
    %2919 = vmatprep.subr.mxu0 0.0
    %2920 = vmatpush1.msra.mxu0 0.0
    %2921 = vmatprep.subr.mxu0 0.0
    %2922 = vmatpush1.msra.mxu0 0.0
    %2923 = vmatprep.subr.mxu0 0.0
    %2924 = vmatpush1.msra.mxu0 0.0
    %2925 = vmatprep.subr.mxu0 0.0
    %2926 = vmatpush1.msra.mxu0 0.0
    %2927 = vmatprep.subr.mxu0 0.0
    %2928 = vmatpush1.msra.mxu0 0.0
    %2929 = vmatprep.subr.mxu0 0.0
    %2930 = vmatpush1.msra.mxu0 0.0
    %2931 = vmatprep.subr.mxu0 0.0
    %2932 = vmatpush1.msra.mxu0 0.0
    %2933 = vmatprep.subr.mxu0 0.0
    %2934 = vmatpush1.msra.mxu0 0.0
    %2935 = vmatprep.subr.mxu0 0.0
    %2936 = vmatpush1.msra.mxu0 0.0
    %2937 = vmatprep.subr.mxu0 0.0
    %2938 = vmatpush1.msra.mxu0 0.0
    %2939 = vmatprep.mubr.f32.mxu0 0.0
    %2940 = vmatmul.mubr.f32.gmra.mrb[0].mxu0 %v2873
    %v2941 = vpop.f32.mrb[0].mxu0
    %v2942 = vadd.f32 0.0, %v2941
    %v2943 = vpop.f32.mrb[0].mxu0
    %2944 = vdwg.mxu0
    %v2946 = vsel %vm1364, %v2707, 0
    %2948 = vmatprep.subr.mxu0 0.0
    %2949 = vmatpush1.msra.mxu0 %v2710
    %2950 = vmatprep.subr.mxu0 0.0
    %2951 = vmatpush1.msra.mxu0 0.0
    %2952 = vmatprep.subr.mxu0 0.0
    %2953 = vmatpush1.msra.mxu0 0.0
    %2954 = vmatprep.subr.mxu0 0.0
    %2955 = vmatpush1.msra.mxu0 0.0
    %2956 = vmatprep.subr.mxu0 0.0
    %2957 = vmatpush1.msra.mxu0 0.0
    %2958 = vmatprep.subr.mxu0 0.0
    %2959 = vmatpush1.msra.mxu0 0.0
    %2960 = vmatprep.subr.mxu0 0.0
    %2961 = vmatpush1.msra.mxu0 0.0
    %2962 = vmatprep.subr.mxu0 0.0
    %2963 = vmatpush1.msra.mxu0 0.0
    %2964 = vmatprep.subr.mxu0 0.0
    %2965 = vmatpush1.msra.mxu0 0.0
    %2966 = vmatprep.subr.mxu0 0.0
    %2967 = vmatpush1.msra.mxu0 0.0
    %2968 = vmatprep.subr.mxu0 0.0
    %2969 = vmatpush1.msra.mxu0 0.0
    %2970 = vmatprep.subr.mxu0 0.0
    %2971 = vmatpush1.msra.mxu0 0.0
    %2972 = vmatprep.subr.mxu0 0.0
    %2973 = vmatpush1.msra.mxu0 0.0
    %2974 = vmatprep.subr.mxu0 0.0
    %2975 = vmatpush1.msra.mxu0 0.0
    %2976 = vmatprep.subr.mxu0 0.0
    %2977 = vmatpush1.msra.mxu0 0.0
    %2978 = vmatprep.subr.mxu0 0.0
    %2979 = vmatpush1.msra.mxu0 0.0
    %2980 = vmatprep.subr.mxu0 0.0
    %2981 = vmatpush1.msra.mxu0 0.0
    %2982 = vmatprep.subr.mxu0 0.0
    %2983 = vmatpush1.msra.mxu0 0.0
    %2984 = vmatprep.subr.mxu0 0.0
    %2985 = vmatpush1.msra.mxu0 0.0
    %2986 = vmatprep.subr.mxu0 0.0
    %2987 = vmatpush1.msra.mxu0 0.0
    %2988 = vmatprep.subr.mxu0 0.0
    %2989 = vmatpush1.msra.mxu0 0.0
    %2990 = vmatprep.subr.mxu0 0.0
    %2991 = vmatpush1.msra.mxu0 0.0
    %2992 = vmatprep.subr.mxu0 0.0
    %2993 = vmatpush1.msra.mxu0 0.0
    %2994 = vmatprep.subr.mxu0 0.0
    %2995 = vmatpush1.msra.mxu0 0.0
    %2996 = vmatprep.subr.mxu0 0.0
    %2997 = vmatpush1.msra.mxu0 0.0
    %2998 = vmatprep.subr.mxu0 0.0
    %2999 = vmatpush1.msra.mxu0 0.0
    %3000 = vmatprep.subr.mxu0 0.0
    %3001 = vmatpush1.msra.mxu0 0.0
    %3002 = vmatprep.subr.mxu0 0.0
    %3003 = vmatpush1.msra.mxu0 0.0
    %3004 = vmatprep.subr.mxu0 0.0
    %3005 = vmatpush1.msra.mxu0 0.0
    %3006 = vmatprep.subr.mxu0 0.0
    %3007 = vmatpush1.msra.mxu0 0.0
    %3008 = vmatprep.subr.mxu0 0.0
    %3009 = vmatpush1.msra.mxu0 0.0
    %3010 = vmatprep.subr.mxu0 0.0
    %3011 = vmatpush1.msra.mxu0 0.0
    %3012 = vmatprep.mubr.f32.mxu0 0.0
    %3013 = vmatmul.mubr.f32.gmra.mrb[0].mxu0 %v2946
    %v3014 = vpop.f32.mrb[0].mxu0
    %v3015 = vadd.f32 %v2942, %v3014
    %v3016 = vpop.f32.mrb[0].mxu0
    %3017 = vdwg.mxu0
    %v3019 = vsel %vm1364, %v649, 0
    %v3022 = vsel %vm1364, %v738, 0
    %3024 = vmatprep.subr.mxu0 0.0
    %3025 = vmatpush1.xpose.msra.mxu0 %v3022
    %3026 = vmatprep.subr.mxu0 0.0
    %3027 = vmatpush1.xpose.msra.mxu0 0.0
    %3028 = vmatprep.subr.mxu0 0.0
    %3029 = vmatpush1.xpose.msra.mxu0 0.0
    %3030 = vmatprep.subr.mxu0 0.0
    %3031 = vmatpush1.xpose.msra.mxu0 0.0
    %3032 = vmatprep.subr.mxu0 0.0
    %3033 = vmatpush1.xpose.msra.mxu0 0.0
    %3034 = vmatprep.subr.mxu0 0.0
    %3035 = vmatpush1.xpose.msra.mxu0 0.0
    %3036 = vmatprep.subr.mxu0 0.0
    %3037 = vmatpush1.xpose.msra.mxu0 0.0
    %3038 = vmatprep.subr.mxu0 0.0
    %3039 = vmatpush1.xpose.msra.mxu0 0.0
    %3040 = vmatprep.subr.mxu0 0.0
    %3041 = vmatpush1.xpose.msra.mxu0 0.0
    %3042 = vmatprep.subr.mxu0 0.0
    %3043 = vmatpush1.xpose.msra.mxu0 0.0
    %3044 = vmatprep.subr.mxu0 0.0
    %3045 = vmatpush1.xpose.msra.mxu0 0.0
    %3046 = vmatprep.subr.mxu0 0.0
    %3047 = vmatpush1.xpose.msra.mxu0 0.0
    %3048 = vmatprep.subr.mxu0 0.0
    %3049 = vmatpush1.xpose.msra.mxu0 0.0
    %3050 = vmatprep.subr.mxu0 0.0
    %3051 = vmatpush1.xpose.msra.mxu0 0.0
    %3052 = vmatprep.subr.mxu0 0.0
    %3053 = vmatpush1.xpose.msra.mxu0 0.0
    %3054 = vmatprep.subr.mxu0 0.0
    %3055 = vmatpush1.xpose.msra.mxu0 0.0
    %3056 = vmatprep.subr.mxu0 0.0
    %3057 = vmatpush1.xpose.msra.mxu0 0.0
    %3058 = vmatprep.subr.mxu0 0.0
    %3059 = vmatpush1.xpose.msra.mxu0 0.0
    %3060 = vmatprep.subr.mxu0 0.0
    %3061 = vmatpush1.xpose.msra.mxu0 0.0
    %3062 = vmatprep.subr.mxu0 0.0
    %3063 = vmatpush1.xpose.msra.mxu0 0.0
    %3064 = vmatprep.subr.mxu0 0.0
    %3065 = vmatpush1.xpose.msra.mxu0 0.0
    %3066 = vmatprep.subr.mxu0 0.0
    %3067 = vmatpush1.xpose.msra.mxu0 0.0
    %3068 = vmatprep.subr.mxu0 0.0
    %3069 = vmatpush1.xpose.msra.mxu0 0.0
    %3070 = vmatprep.subr.mxu0 0.0
    %3071 = vmatpush1.xpose.msra.mxu0 0.0
    %3072 = vmatprep.subr.mxu0 0.0
    %3073 = vmatpush1.xpose.msra.mxu0 0.0
    %3074 = vmatprep.subr.mxu0 0.0
    %3075 = vmatpush1.xpose.msra.mxu0 0.0
    %3076 = vmatprep.subr.mxu0 0.0
    %3077 = vmatpush1.xpose.msra.mxu0 0.0
    %3078 = vmatprep.subr.mxu0 0.0
    %3079 = vmatpush1.xpose.msra.mxu0 0.0
    %3080 = vmatprep.subr.mxu0 0.0
    %3081 = vmatpush1.xpose.msra.mxu0 0.0
    %3082 = vmatprep.subr.mxu0 0.0
    %3083 = vmatpush1.xpose.msra.mxu0 0.0
    %3084 = vmatprep.subr.mxu0 0.0
    %3085 = vmatpush1.xpose.msra.mxu0 0.0
    %3086 = vmatprep.subr.mxu0 0.0
    %3087 = vmatpush1.xpose.msra.mxu0 0.0
    %3088 = vmatprep.mubr.f32.mxu0 0.0
    %3089 = vmatmul.mubr.f32.gmra.mrb[0].mxu0 %v3019
    %v3090 = vpop.f32.mrb[0].mxu0
    %v3091 = vadd.f32 0.0, %v3090
    %v3092 = vpop.f32.mrb[0].mxu0
    %3093 = vdwg.mxu0
    %v3094 = vsel %vm1364, %v3091, -inf
    %3095 = vmax.xlane.f32.xlu0 %v3094
    %v3096 = vpop.xlane.xlu0 %3095
    %v3097 = vsub.f32 %v3091, %v3096
    %v3098 = vmul.f32 %v3097, 1.442695
    %v3099 = vpow.pop %v3098
    %v3100 = vsel %vm1364, %v3099, 0.0
    %3101 = vadd.xlane.f32.xlu0 %v3100
    %v3102 = vpop.xlane.xlu0 %3101
    %v3103 = vrcp.pop %v3102
    %v3104 = vmul.f32 %v3099, %v3103
    %v3106 = vsel %vm1364, %v3104, 0
    %3108 = vmatprep.subr.mxu0 0.0
    %3109 = vmatpush1.msra.mxu0 %v827
    %3110 = vmatprep.subr.mxu0 0.0
    %3111 = vmatpush1.msra.mxu0 0.0
    %3112 = vmatprep.subr.mxu0 0.0
    %3113 = vmatpush1.msra.mxu0 0.0
    %3114 = vmatprep.subr.mxu0 0.0
    %3115 = vmatpush1.msra.mxu0 0.0
    %3116 = vmatprep.subr.mxu0 0.0
    %3117 = vmatpush1.msra.mxu0 0.0
    %3118 = vmatprep.subr.mxu0 0.0
    %3119 = vmatpush1.msra.mxu0 0.0
    %3120 = vmatprep.subr.mxu0 0.0
    %3121 = vmatpush1.msra.mxu0 0.0
    %3122 = vmatprep.subr.mxu0 0.0
    %3123 = vmatpush1.msra.mxu0 0.0
    %3124 = vmatprep.subr.mxu0 0.0
    %3125 = vmatpush1.msra.mxu0 0.0
    %3126 = vmatprep.subr.mxu0 0.0
    %3127 = vmatpush1.msra.mxu0 0.0
    %3128 = vmatprep.subr.mxu0 0.0
    %3129 = vmatpush1.msra.mxu0 0.0
    %3130 = vmatprep.subr.mxu0 0.0
    %3131 = vmatpush1.msra.mxu0 0.0
    %3132 = vmatprep.subr.mxu0 0.0
    %3133 = vmatpush1.msra.mxu0 0.0
    %3134 = vmatprep.subr.mxu0 0.0
    %3135 = vmatpush1.msra.mxu0 0.0
    %3136 = vmatprep.subr.mxu0 0.0
    %3137 = vmatpush1.msra.mxu0 0.0
    %3138 = vmatprep.subr.mxu0 0.0
    %3139 = vmatpush1.msra.mxu0 0.0
    %3140 = vmatprep.subr.mxu0 0.0
    %3141 = vmatpush1.msra.mxu0 0.0
    %3142 = vmatprep.subr.mxu0 0.0
    %3143 = vmatpush1.msra.mxu0 0.0
    %3144 = vmatprep.subr.mxu0 0.0
    %3145 = vmatpush1.msra.mxu0 0.0
    %3146 = vmatprep.subr.mxu0 0.0
    %3147 = vmatpush1.msra.mxu0 0.0
    %3148 = vmatprep.subr.mxu0 0.0
    %3149 = vmatpush1.msra.mxu0 0.0
    %3150 = vmatprep.subr.mxu0 0.0
    %3151 = vmatpush1.msra.mxu0 0.0
    %3152 = vmatprep.subr.mxu0 0.0
    %3153 = vmatpush1.msra.mxu0 0.0
    %3154 = vmatprep.subr.mxu0 0.0
    %3155 = vmatpush1.msra.mxu0 0.0
    %3156 = vmatprep.subr.mxu0 0.0
    %3157 = vmatpush1.msra.mxu0 0.0
    %3158 = vmatprep.subr.mxu0 0.0
    %3159 = vmatpush1.msra.mxu0 0.0
    %3160 = vmatprep.subr.mxu0 0.0
    %3161 = vmatpush1.msra.mxu0 0.0
    %3162 = vmatprep.subr.mxu0 0.0
    %3163 = vmatpush1.msra.mxu0 0.0
    %3164 = vmatprep.subr.mxu0 0.0
    %3165 = vmatpush1.msra.mxu0 0.0
    %3166 = vmatprep.subr.mxu0 0.0
    %3167 = vmatpush1.msra.mxu0 0.0
    %3168 = vmatprep.subr.mxu0 0.0
    %3169 = vmatpush1.msra.mxu0 0.0
    %3170 = vmatprep.subr.mxu0 0.0
    %3171 = vmatpush1.msra.mxu0 0.0
    %3172 = vmatprep.mubr.f32.mxu0 0.0
    %3173 = vmatmul.mubr.f32.gmra.mrb[0].mxu0 %v3106
    %v3174 = vpop.f32.mrb[0].mxu0
    %v3175 = vadd.f32 0.0, %v3174
    %v3176 = vpop.f32.mrb[0].mxu0
    %3177 = vdwg.mxu0
    %v3178 = vld [vmem:[%s1994] sm:$0xff]
    %v3180 = vsel %vm1364, %v3175, 0
    %3182 = vmatprep.subr.mxu0 0.0
    %3183 = vmatpush1.msra.mxu0 %v3178
    %3184 = vmatprep.subr.mxu0 0.0
    %3185 = vmatpush1.msra.mxu0 0.0
    %3186 = vmatprep.subr.mxu0 0.0
    %3187 = vmatpush1.msra.mxu0 0.0
    %3188 = vmatprep.subr.mxu0 0.0
    %3189 = vmatpush1.msra.mxu0 0.0
    %3190 = vmatprep.subr.mxu0 0.0
    %3191 = vmatpush1.msra.mxu0 0.0
    %3192 = vmatprep.subr.mxu0 0.0
    %3193 = vmatpush1.msra.mxu0 0.0
    %3194 = vmatprep.subr.mxu0 0.0
    %3195 = vmatpush1.msra.mxu0 0.0
    %3196 = vmatprep.subr.mxu0 0.0
    %3197 = vmatpush1.msra.mxu0 0.0
    %3198 = vmatprep.subr.mxu0 0.0
    %3199 = vmatpush1.msra.mxu0 0.0
    %3200 = vmatprep.subr.mxu0 0.0
    %3201 = vmatpush1.msra.mxu0 0.0
    %3202 = vmatprep.subr.mxu0 0.0
    %3203 = vmatpush1.msra.mxu0 0.0
    %3204 = vmatprep.subr.mxu0 0.0
    %3205 = vmatpush1.msra.mxu0 0.0
    %3206 = vmatprep.subr.mxu0 0.0
    %3207 = vmatpush1.msra.mxu0 0.0
    %3208 = vmatprep.subr.mxu0 0.0
    %3209 = vmatpush1.msra.mxu0 0.0
    %3210 = vmatprep.subr.mxu0 0.0
    %3211 = vmatpush1.msra.mxu0 0.0
    %3212 = vmatprep.subr.mxu0 0.0
    %3213 = vmatpush1.msra.mxu0 0.0
    %3214 = vmatprep.subr.mxu0 0.0
    %3215 = vmatpush1.msra.mxu0 0.0
    %3216 = vmatprep.subr.mxu0 0.0
    %3217 = vmatpush1.msra.mxu0 0.0
    %3218 = vmatprep.subr.mxu0 0.0
    %3219 = vmatpush1.msra.mxu0 0.0
    %3220 = vmatprep.subr.mxu0 0.0
    %3221 = vmatpush1.msra.mxu0 0.0
    %3222 = vmatprep.subr.mxu0 0.0
    %3223 = vmatpush1.msra.mxu0 0.0
    %3224 = vmatprep.subr.mxu0 0.0
    %3225 = vmatpush1.msra.mxu0 0.0
    %3226 = vmatprep.subr.mxu0 0.0
    %3227 = vmatpush1.msra.mxu0 0.0
    %3228 = vmatprep.subr.mxu0 0.0
    %3229 = vmatpush1.msra.mxu0 0.0
    %3230 = vmatprep.subr.mxu0 0.0
    %3231 = vmatpush1.msra.mxu0 0.0
    %3232 = vmatprep.subr.mxu0 0.0
    %3233 = vmatpush1.msra.mxu0 0.0
    %3234 = vmatprep.subr.mxu0 0.0
    %3235 = vmatpush1.msra.mxu0 0.0
    %3236 = vmatprep.subr.mxu0 0.0
    %3237 = vmatpush1.msra.mxu0 0.0
    %3238 = vmatprep.subr.mxu0 0.0
    %3239 = vmatpush1.msra.mxu0 0.0
    %3240 = vmatprep.subr.mxu0 0.0
    %3241 = vmatpush1.msra.mxu0 0.0
    %3242 = vmatprep.subr.mxu0 0.0
    %3243 = vmatpush1.msra.mxu0 0.0
    %3244 = vmatprep.subr.mxu0 0.0
    %3245 = vmatpush1.msra.mxu0 0.0
    %3246 = vmatprep.mubr.f32.mxu0 0.0
    %3247 = vmatmul.mubr.f32.gmra.mrb[0].mxu0 %v3180
    %v3248 = vpop.f32.mrb[0].mxu0
    %v3249 = vadd.f32 0.0, %v3248
    %v3250 = vpop.f32.mrb[0].mxu0
    %3251 = vdwg.mxu0
    %v3252 = vadd.f32 %v3015, %v3249
    %v3254 = vsel %vm1364, %v916, 0
    %v3257 = vsel %vm1364, %v1005, 0
    %3259 = vmatprep.subr.mxu0 0.0
    %3260 = vmatpush1.xpose.msra.mxu0 %v3257
    %3261 = vmatprep.subr.mxu0 0.0
    %3262 = vmatpush1.xpose.msra.mxu0 0.0
    %3263 = vmatprep.subr.mxu0 0.0
    %3264 = vmatpush1.xpose.msra.mxu0 0.0
    %3265 = vmatprep.subr.mxu0 0.0
    %3266 = vmatpush1.xpose.msra.mxu0 0.0
    %3267 = vmatprep.subr.mxu0 0.0
    %3268 = vmatpush1.xpose.msra.mxu0 0.0
    %3269 = vmatprep.subr.mxu0 0.0
    %3270 = vmatpush1.xpose.msra.mxu0 0.0
    %3271 = vmatprep.subr.mxu0 0.0
    %3272 = vmatpush1.xpose.msra.mxu0 0.0
    %3273 = vmatprep.subr.mxu0 0.0
    %3274 = vmatpush1.xpose.msra.mxu0 0.0
    %3275 = vmatprep.subr.mxu0 0.0
    %3276 = vmatpush1.xpose.msra.mxu0 0.0
    %3277 = vmatprep.subr.mxu0 0.0
    %3278 = vmatpush1.xpose.msra.mxu0 0.0
    %3279 = vmatprep.subr.mxu0 0.0
    %3280 = vmatpush1.xpose.msra.mxu0 0.0
    %3281 = vmatprep.subr.mxu0 0.0
    %3282 = vmatpush1.xpose.msra.mxu0 0.0
    %3283 = vmatprep.subr.mxu0 0.0
    %3284 = vmatpush1.xpose.msra.mxu0 0.0
    %3285 = vmatprep.subr.mxu0 0.0
    %3286 = vmatpush1.xpose.msra.mxu0 0.0
    %3287 = vmatprep.subr.mxu0 0.0
    %3288 = vmatpush1.xpose.msra.mxu0 0.0
    %3289 = vmatprep.subr.mxu0 0.0
    %3290 = vmatpush1.xpose.msra.mxu0 0.0
    %3291 = vmatprep.subr.mxu0 0.0
    %3292 = vmatpush1.xpose.msra.mxu0 0.0
    %3293 = vmatprep.subr.mxu0 0.0
    %3294 = vmatpush1.xpose.msra.mxu0 0.0
    %3295 = vmatprep.subr.mxu0 0.0
    %3296 = vmatpush1.xpose.msra.mxu0 0.0
    %3297 = vmatprep.subr.mxu0 0.0
    %3298 = vmatpush1.xpose.msra.mxu0 0.0
    %3299 = vmatprep.subr.mxu0 0.0
    %3300 = vmatpush1.xpose.msra.mxu0 0.0
    %3301 = vmatprep.subr.mxu0 0.0
    %3302 = vmatpush1.xpose.msra.mxu0 0.0
    %3303 = vmatprep.subr.mxu0 0.0
    %3304 = vmatpush1.xpose.msra.mxu0 0.0
    %3305 = vmatprep.subr.mxu0 0.0
    %3306 = vmatpush1.xpose.msra.mxu0 0.0
    %3307 = vmatprep.subr.mxu0 0.0
    %3308 = vmatpush1.xpose.msra.mxu0 0.0
    %3309 = vmatprep.subr.mxu0 0.0
    %3310 = vmatpush1.xpose.msra.mxu0 0.0
    %3311 = vmatprep.subr.mxu0 0.0
    %3312 = vmatpush1.xpose.msra.mxu0 0.0
    %3313 = vmatprep.subr.mxu0 0.0
    %3314 = vmatpush1.xpose.msra.mxu0 0.0
    %3315 = vmatprep.subr.mxu0 0.0
    %3316 = vmatpush1.xpose.msra.mxu0 0.0
    %3317 = vmatprep.subr.mxu0 0.0
    %3318 = vmatpush1.xpose.msra.mxu0 0.0
    %3319 = vmatprep.subr.mxu0 0.0
    %3320 = vmatpush1.xpose.msra.mxu0 0.0
    %3321 = vmatprep.subr.mxu0 0.0
    %3322 = vmatpush1.xpose.msra.mxu0 0.0
    %3323 = vmatprep.mubr.f32.mxu0 0.0
    %3324 = vmatmul.mubr.f32.gmra.mrb[0].mxu0 %v3254
    %v3325 = vpop.f32.mrb[0].mxu0
    %v3326 = vadd.f32 0.0, %v3325
    %v3327 = vpop.f32.mrb[0].mxu0
    %3328 = vdwg.mxu0
    %v3329 = vsel %vm1364, %v3326, -inf
    %3330 = vmax.xlane.f32.xlu0 %v3329
    %v3331 = vpop.xlane.xlu0 %3330
    %v3332 = vsub.f32 %v3326, %v3331
    %v3333 = vmul.f32 %v3332, 1.442695
    %v3334 = vpow.pop %v3333
    %v3335 = vsel %vm1364, %v3334, 0.0
    %3336 = vadd.xlane.f32.xlu0 %v3335
    %v3337 = vpop.xlane.xlu0 %3336
    %v3338 = vrcp.pop %v3337
    %v3339 = vmul.f32 %v3334, %v3338
    %v3341 = vsel %vm1364, %v3339, 0
    %3343 = vmatprep.subr.mxu0 0.0
    %3344 = vmatpush1.msra.mxu0 %v1094
    %3345 = vmatprep.subr.mxu0 0.0
    %3346 = vmatpush1.msra.mxu0 0.0
    %3347 = vmatprep.subr.mxu0 0.0
    %3348 = vmatpush1.msra.mxu0 0.0
    %3349 = vmatprep.subr.mxu0 0.0
    %3350 = vmatpush1.msra.mxu0 0.0
    %3351 = vmatprep.subr.mxu0 0.0
    %3352 = vmatpush1.msra.mxu0 0.0
    %3353 = vmatprep.subr.mxu0 0.0
    %3354 = vmatpush1.msra.mxu0 0.0
    %3355 = vmatprep.subr.mxu0 0.0
    %3356 = vmatpush1.msra.mxu0 0.0
    %3357 = vmatprep.subr.mxu0 0.0
    %3358 = vmatpush1.msra.mxu0 0.0
    %3359 = vmatprep.subr.mxu0 0.0
    %3360 = vmatpush1.msra.mxu0 0.0
    %3361 = vmatprep.subr.mxu0 0.0
    %3362 = vmatpush1.msra.mxu0 0.0
    %3363 = vmatprep.subr.mxu0 0.0
    %3364 = vmatpush1.msra.mxu0 0.0
    %3365 = vmatprep.subr.mxu0 0.0
    %3366 = vmatpush1.msra.mxu0 0.0
    %3367 = vmatprep.subr.mxu0 0.0
    %3368 = vmatpush1.msra.mxu0 0.0
    %3369 = vmatprep.subr.mxu0 0.0
    %3370 = vmatpush1.msra.mxu0 0.0
    %3371 = vmatprep.subr.mxu0 0.0
    %3372 = vmatpush1.msra.mxu0 0.0
    %3373 = vmatprep.subr.mxu0 0.0
    %3374 = vmatpush1.msra.mxu0 0.0
    %3375 = vmatprep.subr.mxu0 0.0
    %3376 = vmatpush1.msra.mxu0 0.0
    %3377 = vmatprep.subr.mxu0 0.0
    %3378 = vmatpush1.msra.mxu0 0.0
    %3379 = vmatprep.subr.mxu0 0.0
    %3380 = vmatpush1.msra.mxu0 0.0
    %3381 = vmatprep.subr.mxu0 0.0
    %3382 = vmatpush1.msra.mxu0 0.0
    %3383 = vmatprep.subr.mxu0 0.0
    %3384 = vmatpush1.msra.mxu0 0.0
    %3385 = vmatprep.subr.mxu0 0.0
    %3386 = vmatpush1.msra.mxu0 0.0
    %3387 = vmatprep.subr.mxu0 0.0
    %3388 = vmatpush1.msra.mxu0 0.0
    %3389 = vmatprep.subr.mxu0 0.0
    %3390 = vmatpush1.msra.mxu0 0.0
    %3391 = vmatprep.subr.mxu0 0.0
    %3392 = vmatpush1.msra.mxu0 0.0
    %3393 = vmatprep.subr.mxu0 0.0
    %3394 = vmatpush1.msra.mxu0 0.0
    %3395 = vmatprep.subr.mxu0 0.0
    %3396 = vmatpush1.msra.mxu0 0.0
    %3397 = vmatprep.subr.mxu0 0.0
    %3398 = vmatpush1.msra.mxu0 0.0
    %3399 = vmatprep.subr.mxu0 0.0
    %3400 = vmatpush1.msra.mxu0 0.0
    %3401 = vmatprep.subr.mxu0 0.0
    %3402 = vmatpush1.msra.mxu0 0.0
    %3403 = vmatprep.subr.mxu0 0.0
    %3404 = vmatpush1.msra.mxu0 0.0
    %3405 = vmatprep.subr.mxu0 0.0
    %3406 = vmatpush1.msra.mxu0 0.0
    %3407 = vmatprep.mubr.f32.mxu0 0.0
    %3408 = vmatmul.mubr.f32.gmra.mrb[0].mxu0 %v3341
    %v3409 = vpop.f32.mrb[0].mxu0
    %v3410 = vadd.f32 0.0, %v3409
    %v3411 = vpop.f32.mrb[0].mxu0
    %3412 = vdwg.mxu0
    %v3413 = vld [vmem:[%s2230] sm:$0xff]
    %v3415 = vsel %vm1364, %v3410, 0
    %3417 = vmatprep.subr.mxu0 0.0
    %3418 = vmatpush1.msra.mxu0 %v3413
    %3419 = vmatprep.subr.mxu0 0.0
    %3420 = vmatpush1.msra.mxu0 0.0
    %3421 = vmatprep.subr.mxu0 0.0
    %3422 = vmatpush1.msra.mxu0 0.0
    %3423 = vmatprep.subr.mxu0 0.0
    %3424 = vmatpush1.msra.mxu0 0.0
    %3425 = vmatprep.subr.mxu0 0.0
    %3426 = vmatpush1.msra.mxu0 0.0
    %3427 = vmatprep.subr.mxu0 0.0
    %3428 = vmatpush1.msra.mxu0 0.0
    %3429 = vmatprep.subr.mxu0 0.0
    %3430 = vmatpush1.msra.mxu0 0.0
    %3431 = vmatprep.subr.mxu0 0.0
    %3432 = vmatpush1.msra.mxu0 0.0
    %3433 = vmatprep.subr.mxu0 0.0
    %3434 = vmatpush1.msra.mxu0 0.0
    %3435 = vmatprep.subr.mxu0 0.0
    %3436 = vmatpush1.msra.mxu0 0.0
    %3437 = vmatprep.subr.mxu0 0.0
    %3438 = vmatpush1.msra.mxu0 0.0
    %3439 = vmatprep.subr.mxu0 0.0
    %3440 = vmatpush1.msra.mxu0 0.0
    %3441 = vmatprep.subr.mxu0 0.0
    %3442 = vmatpush1.msra.mxu0 0.0
    %3443 = vmatprep.subr.mxu0 0.0
    %3444 = vmatpush1.msra.mxu0 0.0
    %3445 = vmatprep.subr.mxu0 0.0
    %3446 = vmatpush1.msra.mxu0 0.0
    %3447 = vmatprep.subr.mxu0 0.0
    %3448 = vmatpush1.msra.mxu0 0.0
    %3449 = vmatprep.subr.mxu0 0.0
    %3450 = vmatpush1.msra.mxu0 0.0
    %3451 = vmatprep.subr.mxu0 0.0
    %3452 = vmatpush1.msra.mxu0 0.0
    %3453 = vmatprep.subr.mxu0 0.0
    %3454 = vmatpush1.msra.mxu0 0.0
    %3455 = vmatprep.subr.mxu0 0.0
    %3456 = vmatpush1.msra.mxu0 0.0
    %3457 = vmatprep.subr.mxu0 0.0
    %3458 = vmatpush1.msra.mxu0 0.0
    %3459 = vmatprep.subr.mxu0 0.0
    %3460 = vmatpush1.msra.mxu0 0.0
    %3461 = vmatprep.subr.mxu0 0.0
    %3462 = vmatpush1.msra.mxu0 0.0
    %3463 = vmatprep.subr.mxu0 0.0
    %3464 = vmatpush1.msra.mxu0 0.0
    %3465 = vmatprep.subr.mxu0 0.0
    %3466 = vmatpush1.msra.mxu0 0.0
    %3467 = vmatprep.subr.mxu0 0.0
    %3468 = vmatpush1.msra.mxu0 0.0
    %3469 = vmatprep.subr.mxu0 0.0
    %3470 = vmatpush1.msra.mxu0 0.0
    %3471 = vmatprep.subr.mxu0 0.0
    %3472 = vmatpush1.msra.mxu0 0.0
    %3473 = vmatprep.subr.mxu0 0.0
    %3474 = vmatpush1.msra.mxu0 0.0
    %3475 = vmatprep.subr.mxu0 0.0
    %3476 = vmatpush1.msra.mxu0 0.0
    %3477 = vmatprep.subr.mxu0 0.0
    %3478 = vmatpush1.msra.mxu0 0.0
    %3479 = vmatprep.subr.mxu0 0.0
    %3480 = vmatpush1.msra.mxu0 0.0
    %3481 = vmatprep.mubr.f32.mxu0 0.0
    %3482 = vmatmul.mubr.f32.gmra.mrb[0].mxu0 %v3415
    %v3483 = vpop.f32.mrb[0].mxu0
    %v3484 = vadd.f32 0.0, %v3483
    %v3485 = vpop.f32.mrb[0].mxu0
    %3486 = vdwg.mxu0
    %v3487 = vadd.f32 %v3252, %v3484
    %v3489 = vsel %vm1364, %v1183, 0
    %v3492 = vsel %vm1364, %v1272, 0
    %3494 = vmatprep.subr.mxu0 0.0
    %3495 = vmatpush1.xpose.msra.mxu0 %v3492
    %3496 = vmatprep.subr.mxu0 0.0
    %3497 = vmatpush1.xpose.msra.mxu0 0.0
    %3498 = vmatprep.subr.mxu0 0.0
    %3499 = vmatpush1.xpose.msra.mxu0 0.0
    %3500 = vmatprep.subr.mxu0 0.0
    %3501 = vmatpush1.xpose.msra.mxu0 0.0
    %3502 = vmatprep.subr.mxu0 0.0
    %3503 = vmatpush1.xpose.msra.mxu0 0.0
    %3504 = vmatprep.subr.mxu0 0.0
    %3505 = vmatpush1.xpose.msra.mxu0 0.0
    %3506 = vmatprep.subr.mxu0 0.0
    %3507 = vmatpush1.xpose.msra.mxu0 0.0
    %3508 = vmatprep.subr.mxu0 0.0
    %3509 = vmatpush1.xpose.msra.mxu0 0.0
    %3510 = vmatprep.subr.mxu0 0.0
    %3511 = vmatpush1.xpose.msra.mxu0 0.0
    %3512 = vmatprep.subr.mxu0 0.0
    %3513 = vmatpush1.xpose.msra.mxu0 0.0
    %3514 = vmatprep.subr.mxu0 0.0
    %3515 = vmatpush1.xpose.msra.mxu0 0.0
    %3516 = vmatprep.subr.mxu0 0.0
    %3517 = vmatpush1.xpose.msra.mxu0 0.0
    %3518 = vmatprep.subr.mxu0 0.0
    %3519 = vmatpush1.xpose.msra.mxu0 0.0
    %3520 = vmatprep.subr.mxu0 0.0
    %3521 = vmatpush1.xpose.msra.mxu0 0.0
    %3522 = vmatprep.subr.mxu0 0.0
    %3523 = vmatpush1.xpose.msra.mxu0 0.0
    %3524 = vmatprep.subr.mxu0 0.0
    %3525 = vmatpush1.xpose.msra.mxu0 0.0
    %3526 = vmatprep.subr.mxu0 0.0
    %3527 = vmatpush1.xpose.msra.mxu0 0.0
    %3528 = vmatprep.subr.mxu0 0.0
    %3529 = vmatpush1.xpose.msra.mxu0 0.0
    %3530 = vmatprep.subr.mxu0 0.0
    %3531 = vmatpush1.xpose.msra.mxu0 0.0
    %3532 = vmatprep.subr.mxu0 0.0
    %3533 = vmatpush1.xpose.msra.mxu0 0.0
    %3534 = vmatprep.subr.mxu0 0.0
    %3535 = vmatpush1.xpose.msra.mxu0 0.0
    %3536 = vmatprep.subr.mxu0 0.0
    %3537 = vmatpush1.xpose.msra.mxu0 0.0
    %3538 = vmatprep.subr.mxu0 0.0
    %3539 = vmatpush1.xpose.msra.mxu0 0.0
    %3540 = vmatprep.subr.mxu0 0.0
    %3541 = vmatpush1.xpose.msra.mxu0 0.0
    %3542 = vmatprep.subr.mxu0 0.0
    %3543 = vmatpush1.xpose.msra.mxu0 0.0
    %3544 = vmatprep.subr.mxu0 0.0
    %3545 = vmatpush1.xpose.msra.mxu0 0.0
    %3546 = vmatprep.subr.mxu0 0.0
    %3547 = vmatpush1.xpose.msra.mxu0 0.0
    %3548 = vmatprep.subr.mxu0 0.0
    %3549 = vmatpush1.xpose.msra.mxu0 0.0
    %3550 = vmatprep.subr.mxu0 0.0
    %3551 = vmatpush1.xpose.msra.mxu0 0.0
    %3552 = vmatprep.subr.mxu0 0.0
    %3553 = vmatpush1.xpose.msra.mxu0 0.0
    %3554 = vmatprep.subr.mxu0 0.0
    %3555 = vmatpush1.xpose.msra.mxu0 0.0
    %3556 = vmatprep.subr.mxu0 0.0
    %3557 = vmatpush1.xpose.msra.mxu0 0.0
    %3558 = vmatprep.mubr.f32.mxu0 0.0
    %3559 = vmatmul.mubr.f32.gmra.mrb[0].mxu0 %v3489
    %v3560 = vpop.f32.mrb[0].mxu0
    %v3561 = vadd.f32 0.0, %v3560
    %v3562 = vpop.f32.mrb[0].mxu0
    %3563 = vdwg.mxu0
    %v3564 = vsel %vm1364, %v3561, -inf
    %3565 = vmax.xlane.f32.xlu0 %v3564
    %v3566 = vpop.xlane.xlu0 %3565
    %v3567 = vsub.f32 %v3561, %v3566
    %v3568 = vmul.f32 %v3567, 1.442695
    %v3569 = vpow.pop %v3568
    %v3570 = vsel %vm1364, %v3569, 0.0
    %3571 = vadd.xlane.f32.xlu0 %v3570
    %v3572 = vpop.xlane.xlu0 %3571
    %v3573 = vrcp.pop %v3572
    %v3574 = vmul.f32 %v3569, %v3573
    %v3576 = vsel %vm1364, %v3574, 0
    %3578 = vmatprep.subr.mxu0 0.0
    %3579 = vmatpush1.msra.mxu0 %v1361
    %3580 = vmatprep.subr.mxu0 0.0
    %3581 = vmatpush1.msra.mxu0 0.0
    %3582 = vmatprep.subr.mxu0 0.0
    %3583 = vmatpush1.msra.mxu0 0.0
    %3584 = vmatprep.subr.mxu0 0.0
    %3585 = vmatpush1.msra.mxu0 0.0
    %3586 = vmatprep.subr.mxu0 0.0
    %3587 = vmatpush1.msra.mxu0 0.0
    %3588 = vmatprep.subr.mxu0 0.0
    %3589 = vmatpush1.msra.mxu0 0.0
    %3590 = vmatprep.subr.mxu0 0.0
    %3591 = vmatpush1.msra.mxu0 0.0
    %3592 = vmatprep.subr.mxu0 0.0
    %3593 = vmatpush1.msra.mxu0 0.0
    %3594 = vmatprep.subr.mxu0 0.0
    %3595 = vmatpush1.msra.mxu0 0.0
    %3596 = vmatprep.subr.mxu0 0.0
    %3597 = vmatpush1.msra.mxu0 0.0
    %3598 = vmatprep.subr.mxu0 0.0
    %3599 = vmatpush1.msra.mxu0 0.0
    %3600 = vmatprep.subr.mxu0 0.0
    %3601 = vmatpush1.msra.mxu0 0.0
    %3602 = vmatprep.subr.mxu0 0.0
    %3603 = vmatpush1.msra.mxu0 0.0
    %3604 = vmatprep.subr.mxu0 0.0
    %3605 = vmatpush1.msra.mxu0 0.0
    %3606 = vmatprep.subr.mxu0 0.0
    %3607 = vmatpush1.msra.mxu0 0.0
    %3608 = vmatprep.subr.mxu0 0.0
    %3609 = vmatpush1.msra.mxu0 0.0
    %3610 = vmatprep.subr.mxu0 0.0
    %3611 = vmatpush1.msra.mxu0 0.0
    %3612 = vmatprep.subr.mxu0 0.0
    %3613 = vmatpush1.msra.mxu0 0.0
    %3614 = vmatprep.subr.mxu0 0.0
    %3615 = vmatpush1.msra.mxu0 0.0
    %3616 = vmatprep.subr.mxu0 0.0
    %3617 = vmatpush1.msra.mxu0 0.0
    %3618 = vmatprep.subr.mxu0 0.0
    %3619 = vmatpush1.msra.mxu0 0.0
    %3620 = vmatprep.subr.mxu0 0.0
    %3621 = vmatpush1.msra.mxu0 0.0
    %3622 = vmatprep.subr.mxu0 0.0
    %3623 = vmatpush1.msra.mxu0 0.0
    %3624 = vmatprep.subr.mxu0 0.0
    %3625 = vmatpush1.msra.mxu0 0.0
    %3626 = vmatprep.subr.mxu0 0.0
    %3627 = vmatpush1.msra.mxu0 0.0
    %3628 = vmatprep.subr.mxu0 0.0
    %3629 = vmatpush1.msra.mxu0 0.0
    %3630 = vmatprep.subr.mxu0 0.0
    %3631 = vmatpush1.msra.mxu0 0.0
    %3632 = vmatprep.subr.mxu0 0.0
    %3633 = vmatpush1.msra.mxu0 0.0
    %3634 = vmatprep.subr.mxu0 0.0
    %3635 = vmatpush1.msra.mxu0 0.0
    %3636 = vmatprep.subr.mxu0 0.0
    %3637 = vmatpush1.msra.mxu0 0.0
    %3638 = vmatprep.subr.mxu0 0.0
    %3639 = vmatpush1.msra.mxu0 0.0
    %3640 = vmatprep.subr.mxu0 0.0
    %3641 = vmatpush1.msra.mxu0 0.0
    %3642 = vmatprep.mubr.f32.mxu0 0.0
    %3643 = vmatmul.mubr.f32.gmra.mrb[0].mxu0 %v3576
    %v3644 = vpop.f32.mrb[0].mxu0
    %v3645 = vadd.f32 0.0, %v3644
    %v3646 = vpop.f32.mrb[0].mxu0
    %3647 = vdwg.mxu0
    %v3648 = vld [vmem:[%s2466] sm:$0xff]
    %v3650 = vsel %vm1364, %v3645, 0
    %3652 = vmatprep.subr.mxu0 0.0
    %3653 = vmatpush1.msra.mxu0 %v3648
    %3654 = vmatprep.subr.mxu0 0.0
    %3655 = vmatpush1.msra.mxu0 0.0
    %3656 = vmatprep.subr.mxu0 0.0
    %3657 = vmatpush1.msra.mxu0 0.0
    %3658 = vmatprep.subr.mxu0 0.0
    %3659 = vmatpush1.msra.mxu0 0.0
    %3660 = vmatprep.subr.mxu0 0.0
    %3661 = vmatpush1.msra.mxu0 0.0
    %3662 = vmatprep.subr.mxu0 0.0
    %3663 = vmatpush1.msra.mxu0 0.0
    %3664 = vmatprep.subr.mxu0 0.0
    %3665 = vmatpush1.msra.mxu0 0.0
    %3666 = vmatprep.subr.mxu0 0.0
    %3667 = vmatpush1.msra.mxu0 0.0
    %3668 = vmatprep.subr.mxu0 0.0
    %3669 = vmatpush1.msra.mxu0 0.0
    %3670 = vmatprep.subr.mxu0 0.0
    %3671 = vmatpush1.msra.mxu0 0.0
    %3672 = vmatprep.subr.mxu0 0.0
    %3673 = vmatpush1.msra.mxu0 0.0
    %3674 = vmatprep.subr.mxu0 0.0
    %3675 = vmatpush1.msra.mxu0 0.0
    %3676 = vmatprep.subr.mxu0 0.0
    %3677 = vmatpush1.msra.mxu0 0.0
    %3678 = vmatprep.subr.mxu0 0.0
    %3679 = vmatpush1.msra.mxu0 0.0
    %3680 = vmatprep.subr.mxu0 0.0
    %3681 = vmatpush1.msra.mxu0 0.0
    %3682 = vmatprep.subr.mxu0 0.0
    %3683 = vmatpush1.msra.mxu0 0.0
    %3684 = vmatprep.subr.mxu0 0.0
    %3685 = vmatpush1.msra.mxu0 0.0
    %3686 = vmatprep.subr.mxu0 0.0
    %3687 = vmatpush1.msra.mxu0 0.0
    %3688 = vmatprep.subr.mxu0 0.0
    %3689 = vmatpush1.msra.mxu0 0.0
    %3690 = vmatprep.subr.mxu0 0.0
    %3691 = vmatpush1.msra.mxu0 0.0
    %3692 = vmatprep.subr.mxu0 0.0
    %3693 = vmatpush1.msra.mxu0 0.0
    %3694 = vmatprep.subr.mxu0 0.0
    %3695 = vmatpush1.msra.mxu0 0.0
    %3696 = vmatprep.subr.mxu0 0.0
    %3697 = vmatpush1.msra.mxu0 0.0
    %3698 = vmatprep.subr.mxu0 0.0
    %3699 = vmatpush1.msra.mxu0 0.0
    %3700 = vmatprep.subr.mxu0 0.0
    %3701 = vmatpush1.msra.mxu0 0.0
    %3702 = vmatprep.subr.mxu0 0.0
    %3703 = vmatpush1.msra.mxu0 0.0
    %3704 = vmatprep.subr.mxu0 0.0
    %3705 = vmatpush1.msra.mxu0 0.0
    %3706 = vmatprep.subr.mxu0 0.0
    %3707 = vmatpush1.msra.mxu0 0.0
    %3708 = vmatprep.subr.mxu0 0.0
    %3709 = vmatpush1.msra.mxu0 0.0
    %3710 = vmatprep.subr.mxu0 0.0
    %3711 = vmatpush1.msra.mxu0 0.0
    %3712 = vmatprep.subr.mxu0 0.0
    %3713 = vmatpush1.msra.mxu0 0.0
    %3714 = vmatprep.subr.mxu0 0.0
    %3715 = vmatpush1.msra.mxu0 0.0
    %3716 = vmatprep.mubr.f32.mxu0 0.0
    %3717 = vmatmul.mubr.f32.gmra.mrb[0].mxu0 %v3650
    %v3718 = vpop.f32.mrb[0].mxu0
    %v3719 = vadd.f32 0.0, %v3718
    %v3720 = vpop.f32.mrb[0].mxu0
    %3721 = vdwg.mxu0
    %v3722 = vadd.f32 %v3487, %v3719
    %v3723 = vadd.f32 %v3722, %v2546
    %3724 = vst.msk [vmem:[#allocation2 + $0x8] sm:$0xff] %vm36, %v3723
    // Predicated region
    $region22: #{tpu_custom_call.1} parent=1 // pred_check
      _
    $region23: #{tpu_custom_call.1} parent=1 // pred_check_branch
      %3726 = sbr.rel (0) target = $region25
    $region24: #{tpu_custom_call.1} parent=1 // pred_region
      %s3728 = ssub.s32 256, 256
      %3729 = vsyncadd [#allocation3], %s3728
      %s3730 = sshll.u32 [#allocation2], 4
      %s3731 = int_to_ptr.vmem [resolvable:$true] %s3730
      %3736 = dma.vmem_to_hbm [thread:$0]  %s3731, 256, %s5, [#allocation3], 128, 128, 8
    $region25: #{tpu_custom_call.1} parent=1 // pred_fallthru
      _
    // Predicated region
    $region26: #{tpu_custom_call.1} parent=1 // pred_check
      _
    $region27: #{tpu_custom_call.1} parent=1 // pred_check_branch
      %3738 = sbr.rel (0) target = $region29
    $region28: #{tpu_custom_call.1} parent=1 // pred_region
      %3739 = dma.done [#allocation3], 256
    $region29: #{tpu_custom_call.1} parent=1 // pred_fallthru
      _
    %3740 = vsyncpa [#allocation3], 1

</llo_original>
